<compile_context>
chip_gen: v6e
topology: v6e:2x2x1
jax: 0.10.0
libtpu: 0.0.40
codegen_flags: <defaults>
</compile_context>

<pallas_src>
import functools
import math

import jax
import jax.numpy as jnp
from jax.experimental import pallas as pl
from jax.experimental.pallas import tpu as pltpu


# ----------------------------------------------------------------------------
# Fused encoder kernel (one pallas_call for the whole model)
# ----------------------------------------------------------------------------

def _encoder_kernel(emb_ref, mask_ref, eg_ref, eb_ref,
                    wq_ref, bq_ref, wk_ref, bk_ref, wv_ref, bv_ref,
                    wo_ref, bo_ref, ln1g_ref, ln1b_ref,
                    w1_ref, b1_ref, w2_ref, b2_ref, ln2g_ref, ln2b_ref,
                    pw_ref, pb_ref, ow_ref, ob_ref,
                    o_ref, *, n_layers, n_heads, eps):
    bf16 = jnp.bfloat16

    def layernorm(x, g, b):
        mu = jnp.mean(x, axis=-1, keepdims=True)
        xc = x - mu                                   # centered once, reused for variance
        var = jnp.mean(xc * xc, axis=-1, keepdims=True)
        return xc * jax.lax.rsqrt(var + eps) * g + b

    def ddot(a, w):  # contract last dim of `a` with first dim of `w`; f32 MXU accumulation
        return jax.lax.dot_general(
            a, w, (((a.ndim - 1,), (0,)), ((), ())),
            preferred_element_type=jnp.float32)

    # --- embedding LayerNorm (f32) ---
    x = layernorm(emb_ref[...], eg_ref[...], eb_ref[...])        # [B, S, H] f32
    mask_b = mask_ref[...][:, None, :]                           # [B, 1, S] additive bias

    # TODO(synk): at realistic L / nH switch to lax.fori_loop over layers with layer-indexed
    # refs (or a grid-over-layer scheme); Python unroll is fine at L=2, nH=2.
    for l in range(n_layers):
        xb = x.astype(bf16)                                      # bf16 MXU inputs once/layer

        # --- multi-head self-attention ---
        ctx_heads = []
        for h in range(n_heads):
            i = l * n_heads + h                                  # static leading-axis index
            # Per-head projections: K = H contraction, weights indexed on the leading axis
            # (no lane-dim slicing of activations). 1/sqrt(Dh) is pre-folded into wq.
            q = (ddot(xb, wq_ref[i]) + bq_ref[i]).astype(bf16)   # [B, S, Dh]
            k = (ddot(xb, wk_ref[i]) + bk_ref[i]).astype(bf16)   # [B, S, Dh]
            v = (ddot(xb, wv_ref[i]) + bv_ref[i]).astype(bf16)   # [B, S, Dh]

            # scores / softmax in f32; batched (leading-B) 3-D matmuls on the MXU
            s = jnp.einsum('bqd,bkd->bqk', q, k,
                           preferred_element_type=jnp.float32)   # [B, S, S]
            s = s + mask_b
            s = s - jnp.max(s, axis=-1, keepdims=True)
            p = jnp.exp(s)
            p = p * pl.reciprocal(jnp.sum(p, axis=-1, keepdims=True), approx=True)

            ctx_heads.append(
                jnp.einsum('bqk,bkd->bqd', p.astype(bf16), v,
                           preferred_element_type=jnp.float32))  # [B, S, Dh]

        # ONE output projection with full contraction depth K = H.
        ctx = jnp.concatenate(ctx_heads, axis=-1).astype(bf16)   # [B, S, H]
        attn = ddot(ctx, wo_ref[l]) + bo_ref[l]                  # [B, S, H] f32
        x = layernorm(attn + x, ln1g_ref[l], ln1b_ref[l])

        # --- feed-forward (bf16 matmuls, f32 GELU / residual / LN) ---
        xb2 = x.astype(bf16)
        h1 = jax.nn.gelu(ddot(xb2, w1_ref[l]) + b1_ref[l])       # [B, S, F] f32
        h2 = ddot(h1.astype(bf16), w2_ref[l]) + b2_ref[l]        # [B, S, H] f32
        x = layernorm(h2 + x, ln2g_ref[l], ln2b_ref[l])

    # --- pooler: tanh(Linear) on [CLS]; Dropout(0.3) is identity at eval; Linear(H, 1) ---
    h_cls = x[:, 0:1, :]                                         # [B, 1, H]
    pooled = jnp.tanh(ddot(h_cls.astype(bf16), pw_ref[...]) + pb_ref[...])   # [B, 1, H] f32
    # Final Linear(H, 1) as a VPU row-reduction (avoids a 1-lane MXU matmul).
    logit = jnp.sum(pooled * ow_ref[...], axis=-1) + ob_ref[...]             # [B, 1]
    o_ref[...] = logit.astype(o_ref.dtype)


# ----------------------------------------------------------------------------
# Parameter construction (deterministic, synthetic)
# ----------------------------------------------------------------------------

def init_params(key, *, vocab=100, hidden=32, n_heads=2, ffn=64, n_layers=2,
                max_pos=16, type_vocab=2):
    keys = iter(jax.random.split(key, 16))
    std = 0.02
    bf16 = jnp.bfloat16

    def nrm(shape, dtype=jnp.float32):
        return (std * jax.random.normal(next(keys), shape)).astype(dtype)

    L, H, F, nH = n_layers, hidden, ffn, n_heads
    Dh = H // nH
    scale = 1.0 / math.sqrt(Dh)                      # folded into the Q projection below

    return {
        "tok_emb": nrm((vocab, H)),
        "pos_emb": nrm((max_pos, H)),
        "type_emb": nrm((type_vocab, H)),
        "emb_ln_g": jnp.ones((1, H), jnp.float32),
        "emb_ln_b": jnp.zeros((1, H), jnp.float32),
        # Per-(layer, head) projections stacked on ONE leading axis [L*nH, H, Dh]:
        # leading-axis indexing in-kernel is free (no lane slicing / XLU repacks).
        # Attention scale 1/sqrt(Dh) is folded into wq (and would apply to bq if nonzero).
        "wq": (scale * nrm((L * nH, H, Dh))).astype(bf16),
        "bq": jnp.zeros((L * nH, 1, Dh), jnp.float32),
        "wk": nrm((L * nH, H, Dh), bf16),
        "bk": jnp.zeros((L * nH, 1, Dh), jnp.float32),
        "wv": nrm((L * nH, H, Dh), bf16),
        "bv": jnp.zeros((L * nH, 1, Dh), jnp.float32),
        "wo": nrm((L, H, H), bf16),
        "bo": jnp.zeros((L, 1, H), jnp.float32),
        "ln1_g": jnp.ones((L, 1, H), jnp.float32),
        "ln1_b": jnp.zeros((L, 1, H), jnp.float32),
        "w1": nrm((L, H, F), bf16), "b1": jnp.zeros((L, 1, F), jnp.float32),
        "w2": nrm((L, F, H), bf16), "b2": jnp.zeros((L, 1, H), jnp.float32),
        "ln2_g": jnp.ones((L, 1, H), jnp.float32),
        "ln2_b": jnp.zeros((L, 1, H), jnp.float32),
        "pool_w": nrm((H, H), bf16),
        "pool_b": jnp.zeros((1, H), jnp.float32),
        "out_w": nrm((1, H)),                        # nn.Linear(hidden, 1) weight (row form)
        "out_b": jnp.zeros((1, 1), jnp.float32),     # nn.Linear(hidden, 1) bias
    }


# ----------------------------------------------------------------------------
# Forward pass: embedding gather in JAX (glue), everything else in ONE Pallas kernel
# ----------------------------------------------------------------------------

def models_forward(params, input_ids, attention_mask, *, n_heads=2):
    B, S = input_ids.shape
    L = params["w1"].shape[0]

    # embeddings (token + position + segment-0); table gather stays in JAX
    emb = (jnp.take(params["tok_emb"], input_ids, axis=0)
           + params["pos_emb"][None, :S, :]
           + params["type_emb"][0][None, None, :]).astype(jnp.float32)   # [B, S, H]

    # additive attention bias from the raw [B, S] mask (0 -> attend, -1e9 -> pad)
    mask_bias = (1.0 - attention_mask.astype(jnp.float32)) * -1e9        # [B, S]

    kernel = functools.partial(_encoder_kernel,
                               n_layers=L, n_heads=n_heads, eps=1e-12)

    operands = (
        emb, mask_bias,
        params["emb_ln_g"], params["emb_ln_b"],
        params["wq"], params["bq"], params["wk"], params["bk"],
        params["wv"], params["bv"], params["wo"], params["bo"],
        params["ln1_g"], params["ln1_b"],
        params["w1"], params["b1"], params["w2"], params["b2"],
        params["ln2_g"], params["ln2_b"],
        params["pool_w"], params["pool_b"],
        params["out_w"], params["out_b"],
    )

    # No grid: a single fused invocation with whole-array VMEM operands -> no pipeline
    # double-buffering of the constant weights (Buffered(1) intent at toy shapes).
    # TODO(synk): at real BERT shapes replace with a (layer, K-tile) "arbitrary" grid that
    # streams weights HBM->VMEM via index_maps plus a "parallel" batch/M axis (v7x 2nd TC),
    # and set vmem_limit_bytes from the actual tile sizes.
    return pl.pallas_call(
        kernel,
        out_shape=jax.ShapeDtypeStruct((B, 1), jnp.float32),
        in_specs=[pl.BlockSpec(memory_space=pltpu.MemorySpace.VMEM) for _ in operands],
        out_specs=pl.BlockSpec(memory_space=pltpu.MemorySpace.VMEM),
    )(*operands)


# ----------------------------------------------------------------------------
# Main
# ----------------------------------------------------------------------------

if __name__ == "__main__":
    key = jax.random.PRNGKey(0)
    k_param, k_ids = jax.random.split(key)

    B, S, VOCAB, HIDDEN, NHEADS, FFN, NLAYERS = 2, 8, 100, 32, 2, 64, 2
    params = init_params(k_param, vocab=VOCAB, hidden=HIDDEN, n_heads=NHEADS,
                         ffn=FFN, n_layers=NLAYERS, max_pos=16)

    input_ids = jax.random.randint(k_ids, (B, S), 0, VOCAB, dtype=jnp.int32)
    attention_mask = jnp.ones((B, S), dtype=jnp.int32).at[1, 6:].set(0)  # pad tail of row 1

    fwd = jax.jit(functools.partial(models_forward, n_heads=NHEADS))
    out = jax.block_until_ready(fwd(params, input_ids, attention_mask))
    assert out.shape == (B, 1) and out.dtype == jnp.float32
    assert bool(jnp.all(jnp.isfinite(out)))
    print("KERNEL_OK")
</pallas_src>

<mosaic_0001>
module attributes {stable_mosaic.version = 11 : i64} {
  func.func @_encoder_kernel(%arg0: memref<2x8x32xf32, #tpu.memory_space<vmem>>, %arg1: memref<2x8xf32, #tpu.memory_space<vmem>>, %arg2: memref<1x32xf32, #tpu.memory_space<vmem>>, %arg3: memref<1x32xf32, #tpu.memory_space<vmem>>, %arg4: memref<4x32x16xbf16, #tpu.memory_space<vmem>>, %arg5: memref<4x1x16xf32, #tpu.memory_space<vmem>>, %arg6: memref<4x32x16xbf16, #tpu.memory_space<vmem>>, %arg7: memref<4x1x16xf32, #tpu.memory_space<vmem>>, %arg8: memref<4x32x16xbf16, #tpu.memory_space<vmem>>, %arg9: memref<4x1x16xf32, #tpu.memory_space<vmem>>, %arg10: memref<2x32x32xbf16, #tpu.memory_space<vmem>>, %arg11: memref<2x1x32xf32, #tpu.memory_space<vmem>>, %arg12: memref<2x1x32xf32, #tpu.memory_space<vmem>>, %arg13: memref<2x1x32xf32, #tpu.memory_space<vmem>>, %arg14: memref<2x32x64xbf16, #tpu.memory_space<vmem>>, %arg15: memref<2x1x64xf32, #tpu.memory_space<vmem>>, %arg16: memref<2x64x32xbf16, #tpu.memory_space<vmem>>, %arg17: memref<2x1x32xf32, #tpu.memory_space<vmem>>, %arg18: memref<2x1x32xf32, #tpu.memory_space<vmem>>, %arg19: memref<2x1x32xf32, #tpu.memory_space<vmem>>, %arg20: memref<32x32xbf16, #tpu.memory_space<vmem>>, %arg21: memref<1x32xf32, #tpu.memory_space<vmem>>, %arg22: memref<1x32xf32, #tpu.memory_space<vmem>>, %arg23: memref<1x1xf32, #tpu.memory_space<vmem>>, %arg24: memref<2x1xf32, #tpu.memory_space<vmem>>) attributes {dimension_semantics = [], scalar_prefetch = 0 : i64, scratch_operands = 0 : i64, tpu.core_type = #tpu.core_type<tc>} {
    %c0 = arith.constant 0 : index
    %c0_0 = arith.constant 0 : index
    %c0_1 = arith.constant 0 : index
    %0 = vector.load %arg0[%c0, %c0_0, %c0_1] : memref<2x8x32xf32, #tpu.memory_space<vmem>>, vector<2x8x32xf32>
    %c0_2 = arith.constant 0 : index
    %c0_3 = arith.constant 0 : index
    %1 = vector.load %arg2[%c0_2, %c0_3] : memref<1x32xf32, #tpu.memory_space<vmem>>, vector<1x32xf32>
    %c0_4 = arith.constant 0 : index
    %c0_5 = arith.constant 0 : index
    %2 = vector.load %arg3[%c0_4, %c0_5] : memref<1x32xf32, #tpu.memory_space<vmem>>, vector<1x32xf32>
    %cst = arith.constant dense<0.000000e+00> : vector<2x8xf32>
    %3 = vector.multi_reduction <add>, %0, %cst [2] : vector<2x8x32xf32> to vector<2x8xf32>
    %4 = vector.shape_cast %3 : vector<2x8xf32> to vector<2x8x1xf32>
    %cst_6 = arith.constant 3.200000e+01 : f32
    %5 = vector.broadcast %cst_6 : f32 to vector<2x8x1xf32>
    %6 = arith.divf %4, %5 : vector<2x8x1xf32>
    %7 = vector.broadcast %6 : vector<2x8x1xf32> to vector<2x8x32xf32>
    %8 = arith.subf %0, %7 : vector<2x8x32xf32>
    %9 = arith.mulf %8, %8 : vector<2x8x32xf32>
    %cst_7 = arith.constant dense<0.000000e+00> : vector<2x8xf32>
    %10 = vector.multi_reduction <add>, %9, %cst_7 [2] : vector<2x8x32xf32> to vector<2x8xf32>
    %11 = vector.shape_cast %10 : vector<2x8xf32> to vector<2x8x1xf32>
    %cst_8 = arith.constant 3.200000e+01 : f32
    %12 = vector.broadcast %cst_8 : f32 to vector<2x8x1xf32>
    %13 = arith.divf %11, %12 : vector<2x8x1xf32>
    %cst_9 = arith.constant 9.99999996E-13 : f32
    %14 = vector.broadcast %cst_9 : f32 to vector<2x8x1xf32>
    %15 = arith.addf %13, %14 : vector<2x8x1xf32>
    %16 = math.rsqrt %15 : vector<2x8x1xf32>
    %17 = vector.broadcast %16 : vector<2x8x1xf32> to vector<2x8x32xf32>
    %18 = arith.mulf %8, %17 : vector<2x8x32xf32>
    %19 = vector.shape_cast %1 : vector<1x32xf32> to vector<1x1x32xf32>
    %20 = vector.broadcast %19 : vector<1x1x32xf32> to vector<2x8x32xf32>
    %21 = arith.mulf %18, %20 : vector<2x8x32xf32>
    %22 = vector.shape_cast %2 : vector<1x32xf32> to vector<1x1x32xf32>
    %23 = vector.broadcast %22 : vector<1x1x32xf32> to vector<2x8x32xf32>
    %24 = arith.addf %21, %23 : vector<2x8x32xf32>
    %c0_10 = arith.constant 0 : index
    %c0_11 = arith.constant 0 : index
    %25 = vector.load %arg1[%c0_10, %c0_11] : memref<2x8xf32, #tpu.memory_space<vmem>>, vector<2x8xf32>
    %26 = vector.shape_cast %25 : vector<2x8xf32> to vector<2x1x8xf32>
    %27 = arith.truncf %24 : vector<2x8x32xf32> to vector<2x8x32xbf16>
    %c0_12 = arith.constant 0 : index
    %c0_13 = arith.constant 0 : index
    %c0_14 = arith.constant 0 : index
    %28 = vector.load %arg4[%c0_12, %c0_13, %c0_14] : memref<4x32x16xbf16, #tpu.memory_space<vmem>>, vector<1x32x16xbf16>
    %29 = vector.shape_cast %28 : vector<1x32x16xbf16> to vector<32x16xbf16>
    %cst_15 = arith.constant dense<0.000000e+00> : vector<2x8x16xf32>
    %30 = tpu.matmul %27, %29, %cst_15 {dimension_numbers = #tpu.dot_dimension_numbers<[2], [0], [0, 1], [1], [0, 0, 0, 1, 1, 1], [], []>} : vector<2x8x32xbf16>, vector<32x16xbf16>, vector<2x8x16xf32> -> vector<2x8x16xf32>
    %c0_16 = arith.constant 0 : index
    %c0_17 = arith.constant 0 : index
    %c0_18 = arith.constant 0 : index
    %31 = vector.load %arg5[%c0_16, %c0_17, %c0_18] : memref<4x1x16xf32, #tpu.memory_space<vmem>>, vector<1x1x16xf32>
    %32 = vector.shape_cast %31 : vector<1x1x16xf32> to vector<1x16xf32>
    %33 = vector.shape_cast %32 : vector<1x16xf32> to vector<1x1x16xf32>
    %34 = vector.broadcast %33 : vector<1x1x16xf32> to vector<2x8x16xf32>
    %35 = arith.addf %30, %34 : vector<2x8x16xf32>
    %36 = arith.truncf %35 : vector<2x8x16xf32> to vector<2x8x16xbf16>
    %c0_19 = arith.constant 0 : index
    %c0_20 = arith.constant 0 : index
    %c0_21 = arith.constant 0 : index
    %37 = vector.load %arg6[%c0_19, %c0_20, %c0_21] : memref<4x32x16xbf16, #tpu.memory_space<vmem>>, vector<1x32x16xbf16>
    %38 = vector.shape_cast %37 : vector<1x32x16xbf16> to vector<32x16xbf16>
    %cst_22 = arith.constant dense<0.000000e+00> : vector<2x8x16xf32>
    %39 = tpu.matmul %27, %38, %cst_22 {dimension_numbers = #tpu.dot_dimension_numbers<[2], [0], [0, 1], [1], [0, 0, 0, 1, 1, 1], [], []>} : vector<2x8x32xbf16>, vector<32x16xbf16>, vector<2x8x16xf32> -> vector<2x8x16xf32>
    %c0_23 = arith.constant 0 : index
    %c0_24 = arith.constant 0 : index
    %c0_25 = arith.constant 0 : index
    %40 = vector.load %arg7[%c0_23, %c0_24, %c0_25] : memref<4x1x16xf32, #tpu.memory_space<vmem>>, vector<1x1x16xf32>
    %41 = vector.shape_cast %40 : vector<1x1x16xf32> to vector<1x16xf32>
    %42 = vector.shape_cast %41 : vector<1x16xf32> to vector<1x1x16xf32>
    %43 = vector.broadcast %42 : vector<1x1x16xf32> to vector<2x8x16xf32>
    %44 = arith.addf %39, %43 : vector<2x8x16xf32>
    %45 = arith.truncf %44 : vector<2x8x16xf32> to vector<2x8x16xbf16>
    %c0_26 = arith.constant 0 : index
    %c0_27 = arith.constant 0 : index
    %c0_28 = arith.constant 0 : index
    %46 = vector.load %arg8[%c0_26, %c0_27, %c0_28] : memref<4x32x16xbf16, #tpu.memory_space<vmem>>, vector<1x32x16xbf16>
    %47 = vector.shape_cast %46 : vector<1x32x16xbf16> to vector<32x16xbf16>
    %cst_29 = arith.constant dense<0.000000e+00> : vector<2x8x16xf32>
    %48 = tpu.matmul %27, %47, %cst_29 {dimension_numbers = #tpu.dot_dimension_numbers<[2], [0], [0, 1], [1], [0, 0, 0, 1, 1, 1], [], []>} : vector<2x8x32xbf16>, vector<32x16xbf16>, vector<2x8x16xf32> -> vector<2x8x16xf32>
    %c0_30 = arith.constant 0 : index
    %c0_31 = arith.constant 0 : index
    %c0_32 = arith.constant 0 : index
    %49 = vector.load %arg9[%c0_30, %c0_31, %c0_32] : memref<4x1x16xf32, #tpu.memory_space<vmem>>, vector<1x1x16xf32>
    %50 = vector.shape_cast %49 : vector<1x1x16xf32> to vector<1x16xf32>
    %51 = vector.shape_cast %50 : vector<1x16xf32> to vector<1x1x16xf32>
    %52 = vector.broadcast %51 : vector<1x1x16xf32> to vector<2x8x16xf32>
    %53 = arith.addf %48, %52 : vector<2x8x16xf32>
    %54 = arith.truncf %53 : vector<2x8x16xf32> to vector<2x8x16xbf16>
    "tpu.trace_start"() <{level = 10 : i32, message = "bqd,bkd->bqk"}> : () -> ()
    %cst_33 = arith.constant dense<0.000000e+00> : vector<2x8x8xf32>
    %55 = tpu.matmul %36, %45, %cst_33 {dimension_numbers = #tpu.dot_dimension_numbers<[2], [2], [1], [1], [0, 0, 0, 1, 1, 1], [0], [0]>} : vector<2x8x16xbf16>, vector<2x8x16xbf16>, vector<2x8x8xf32> -> vector<2x8x8xf32>
    "tpu.trace_stop"() : () -> ()
    %56 = vector.broadcast %26 : vector<2x1x8xf32> to vector<2x8x8xf32>
    %57 = arith.addf %55, %56 : vector<2x8x8xf32>
    %cst_34 = arith.constant dense<0xFF800000> : vector<2x8xf32>
    %58 = vector.multi_reduction <maximumf>, %57, %cst_34 [2] : vector<2x8x8xf32> to vector<2x8xf32>
    %59 = vector.shape_cast %58 : vector<2x8xf32> to vector<2x8x1xf32>
    %60 = vector.broadcast %59 : vector<2x8x1xf32> to vector<2x8x8xf32>
    %61 = arith.subf %57, %60 : vector<2x8x8xf32>
    %62 = math.exp %61 : vector<2x8x8xf32>
    %cst_35 = arith.constant dense<0.000000e+00> : vector<2x8xf32>
    %63 = vector.multi_reduction <add>, %62, %cst_35 [2] : vector<2x8x8xf32> to vector<2x8xf32>
    %64 = vector.shape_cast %63 : vector<2x8xf32> to vector<2x8x1xf32>
    %65 = tpu.reciprocal %64 {approx = true} : vector<2x8x1xf32> -> vector<2x8x1xf32>
    %66 = vector.broadcast %65 : vector<2x8x1xf32> to vector<2x8x8xf32>
    %67 = arith.mulf %62, %66 : vector<2x8x8xf32>
    %68 = arith.truncf %67 : vector<2x8x8xf32> to vector<2x8x8xbf16>
    "tpu.trace_start"() <{level = 10 : i32, message = "bqk,bkd->bqd"}> : () -> ()
    %cst_36 = arith.constant dense<0.000000e+00> : vector<2x8x16xf32>
    %69 = tpu.matmul %68, %54, %cst_36 {dimension_numbers = #tpu.dot_dimension_numbers<[2], [1], [1], [2], [0, 0, 0, 1, 1, 2], [0], [0]>} : vector<2x8x8xbf16>, vector<2x8x16xbf16>, vector<2x8x16xf32> -> vector<2x8x16xf32>
    "tpu.trace_stop"() : () -> ()
    %c1 = arith.constant 1 : index
    %c0_37 = arith.constant 0 : index
    %c0_38 = arith.constant 0 : index
    %70 = vector.load %arg4[%c1, %c0_37, %c0_38] : memref<4x32x16xbf16, #tpu.memory_space<vmem>>, vector<1x32x16xbf16>
    %71 = vector.shape_cast %70 : vector<1x32x16xbf16> to vector<32x16xbf16>
    %cst_39 = arith.constant dense<0.000000e+00> : vector<2x8x16xf32>
    %72 = tpu.matmul %27, %71, %cst_39 {dimension_numbers = #tpu.dot_dimension_numbers<[2], [0], [0, 1], [1], [0, 0, 0, 1, 1, 1], [], []>} : vector<2x8x32xbf16>, vector<32x16xbf16>, vector<2x8x16xf32> -> vector<2x8x16xf32>
    %c1_40 = arith.constant 1 : index
    %c0_41 = arith.constant 0 : index
    %c0_42 = arith.constant 0 : index
    %73 = vector.load %arg5[%c1_40, %c0_41, %c0_42] : memref<4x1x16xf32, #tpu.memory_space<vmem>>, vector<1x1x16xf32>
    %74 = vector.shape_cast %73 : vector<1x1x16xf32> to vector<1x16xf32>
    %75 = vector.shape_cast %74 : vector<1x16xf32> to vector<1x1x16xf32>
    %76 = vector.broadcast %75 : vector<1x1x16xf32> to vector<2x8x16xf32>
    %77 = arith.addf %72, %76 : vector<2x8x16xf32>
    %78 = arith.truncf %77 : vector<2x8x16xf32> to vector<2x8x16xbf16>
    %c1_43 = arith.constant 1 : index
    %c0_44 = arith.constant 0 : index
    %c0_45 = arith.constant 0 : index
    %79 = vector.load %arg6[%c1_43, %c0_44, %c0_45] : memref<4x32x16xbf16, #tpu.memory_space<vmem>>, vector<1x32x16xbf16>
    %80 = vector.shape_cast %79 : vector<1x32x16xbf16> to vector<32x16xbf16>
    %cst_46 = arith.constant dense<0.000000e+00> : vector<2x8x16xf32>
    %81 = tpu.matmul %27, %80, %cst_46 {dimension_numbers = #tpu.dot_dimension_numbers<[2], [0], [0, 1], [1], [0, 0, 0, 1, 1, 1], [], []>} : vector<2x8x32xbf16>, vector<32x16xbf16>, vector<2x8x16xf32> -> vector<2x8x16xf32>
    %c1_47 = arith.constant 1 : index
    %c0_48 = arith.constant 0 : index
    %c0_49 = arith.constant 0 : index
    %82 = vector.load %arg7[%c1_47, %c0_48, %c0_49] : memref<4x1x16xf32, #tpu.memory_space<vmem>>, vector<1x1x16xf32>
    %83 = vector.shape_cast %82 : vector<1x1x16xf32> to vector<1x16xf32>
    %84 = vector.shape_cast %83 : vector<1x16xf32> to vector<1x1x16xf32>
    %85 = vector.broadcast %84 : vector<1x1x16xf32> to vector<2x8x16xf32>
    %86 = arith.addf %81, %85 : vector<2x8x16xf32>
    %87 = arith.truncf %86 : vector<2x8x16xf32> to vector<2x8x16xbf16>
    %c1_50 = arith.constant 1 : index
    %c0_51 = arith.constant 0 : index
    %c0_52 = arith.constant 0 : index
    %88 = vector.load %arg8[%c1_50, %c0_51, %c0_52] : memref<4x32x16xbf16, #tpu.memory_space<vmem>>, vector<1x32x16xbf16>
    %89 = vector.shape_cast %88 : vector<1x32x16xbf16> to vector<32x16xbf16>
    %cst_53 = arith.constant dense<0.000000e+00> : vector<2x8x16xf32>
    %90 = tpu.matmul %27, %89, %cst_53 {dimension_numbers = #tpu.dot_dimension_numbers<[2], [0], [0, 1], [1], [0, 0, 0, 1, 1, 1], [], []>} : vector<2x8x32xbf16>, vector<32x16xbf16>, vector<2x8x16xf32> -> vector<2x8x16xf32>
    %c1_54 = arith.constant 1 : index
    %c0_55 = arith.constant 0 : index
    %c0_56 = arith.constant 0 : index
    %91 = vector.load %arg9[%c1_54, %c0_55, %c0_56] : memref<4x1x16xf32, #tpu.memory_space<vmem>>, vector<1x1x16xf32>
    %92 = vector.shape_cast %91 : vector<1x1x16xf32> to vector<1x16xf32>
    %93 = vector.shape_cast %92 : vector<1x16xf32> to vector<1x1x16xf32>
    %94 = vector.broadcast %93 : vector<1x1x16xf32> to vector<2x8x16xf32>
    %95 = arith.addf %90, %94 : vector<2x8x16xf32>
    %96 = arith.truncf %95 : vector<2x8x16xf32> to vector<2x8x16xbf16>
    "tpu.trace_start"() <{level = 10 : i32, message = "bqd,bkd->bqk"}> : () -> ()
    %cst_57 = arith.constant dense<0.000000e+00> : vector<2x8x8xf32>
    %97 = tpu.matmul %78, %87, %cst_57 {dimension_numbers = #tpu.dot_dimension_numbers<[2], [2], [1], [1], [0, 0, 0, 1, 1, 1], [0], [0]>} : vector<2x8x16xbf16>, vector<2x8x16xbf16>, vector<2x8x8xf32> -> vector<2x8x8xf32>
    "tpu.trace_stop"() : () -> ()
    %98 = vector.broadcast %26 : vector<2x1x8xf32> to vector<2x8x8xf32>
    %99 = arith.addf %97, %98 : vector<2x8x8xf32>
    %cst_58 = arith.constant dense<0xFF800000> : vector<2x8xf32>
    %100 = vector.multi_reduction <maximumf>, %99, %cst_58 [2] : vector<2x8x8xf32> to vector<2x8xf32>
    %101 = vector.shape_cast %100 : vector<2x8xf32> to vector<2x8x1xf32>
    %102 = vector.broadcast %101 : vector<2x8x1xf32> to vector<2x8x8xf32>
    %103 = arith.subf %99, %102 : vector<2x8x8xf32>
    %104 = math.exp %103 : vector<2x8x8xf32>
    %cst_59 = arith.constant dense<0.000000e+00> : vector<2x8xf32>
    %105 = vector.multi_reduction <add>, %104, %cst_59 [2] : vector<2x8x8xf32> to vector<2x8xf32>
    %106 = vector.shape_cast %105 : vector<2x8xf32> to vector<2x8x1xf32>
    %107 = tpu.reciprocal %106 {approx = true} : vector<2x8x1xf32> -> vector<2x8x1xf32>
    %108 = vector.broadcast %107 : vector<2x8x1xf32> to vector<2x8x8xf32>
    %109 = arith.mulf %104, %108 : vector<2x8x8xf32>
    %110 = arith.truncf %109 : vector<2x8x8xf32> to vector<2x8x8xbf16>
    "tpu.trace_start"() <{level = 10 : i32, message = "bqk,bkd->bqd"}> : () -> ()
    %cst_60 = arith.constant dense<0.000000e+00> : vector<2x8x16xf32>
    %111 = tpu.matmul %110, %96, %cst_60 {dimension_numbers = #tpu.dot_dimension_numbers<[2], [1], [1], [2], [0, 0, 0, 1, 1, 2], [0], [0]>} : vector<2x8x8xbf16>, vector<2x8x16xbf16>, vector<2x8x16xf32> -> vector<2x8x16xf32>
    "tpu.trace_stop"() : () -> ()
    %112 = tpu.concatenate %69, %111 in 2 : vector<2x8x16xf32>, vector<2x8x16xf32> -> vector<2x8x32xf32>
    %113 = arith.truncf %112 : vector<2x8x32xf32> to vector<2x8x32xbf16>
    %c0_61 = arith.constant 0 : index
    %c0_62 = arith.constant 0 : index
    %c0_63 = arith.constant 0 : index
    %114 = vector.load %arg10[%c0_61, %c0_62, %c0_63] : memref<2x32x32xbf16, #tpu.memory_space<vmem>>, vector<1x32x32xbf16>
    %115 = vector.shape_cast %114 : vector<1x32x32xbf16> to vector<32x32xbf16>
    %cst_64 = arith.constant dense<0.000000e+00> : vector<2x8x32xf32>
    %116 = tpu.matmul %113, %115, %cst_64 {dimension_numbers = #tpu.dot_dimension_numbers<[2], [0], [0, 1], [1], [0, 0, 0, 1, 1, 1], [], []>} : vector<2x8x32xbf16>, vector<32x32xbf16>, vector<2x8x32xf32> -> vector<2x8x32xf32>
    %c0_65 = arith.constant 0 : index
    %c0_66 = arith.constant 0 : index
    %c0_67 = arith.constant 0 : index
    %117 = vector.load %arg11[%c0_65, %c0_66, %c0_67] : memref<2x1x32xf32, #tpu.memory_space<vmem>>, vector<1x1x32xf32>
    %118 = vector.shape_cast %117 : vector<1x1x32xf32> to vector<1x32xf32>
    %119 = vector.shape_cast %118 : vector<1x32xf32> to vector<1x1x32xf32>
    %120 = vector.broadcast %119 : vector<1x1x32xf32> to vector<2x8x32xf32>
    %121 = arith.addf %116, %120 : vector<2x8x32xf32>
    %122 = arith.addf %121, %24 : vector<2x8x32xf32>
    %c0_68 = arith.constant 0 : index
    %c0_69 = arith.constant 0 : index
    %c0_70 = arith.constant 0 : index
    %123 = vector.load %arg12[%c0_68, %c0_69, %c0_70] : memref<2x1x32xf32, #tpu.memory_space<vmem>>, vector<1x1x32xf32>
    %124 = vector.shape_cast %123 : vector<1x1x32xf32> to vector<1x32xf32>
    %c0_71 = arith.constant 0 : index
    %c0_72 = arith.constant 0 : index
    %c0_73 = arith.constant 0 : index
    %125 = vector.load %arg13[%c0_71, %c0_72, %c0_73] : memref<2x1x32xf32, #tpu.memory_space<vmem>>, vector<1x1x32xf32>
    %126 = vector.shape_cast %125 : vector<1x1x32xf32> to vector<1x32xf32>
    %cst_74 = arith.constant dense<0.000000e+00> : vector<2x8xf32>
    %127 = vector.multi_reduction <add>, %122, %cst_74 [2] : vector<2x8x32xf32> to vector<2x8xf32>
    %128 = vector.shape_cast %127 : vector<2x8xf32> to vector<2x8x1xf32>
    %cst_75 = arith.constant 3.200000e+01 : f32
    %129 = vector.broadcast %cst_75 : f32 to vector<2x8x1xf32>
    %130 = arith.divf %128, %129 : vector<2x8x1xf32>
    %131 = vector.broadcast %130 : vector<2x8x1xf32> to vector<2x8x32xf32>
    %132 = arith.subf %122, %131 : vector<2x8x32xf32>
    %133 = arith.mulf %132, %132 : vector<2x8x32xf32>
    %cst_76 = arith.constant dense<0.000000e+00> : vector<2x8xf32>
    %134 = vector.multi_reduction <add>, %133, %cst_76 [2] : vector<2x8x32xf32> to vector<2x8xf32>
    %135 = vector.shape_cast %134 : vector<2x8xf32> to vector<2x8x1xf32>
    %cst_77 = arith.constant 3.200000e+01 : f32
    %136 = vector.broadcast %cst_77 : f32 to vector<2x8x1xf32>
    %137 = arith.divf %135, %136 : vector<2x8x1xf32>
    %cst_78 = arith.constant 9.99999996E-13 : f32
    %138 = vector.broadcast %cst_78 : f32 to vector<2x8x1xf32>
    %139 = arith.addf %137, %138 : vector<2x8x1xf32>
    %140 = math.rsqrt %139 : vector<2x8x1xf32>
    %141 = vector.broadcast %140 : vector<2x8x1xf32> to vector<2x8x32xf32>
    %142 = arith.mulf %132, %141 : vector<2x8x32xf32>
    %143 = vector.shape_cast %124 : vector<1x32xf32> to vector<1x1x32xf32>
    %144 = vector.broadcast %143 : vector<1x1x32xf32> to vector<2x8x32xf32>
    %145 = arith.mulf %142, %144 : vector<2x8x32xf32>
    %146 = vector.shape_cast %126 : vector<1x32xf32> to vector<1x1x32xf32>
    %147 = vector.broadcast %146 : vector<1x1x32xf32> to vector<2x8x32xf32>
    %148 = arith.addf %145, %147 : vector<2x8x32xf32>
    %149 = arith.truncf %148 : vector<2x8x32xf32> to vector<2x8x32xbf16>
    %c0_79 = arith.constant 0 : index
    %c0_80 = arith.constant 0 : index
    %c0_81 = arith.constant 0 : index
    %150 = vector.load %arg14[%c0_79, %c0_80, %c0_81] : memref<2x32x64xbf16, #tpu.memory_space<vmem>>, vector<1x32x64xbf16>
    %151 = vector.shape_cast %150 : vector<1x32x64xbf16> to vector<32x64xbf16>
    %cst_82 = arith.constant dense<0.000000e+00> : vector<2x8x64xf32>
    %152 = tpu.matmul %149, %151, %cst_82 {dimension_numbers = #tpu.dot_dimension_numbers<[2], [0], [0, 1], [1], [0, 0, 0, 1, 1, 1], [], []>} : vector<2x8x32xbf16>, vector<32x64xbf16>, vector<2x8x64xf32> -> vector<2x8x64xf32>
    %c0_83 = arith.constant 0 : index
    %c0_84 = arith.constant 0 : index
    %c0_85 = arith.constant 0 : index
    %153 = vector.load %arg15[%c0_83, %c0_84, %c0_85] : memref<2x1x64xf32, #tpu.memory_space<vmem>>, vector<1x1x64xf32>
    %154 = vector.shape_cast %153 : vector<1x1x64xf32> to vector<1x64xf32>
    %155 = vector.shape_cast %154 : vector<1x64xf32> to vector<1x1x64xf32>
    %156 = vector.broadcast %155 : vector<1x1x64xf32> to vector<2x8x64xf32>
    %157 = arith.addf %152, %156 : vector<2x8x64xf32>
    %158 = arith.mulf %157, %157 : vector<2x8x64xf32>
    %159 = arith.mulf %157, %158 : vector<2x8x64xf32>
    %cst_86 = arith.constant 4.471500e-02 : f32
    %160 = vector.broadcast %cst_86 : f32 to vector<2x8x64xf32>
    %161 = arith.mulf %160, %159 : vector<2x8x64xf32>
    %162 = arith.addf %157, %161 : vector<2x8x64xf32>
    %cst_87 = arith.constant 0.797884583 : f32
    %163 = vector.broadcast %cst_87 : f32 to vector<2x8x64xf32>
    %164 = arith.mulf %163, %162 : vector<2x8x64xf32>
    %165 = math.tanh %164 : vector<2x8x64xf32>
    %cst_88 = arith.constant 1.000000e+00 : f32
    %166 = vector.broadcast %cst_88 : f32 to vector<2x8x64xf32>
    %167 = arith.addf %166, %165 : vector<2x8x64xf32>
    %cst_89 = arith.constant 5.000000e-01 : f32
    %168 = vector.broadcast %cst_89 : f32 to vector<2x8x64xf32>
    %169 = arith.mulf %168, %167 : vector<2x8x64xf32>
    %170 = arith.mulf %157, %169 : vector<2x8x64xf32>
    %171 = arith.truncf %170 : vector<2x8x64xf32> to vector<2x8x64xbf16>
    %c0_90 = arith.constant 0 : index
    %c0_91 = arith.constant 0 : index
    %c0_92 = arith.constant 0 : index
    %172 = vector.load %arg16[%c0_90, %c0_91, %c0_92] : memref<2x64x32xbf16, #tpu.memory_space<vmem>>, vector<1x64x32xbf16>
    %173 = vector.shape_cast %172 : vector<1x64x32xbf16> to vector<64x32xbf16>
    %cst_93 = arith.constant dense<0.000000e+00> : vector<2x8x32xf32>
    %174 = tpu.matmul %171, %173, %cst_93 {dimension_numbers = #tpu.dot_dimension_numbers<[2], [0], [0, 1], [1], [0, 0, 0, 1, 1, 1], [], []>} : vector<2x8x64xbf16>, vector<64x32xbf16>, vector<2x8x32xf32> -> vector<2x8x32xf32>
    %c0_94 = arith.constant 0 : index
    %c0_95 = arith.constant 0 : index
    %c0_96 = arith.constant 0 : index
    %175 = vector.load %arg17[%c0_94, %c0_95, %c0_96] : memref<2x1x32xf32, #tpu.memory_space<vmem>>, vector<1x1x32xf32>
    %176 = vector.shape_cast %175 : vector<1x1x32xf32> to vector<1x32xf32>
    %177 = vector.shape_cast %176 : vector<1x32xf32> to vector<1x1x32xf32>
    %178 = vector.broadcast %177 : vector<1x1x32xf32> to vector<2x8x32xf32>
    %179 = arith.addf %174, %178 : vector<2x8x32xf32>
    %180 = arith.addf %179, %148 : vector<2x8x32xf32>
    %c0_97 = arith.constant 0 : index
    %c0_98 = arith.constant 0 : index
    %c0_99 = arith.constant 0 : index
    %181 = vector.load %arg18[%c0_97, %c0_98, %c0_99] : memref<2x1x32xf32, #tpu.memory_space<vmem>>, vector<1x1x32xf32>
    %182 = vector.shape_cast %181 : vector<1x1x32xf32> to vector<1x32xf32>
    %c0_100 = arith.constant 0 : index
    %c0_101 = arith.constant 0 : index
    %c0_102 = arith.constant 0 : index
    %183 = vector.load %arg19[%c0_100, %c0_101, %c0_102] : memref<2x1x32xf32, #tpu.memory_space<vmem>>, vector<1x1x32xf32>
    %184 = vector.shape_cast %183 : vector<1x1x32xf32> to vector<1x32xf32>
    %cst_103 = arith.constant dense<0.000000e+00> : vector<2x8xf32>
    %185 = vector.multi_reduction <add>, %180, %cst_103 [2] : vector<2x8x32xf32> to vector<2x8xf32>
    %186 = vector.shape_cast %185 : vector<2x8xf32> to vector<2x8x1xf32>
    %cst_104 = arith.constant 3.200000e+01 : f32
    %187 = vector.broadcast %cst_104 : f32 to vector<2x8x1xf32>
    %188 = arith.divf %186, %187 : vector<2x8x1xf32>
    %189 = vector.broadcast %188 : vector<2x8x1xf32> to vector<2x8x32xf32>
    %190 = arith.subf %180, %189 : vector<2x8x32xf32>
    %191 = arith.mulf %190, %190 : vector<2x8x32xf32>
    %cst_105 = arith.constant dense<0.000000e+00> : vector<2x8xf32>
    %192 = vector.multi_reduction <add>, %191, %cst_105 [2] : vector<2x8x32xf32> to vector<2x8xf32>
    %193 = vector.shape_cast %192 : vector<2x8xf32> to vector<2x8x1xf32>
    %cst_106 = arith.constant 3.200000e+01 : f32
    %194 = vector.broadcast %cst_106 : f32 to vector<2x8x1xf32>
    %195 = arith.divf %193, %194 : vector<2x8x1xf32>
    %cst_107 = arith.constant 9.99999996E-13 : f32
    %196 = vector.broadcast %cst_107 : f32 to vector<2x8x1xf32>
    %197 = arith.addf %195, %196 : vector<2x8x1xf32>
    %198 = math.rsqrt %197 : vector<2x8x1xf32>
    %199 = vector.broadcast %198 : vector<2x8x1xf32> to vector<2x8x32xf32>
    %200 = arith.mulf %190, %199 : vector<2x8x32xf32>
    %201 = vector.shape_cast %182 : vector<1x32xf32> to vector<1x1x32xf32>
    %202 = vector.broadcast %201 : vector<1x1x32xf32> to vector<2x8x32xf32>
    %203 = arith.mulf %200, %202 : vector<2x8x32xf32>
    %204 = vector.shape_cast %184 : vector<1x32xf32> to vector<1x1x32xf32>
    %205 = vector.broadcast %204 : vector<1x1x32xf32> to vector<2x8x32xf32>
    %206 = arith.addf %203, %205 : vector<2x8x32xf32>
    %207 = arith.truncf %206 : vector<2x8x32xf32> to vector<2x8x32xbf16>
    %c2 = arith.constant 2 : index
    %c0_108 = arith.constant 0 : index
    %c0_109 = arith.constant 0 : index
    %208 = vector.load %arg4[%c2, %c0_108, %c0_109] : memref<4x32x16xbf16, #tpu.memory_space<vmem>>, vector<1x32x16xbf16>
    %209 = vector.shape_cast %208 : vector<1x32x16xbf16> to vector<32x16xbf16>
    %cst_110 = arith.constant dense<0.000000e+00> : vector<2x8x16xf32>
    %210 = tpu.matmul %207, %209, %cst_110 {dimension_numbers = #tpu.dot_dimension_numbers<[2], [0], [0, 1], [1], [0, 0, 0, 1, 1, 1], [], []>} : vector<2x8x32xbf16>, vector<32x16xbf16>, vector<2x8x16xf32> -> vector<2x8x16xf32>
    %c2_111 = arith.constant 2 : index
    %c0_112 = arith.constant 0 : index
    %c0_113 = arith.constant 0 : index
    %211 = vector.load %arg5[%c2_111, %c0_112, %c0_113] : memref<4x1x16xf32, #tpu.memory_space<vmem>>, vector<1x1x16xf32>
    %212 = vector.shape_cast %211 : vector<1x1x16xf32> to vector<1x16xf32>
    %213 = vector.shape_cast %212 : vector<1x16xf32> to vector<1x1x16xf32>
    %214 = vector.broadcast %213 : vector<1x1x16xf32> to vector<2x8x16xf32>
    %215 = arith.addf %210, %214 : vector<2x8x16xf32>
    %216 = arith.truncf %215 : vector<2x8x16xf32> to vector<2x8x16xbf16>
    %c2_114 = arith.constant 2 : index
    %c0_115 = arith.constant 0 : index
    %c0_116 = arith.constant 0 : index
    %217 = vector.load %arg6[%c2_114, %c0_115, %c0_116] : memref<4x32x16xbf16, #tpu.memory_space<vmem>>, vector<1x32x16xbf16>
    %218 = vector.shape_cast %217 : vector<1x32x16xbf16> to vector<32x16xbf16>
    %cst_117 = arith.constant dense<0.000000e+00> : vector<2x8x16xf32>
    %219 = tpu.matmul %207, %218, %cst_117 {dimension_numbers = #tpu.dot_dimension_numbers<[2], [0], [0, 1], [1], [0, 0, 0, 1, 1, 1], [], []>} : vector<2x8x32xbf16>, vector<32x16xbf16>, vector<2x8x16xf32> -> vector<2x8x16xf32>
    %c2_118 = arith.constant 2 : index
    %c0_119 = arith.constant 0 : index
    %c0_120 = arith.constant 0 : index
    %220 = vector.load %arg7[%c2_118, %c0_119, %c0_120] : memref<4x1x16xf32, #tpu.memory_space<vmem>>, vector<1x1x16xf32>
    %221 = vector.shape_cast %220 : vector<1x1x16xf32> to vector<1x16xf32>
    %222 = vector.shape_cast %221 : vector<1x16xf32> to vector<1x1x16xf32>
    %223 = vector.broadcast %222 : vector<1x1x16xf32> to vector<2x8x16xf32>
    %224 = arith.addf %219, %223 : vector<2x8x16xf32>
    %225 = arith.truncf %224 : vector<2x8x16xf32> to vector<2x8x16xbf16>
    %c2_121 = arith.constant 2 : index
    %c0_122 = arith.constant 0 : index
    %c0_123 = arith.constant 0 : index
    %226 = vector.load %arg8[%c2_121, %c0_122, %c0_123] : memref<4x32x16xbf16, #tpu.memory_space<vmem>>, vector<1x32x16xbf16>
    %227 = vector.shape_cast %226 : vector<1x32x16xbf16> to vector<32x16xbf16>
    %cst_124 = arith.constant dense<0.000000e+00> : vector<2x8x16xf32>
    %228 = tpu.matmul %207, %227, %cst_124 {dimension_numbers = #tpu.dot_dimension_numbers<[2], [0], [0, 1], [1], [0, 0, 0, 1, 1, 1], [], []>} : vector<2x8x32xbf16>, vector<32x16xbf16>, vector<2x8x16xf32> -> vector<2x8x16xf32>
    %c2_125 = arith.constant 2 : index
    %c0_126 = arith.constant 0 : index
    %c0_127 = arith.constant 0 : index
    %229 = vector.load %arg9[%c2_125, %c0_126, %c0_127] : memref<4x1x16xf32, #tpu.memory_space<vmem>>, vector<1x1x16xf32>
    %230 = vector.shape_cast %229 : vector<1x1x16xf32> to vector<1x16xf32>
    %231 = vector.shape_cast %230 : vector<1x16xf32> to vector<1x1x16xf32>
    %232 = vector.broadcast %231 : vector<1x1x16xf32> to vector<2x8x16xf32>
    %233 = arith.addf %228, %232 : vector<2x8x16xf32>
    %234 = arith.truncf %233 : vector<2x8x16xf32> to vector<2x8x16xbf16>
    "tpu.trace_start"() <{level = 10 : i32, message = "bqd,bkd->bqk"}> : () -> ()
    %cst_128 = arith.constant dense<0.000000e+00> : vector<2x8x8xf32>
    %235 = tpu.matmul %216, %225, %cst_128 {dimension_numbers = #tpu.dot_dimension_numbers<[2], [2], [1], [1], [0, 0, 0, 1, 1, 1], [0], [0]>} : vector<2x8x16xbf16>, vector<2x8x16xbf16>, vector<2x8x8xf32> -> vector<2x8x8xf32>
    "tpu.trace_stop"() : () -> ()
    %236 = vector.broadcast %26 : vector<2x1x8xf32> to vector<2x8x8xf32>
    %237 = arith.addf %235, %236 : vector<2x8x8xf32>
    %cst_129 = arith.constant dense<0xFF800000> : vector<2x8xf32>
    %238 = vector.multi_reduction <maximumf>, %237, %cst_129 [2] : vector<2x8x8xf32> to vector<2x8xf32>
    %239 = vector.shape_cast %238 : vector<2x8xf32> to vector<2x8x1xf32>
    %240 = vector.broadcast %239 : vector<2x8x1xf32> to vector<2x8x8xf32>
    %241 = arith.subf %237, %240 : vector<2x8x8xf32>
    %242 = math.exp %241 : vector<2x8x8xf32>
    %cst_130 = arith.constant dense<0.000000e+00> : vector<2x8xf32>
    %243 = vector.multi_reduction <add>, %242, %cst_130 [2] : vector<2x8x8xf32> to vector<2x8xf32>
    %244 = vector.shape_cast %243 : vector<2x8xf32> to vector<2x8x1xf32>
    %245 = tpu.reciprocal %244 {approx = true} : vector<2x8x1xf32> -> vector<2x8x1xf32>
    %246 = vector.broadcast %245 : vector<2x8x1xf32> to vector<2x8x8xf32>
    %247 = arith.mulf %242, %246 : vector<2x8x8xf32>
    %248 = arith.truncf %247 : vector<2x8x8xf32> to vector<2x8x8xbf16>
    "tpu.trace_start"() <{level = 10 : i32, message = "bqk,bkd->bqd"}> : () -> ()
    %cst_131 = arith.constant dense<0.000000e+00> : vector<2x8x16xf32>
    %249 = tpu.matmul %248, %234, %cst_131 {dimension_numbers = #tpu.dot_dimension_numbers<[2], [1], [1], [2], [0, 0, 0, 1, 1, 2], [0], [0]>} : vector<2x8x8xbf16>, vector<2x8x16xbf16>, vector<2x8x16xf32> -> vector<2x8x16xf32>
    "tpu.trace_stop"() : () -> ()
    %c3 = arith.constant 3 : index
    %c0_132 = arith.constant 0 : index
    %c0_133 = arith.constant 0 : index
    %250 = vector.load %arg4[%c3, %c0_132, %c0_133] : memref<4x32x16xbf16, #tpu.memory_space<vmem>>, vector<1x32x16xbf16>
    %251 = vector.shape_cast %250 : vector<1x32x16xbf16> to vector<32x16xbf16>
    %cst_134 = arith.constant dense<0.000000e+00> : vector<2x8x16xf32>
    %252 = tpu.matmul %207, %251, %cst_134 {dimension_numbers = #tpu.dot_dimension_numbers<[2], [0], [0, 1], [1], [0, 0, 0, 1, 1, 1], [], []>} : vector<2x8x32xbf16>, vector<32x16xbf16>, vector<2x8x16xf32> -> vector<2x8x16xf32>
    %c3_135 = arith.constant 3 : index
    %c0_136 = arith.constant 0 : index
    %c0_137 = arith.constant 0 : index
    %253 = vector.load %arg5[%c3_135, %c0_136, %c0_137] : memref<4x1x16xf32, #tpu.memory_space<vmem>>, vector<1x1x16xf32>
    %254 = vector.shape_cast %253 : vector<1x1x16xf32> to vector<1x16xf32>
    %255 = vector.shape_cast %254 : vector<1x16xf32> to vector<1x1x16xf32>
    %256 = vector.broadcast %255 : vector<1x1x16xf32> to vector<2x8x16xf32>
    %257 = arith.addf %252, %256 : vector<2x8x16xf32>
    %258 = arith.truncf %257 : vector<2x8x16xf32> to vector<2x8x16xbf16>
    %c3_138 = arith.constant 3 : index
    %c0_139 = arith.constant 0 : index
    %c0_140 = arith.constant 0 : index
    %259 = vector.load %arg6[%c3_138, %c0_139, %c0_140] : memref<4x32x16xbf16, #tpu.memory_space<vmem>>, vector<1x32x16xbf16>
    %260 = vector.shape_cast %259 : vector<1x32x16xbf16> to vector<32x16xbf16>
    %cst_141 = arith.constant dense<0.000000e+00> : vector<2x8x16xf32>
    %261 = tpu.matmul %207, %260, %cst_141 {dimension_numbers = #tpu.dot_dimension_numbers<[2], [0], [0, 1], [1], [0, 0, 0, 1, 1, 1], [], []>} : vector<2x8x32xbf16>, vector<32x16xbf16>, vector<2x8x16xf32> -> vector<2x8x16xf32>
    %c3_142 = arith.constant 3 : index
    %c0_143 = arith.constant 0 : index
    %c0_144 = arith.constant 0 : index
    %262 = vector.load %arg7[%c3_142, %c0_143, %c0_144] : memref<4x1x16xf32, #tpu.memory_space<vmem>>, vector<1x1x16xf32>
    %263 = vector.shape_cast %262 : vector<1x1x16xf32> to vector<1x16xf32>
    %264 = vector.shape_cast %263 : vector<1x16xf32> to vector<1x1x16xf32>
    %265 = vector.broadcast %264 : vector<1x1x16xf32> to vector<2x8x16xf32>
    %266 = arith.addf %261, %265 : vector<2x8x16xf32>
    %267 = arith.truncf %266 : vector<2x8x16xf32> to vector<2x8x16xbf16>
    %c3_145 = arith.constant 3 : index
    %c0_146 = arith.constant 0 : index
    %c0_147 = arith.constant 0 : index
    %268 = vector.load %arg8[%c3_145, %c0_146, %c0_147] : memref<4x32x16xbf16, #tpu.memory_space<vmem>>, vector<1x32x16xbf16>
    %269 = vector.shape_cast %268 : vector<1x32x16xbf16> to vector<32x16xbf16>
    %cst_148 = arith.constant dense<0.000000e+00> : vector<2x8x16xf32>
    %270 = tpu.matmul %207, %269, %cst_148 {dimension_numbers = #tpu.dot_dimension_numbers<[2], [0], [0, 1], [1], [0, 0, 0, 1, 1, 1], [], []>} : vector<2x8x32xbf16>, vector<32x16xbf16>, vector<2x8x16xf32> -> vector<2x8x16xf32>
    %c3_149 = arith.constant 3 : index
    %c0_150 = arith.constant 0 : index
    %c0_151 = arith.constant 0 : index
    %271 = vector.load %arg9[%c3_149, %c0_150, %c0_151] : memref<4x1x16xf32, #tpu.memory_space<vmem>>, vector<1x1x16xf32>
    %272 = vector.shape_cast %271 : vector<1x1x16xf32> to vector<1x16xf32>
    %273 = vector.shape_cast %272 : vector<1x16xf32> to vector<1x1x16xf32>
    %274 = vector.broadcast %273 : vector<1x1x16xf32> to vector<2x8x16xf32>
    %275 = arith.addf %270, %274 : vector<2x8x16xf32>
    %276 = arith.truncf %275 : vector<2x8x16xf32> to vector<2x8x16xbf16>
    "tpu.trace_start"() <{level = 10 : i32, message = "bqd,bkd->bqk"}> : () -> ()
    %cst_152 = arith.constant dense<0.000000e+00> : vector<2x8x8xf32>
    %277 = tpu.matmul %258, %267, %cst_152 {dimension_numbers = #tpu.dot_dimension_numbers<[2], [2], [1], [1], [0, 0, 0, 1, 1, 1], [0], [0]>} : vector<2x8x16xbf16>, vector<2x8x16xbf16>, vector<2x8x8xf32> -> vector<2x8x8xf32>
    "tpu.trace_stop"() : () -> ()
    %278 = vector.broadcast %26 : vector<2x1x8xf32> to vector<2x8x8xf32>
    %279 = arith.addf %277, %278 : vector<2x8x8xf32>
    %cst_153 = arith.constant dense<0xFF800000> : vector<2x8xf32>
    %280 = vector.multi_reduction <maximumf>, %279, %cst_153 [2] : vector<2x8x8xf32> to vector<2x8xf32>
    %281 = vector.shape_cast %280 : vector<2x8xf32> to vector<2x8x1xf32>
    %282 = vector.broadcast %281 : vector<2x8x1xf32> to vector<2x8x8xf32>
    %283 = arith.subf %279, %282 : vector<2x8x8xf32>
    %284 = math.exp %283 : vector<2x8x8xf32>
    %cst_154 = arith.constant dense<0.000000e+00> : vector<2x8xf32>
    %285 = vector.multi_reduction <add>, %284, %cst_154 [2] : vector<2x8x8xf32> to vector<2x8xf32>
    %286 = vector.shape_cast %285 : vector<2x8xf32> to vector<2x8x1xf32>
    %287 = tpu.reciprocal %286 {approx = true} : vector<2x8x1xf32> -> vector<2x8x1xf32>
    %288 = vector.broadcast %287 : vector<2x8x1xf32> to vector<2x8x8xf32>
    %289 = arith.mulf %284, %288 : vector<2x8x8xf32>
    %290 = arith.truncf %289 : vector<2x8x8xf32> to vector<2x8x8xbf16>
    "tpu.trace_start"() <{level = 10 : i32, message = "bqk,bkd->bqd"}> : () -> ()
    %cst_155 = arith.constant dense<0.000000e+00> : vector<2x8x16xf32>
    %291 = tpu.matmul %290, %276, %cst_155 {dimension_numbers = #tpu.dot_dimension_numbers<[2], [1], [1], [2], [0, 0, 0, 1, 1, 2], [0], [0]>} : vector<2x8x8xbf16>, vector<2x8x16xbf16>, vector<2x8x16xf32> -> vector<2x8x16xf32>
    "tpu.trace_stop"() : () -> ()
    %292 = tpu.concatenate %249, %291 in 2 : vector<2x8x16xf32>, vector<2x8x16xf32> -> vector<2x8x32xf32>
    %293 = arith.truncf %292 : vector<2x8x32xf32> to vector<2x8x32xbf16>
    %c1_156 = arith.constant 1 : index
    %c0_157 = arith.constant 0 : index
    %c0_158 = arith.constant 0 : index
    %294 = vector.load %arg10[%c1_156, %c0_157, %c0_158] : memref<2x32x32xbf16, #tpu.memory_space<vmem>>, vector<1x32x32xbf16>
    %295 = vector.shape_cast %294 : vector<1x32x32xbf16> to vector<32x32xbf16>
    %cst_159 = arith.constant dense<0.000000e+00> : vector<2x8x32xf32>
    %296 = tpu.matmul %293, %295, %cst_159 {dimension_numbers = #tpu.dot_dimension_numbers<[2], [0], [0, 1], [1], [0, 0, 0, 1, 1, 1], [], []>} : vector<2x8x32xbf16>, vector<32x32xbf16>, vector<2x8x32xf32> -> vector<2x8x32xf32>
    %c1_160 = arith.constant 1 : index
    %c0_161 = arith.constant 0 : index
    %c0_162 = arith.constant 0 : index
    %297 = vector.load %arg11[%c1_160, %c0_161, %c0_162] : memref<2x1x32xf32, #tpu.memory_space<vmem>>, vector<1x1x32xf32>
    %298 = vector.shape_cast %297 : vector<1x1x32xf32> to vector<1x32xf32>
    %299 = vector.shape_cast %298 : vector<1x32xf32> to vector<1x1x32xf32>
    %300 = vector.broadcast %299 : vector<1x1x32xf32> to vector<2x8x32xf32>
    %301 = arith.addf %296, %300 : vector<2x8x32xf32>
    %302 = arith.addf %301, %206 : vector<2x8x32xf32>
    %c1_163 = arith.constant 1 : index
    %c0_164 = arith.constant 0 : index
    %c0_165 = arith.constant 0 : index
    %303 = vector.load %arg12[%c1_163, %c0_164, %c0_165] : memref<2x1x32xf32, #tpu.memory_space<vmem>>, vector<1x1x32xf32>
    %304 = vector.shape_cast %303 : vector<1x1x32xf32> to vector<1x32xf32>
    %c1_166 = arith.constant 1 : index
    %c0_167 = arith.constant 0 : index
    %c0_168 = arith.constant 0 : index
    %305 = vector.load %arg13[%c1_166, %c0_167, %c0_168] : memref<2x1x32xf32, #tpu.memory_space<vmem>>, vector<1x1x32xf32>
    %306 = vector.shape_cast %305 : vector<1x1x32xf32> to vector<1x32xf32>
    %cst_169 = arith.constant dense<0.000000e+00> : vector<2x8xf32>
    %307 = vector.multi_reduction <add>, %302, %cst_169 [2] : vector<2x8x32xf32> to vector<2x8xf32>
    %308 = vector.shape_cast %307 : vector<2x8xf32> to vector<2x8x1xf32>
    %cst_170 = arith.constant 3.200000e+01 : f32
    %309 = vector.broadcast %cst_170 : f32 to vector<2x8x1xf32>
    %310 = arith.divf %308, %309 : vector<2x8x1xf32>
    %311 = vector.broadcast %310 : vector<2x8x1xf32> to vector<2x8x32xf32>
    %312 = arith.subf %302, %311 : vector<2x8x32xf32>
    %313 = arith.mulf %312, %312 : vector<2x8x32xf32>
    %cst_171 = arith.constant dense<0.000000e+00> : vector<2x8xf32>
    %314 = vector.multi_reduction <add>, %313, %cst_171 [2] : vector<2x8x32xf32> to vector<2x8xf32>
    %315 = vector.shape_cast %314 : vector<2x8xf32> to vector<2x8x1xf32>
    %cst_172 = arith.constant 3.200000e+01 : f32
    %316 = vector.broadcast %cst_172 : f32 to vector<2x8x1xf32>
    %317 = arith.divf %315, %316 : vector<2x8x1xf32>
    %cst_173 = arith.constant 9.99999996E-13 : f32
    %318 = vector.broadcast %cst_173 : f32 to vector<2x8x1xf32>
    %319 = arith.addf %317, %318 : vector<2x8x1xf32>
    %320 = math.rsqrt %319 : vector<2x8x1xf32>
    %321 = vector.broadcast %320 : vector<2x8x1xf32> to vector<2x8x32xf32>
    %322 = arith.mulf %312, %321 : vector<2x8x32xf32>
    %323 = vector.shape_cast %304 : vector<1x32xf32> to vector<1x1x32xf32>
    %324 = vector.broadcast %323 : vector<1x1x32xf32> to vector<2x8x32xf32>
    %325 = arith.mulf %322, %324 : vector<2x8x32xf32>
    %326 = vector.shape_cast %306 : vector<1x32xf32> to vector<1x1x32xf32>
    %327 = vector.broadcast %326 : vector<1x1x32xf32> to vector<2x8x32xf32>
    %328 = arith.addf %325, %327 : vector<2x8x32xf32>
    %329 = arith.truncf %328 : vector<2x8x32xf32> to vector<2x8x32xbf16>
    %c1_174 = arith.constant 1 : index
    %c0_175 = arith.constant 0 : index
    %c0_176 = arith.constant 0 : index
    %330 = vector.load %arg14[%c1_174, %c0_175, %c0_176] : memref<2x32x64xbf16, #tpu.memory_space<vmem>>, vector<1x32x64xbf16>
    %331 = vector.shape_cast %330 : vector<1x32x64xbf16> to vector<32x64xbf16>
    %cst_177 = arith.constant dense<0.000000e+00> : vector<2x8x64xf32>
    %332 = tpu.matmul %329, %331, %cst_177 {dimension_numbers = #tpu.dot_dimension_numbers<[2], [0], [0, 1], [1], [0, 0, 0, 1, 1, 1], [], []>} : vector<2x8x32xbf16>, vector<32x64xbf16>, vector<2x8x64xf32> -> vector<2x8x64xf32>
    %c1_178 = arith.constant 1 : index
    %c0_179 = arith.constant 0 : index
    %c0_180 = arith.constant 0 : index
    %333 = vector.load %arg15[%c1_178, %c0_179, %c0_180] : memref<2x1x64xf32, #tpu.memory_space<vmem>>, vector<1x1x64xf32>
    %334 = vector.shape_cast %333 : vector<1x1x64xf32> to vector<1x64xf32>
    %335 = vector.shape_cast %334 : vector<1x64xf32> to vector<1x1x64xf32>
    %336 = vector.broadcast %335 : vector<1x1x64xf32> to vector<2x8x64xf32>
    %337 = arith.addf %332, %336 : vector<2x8x64xf32>
    %338 = arith.mulf %337, %337 : vector<2x8x64xf32>
    %339 = arith.mulf %337, %338 : vector<2x8x64xf32>
    %cst_181 = arith.constant 4.471500e-02 : f32
    %340 = vector.broadcast %cst_181 : f32 to vector<2x8x64xf32>
    %341 = arith.mulf %340, %339 : vector<2x8x64xf32>
    %342 = arith.addf %337, %341 : vector<2x8x64xf32>
    %cst_182 = arith.constant 0.797884583 : f32
    %343 = vector.broadcast %cst_182 : f32 to vector<2x8x64xf32>
    %344 = arith.mulf %343, %342 : vector<2x8x64xf32>
    %345 = math.tanh %344 : vector<2x8x64xf32>
    %cst_183 = arith.constant 1.000000e+00 : f32
    %346 = vector.broadcast %cst_183 : f32 to vector<2x8x64xf32>
    %347 = arith.addf %346, %345 : vector<2x8x64xf32>
    %cst_184 = arith.constant 5.000000e-01 : f32
    %348 = vector.broadcast %cst_184 : f32 to vector<2x8x64xf32>
    %349 = arith.mulf %348, %347 : vector<2x8x64xf32>
    %350 = arith.mulf %337, %349 : vector<2x8x64xf32>
    %351 = arith.truncf %350 : vector<2x8x64xf32> to vector<2x8x64xbf16>
    %c1_185 = arith.constant 1 : index
    %c0_186 = arith.constant 0 : index
    %c0_187 = arith.constant 0 : index
    %352 = vector.load %arg16[%c1_185, %c0_186, %c0_187] : memref<2x64x32xbf16, #tpu.memory_space<vmem>>, vector<1x64x32xbf16>
    %353 = vector.shape_cast %352 : vector<1x64x32xbf16> to vector<64x32xbf16>
    %cst_188 = arith.constant dense<0.000000e+00> : vector<2x8x32xf32>
    %354 = tpu.matmul %351, %353, %cst_188 {dimension_numbers = #tpu.dot_dimension_numbers<[2], [0], [0, 1], [1], [0, 0, 0, 1, 1, 1], [], []>} : vector<2x8x64xbf16>, vector<64x32xbf16>, vector<2x8x32xf32> -> vector<2x8x32xf32>
    %c1_189 = arith.constant 1 : index
    %c0_190 = arith.constant 0 : index
    %c0_191 = arith.constant 0 : index
    %355 = vector.load %arg17[%c1_189, %c0_190, %c0_191] : memref<2x1x32xf32, #tpu.memory_space<vmem>>, vector<1x1x32xf32>
    %356 = vector.shape_cast %355 : vector<1x1x32xf32> to vector<1x32xf32>
    %357 = vector.shape_cast %356 : vector<1x32xf32> to vector<1x1x32xf32>
    %358 = vector.broadcast %357 : vector<1x1x32xf32> to vector<2x8x32xf32>
    %359 = arith.addf %354, %358 : vector<2x8x32xf32>
    %360 = arith.addf %359, %328 : vector<2x8x32xf32>
    %c1_192 = arith.constant 1 : index
    %c0_193 = arith.constant 0 : index
    %c0_194 = arith.constant 0 : index
    %361 = vector.load %arg18[%c1_192, %c0_193, %c0_194] : memref<2x1x32xf32, #tpu.memory_space<vmem>>, vector<1x1x32xf32>
    %362 = vector.shape_cast %361 : vector<1x1x32xf32> to vector<1x32xf32>
    %c1_195 = arith.constant 1 : index
    %c0_196 = arith.constant 0 : index
    %c0_197 = arith.constant 0 : index
    %363 = vector.load %arg19[%c1_195, %c0_196, %c0_197] : memref<2x1x32xf32, #tpu.memory_space<vmem>>, vector<1x1x32xf32>
    %364 = vector.shape_cast %363 : vector<1x1x32xf32> to vector<1x32xf32>
    %cst_198 = arith.constant dense<0.000000e+00> : vector<2x8xf32>
    %365 = vector.multi_reduction <add>, %360, %cst_198 [2] : vector<2x8x32xf32> to vector<2x8xf32>
    %366 = vector.shape_cast %365 : vector<2x8xf32> to vector<2x8x1xf32>
    %cst_199 = arith.constant 3.200000e+01 : f32
    %367 = vector.broadcast %cst_199 : f32 to vector<2x8x1xf32>
    %368 = arith.divf %366, %367 : vector<2x8x1xf32>
    %369 = vector.broadcast %368 : vector<2x8x1xf32> to vector<2x8x32xf32>
    %370 = arith.subf %360, %369 : vector<2x8x32xf32>
    %371 = arith.mulf %370, %370 : vector<2x8x32xf32>
    %cst_200 = arith.constant dense<0.000000e+00> : vector<2x8xf32>
    %372 = vector.multi_reduction <add>, %371, %cst_200 [2] : vector<2x8x32xf32> to vector<2x8xf32>
    %373 = vector.shape_cast %372 : vector<2x8xf32> to vector<2x8x1xf32>
    %cst_201 = arith.constant 3.200000e+01 : f32
    %374 = vector.broadcast %cst_201 : f32 to vector<2x8x1xf32>
    %375 = arith.divf %373, %374 : vector<2x8x1xf32>
    %cst_202 = arith.constant 9.99999996E-13 : f32
    %376 = vector.broadcast %cst_202 : f32 to vector<2x8x1xf32>
    %377 = arith.addf %375, %376 : vector<2x8x1xf32>
    %378 = math.rsqrt %377 : vector<2x8x1xf32>
    %379 = vector.broadcast %378 : vector<2x8x1xf32> to vector<2x8x32xf32>
    %380 = arith.mulf %370, %379 : vector<2x8x32xf32>
    %381 = vector.shape_cast %362 : vector<1x32xf32> to vector<1x1x32xf32>
    %382 = vector.broadcast %381 : vector<1x1x32xf32> to vector<2x8x32xf32>
    %383 = arith.mulf %380, %382 : vector<2x8x32xf32>
    %384 = vector.shape_cast %364 : vector<1x32xf32> to vector<1x1x32xf32>
    %385 = vector.broadcast %384 : vector<1x1x32xf32> to vector<2x8x32xf32>
    %386 = arith.addf %383, %385 : vector<2x8x32xf32>
    %387 = vector.extract_strided_slice %386 {offsets = [0, 0, 0], sizes = [2, 1, 32], strides = [1, 1, 1]} : vector<2x8x32xf32> to vector<2x1x32xf32>
    %388 = arith.truncf %387 : vector<2x1x32xf32> to vector<2x1x32xbf16>
    %c0_203 = arith.constant 0 : index
    %c0_204 = arith.constant 0 : index
    %389 = vector.load %arg20[%c0_203, %c0_204] : memref<32x32xbf16, #tpu.memory_space<vmem>>, vector<32x32xbf16>
    %cst_205 = arith.constant dense<0.000000e+00> : vector<2x1x32xf32>
    %390 = tpu.matmul %388, %389, %cst_205 {dimension_numbers = #tpu.dot_dimension_numbers<[2], [0], [0, 1], [1], [0, 0, 0, 1, 1, 1], [], []>} : vector<2x1x32xbf16>, vector<32x32xbf16>, vector<2x1x32xf32> -> vector<2x1x32xf32>
    %c0_206 = arith.constant 0 : index
    %c0_207 = arith.constant 0 : index
    %391 = vector.load %arg21[%c0_206, %c0_207] : memref<1x32xf32, #tpu.memory_space<vmem>>, vector<1x32xf32>
    %392 = vector.shape_cast %391 : vector<1x32xf32> to vector<1x1x32xf32>
    %393 = vector.broadcast %392 : vector<1x1x32xf32> to vector<2x1x32xf32>
    %394 = arith.addf %390, %393 : vector<2x1x32xf32>
    %395 = math.tanh %394 : vector<2x1x32xf32>
    %c0_208 = arith.constant 0 : index
    %c0_209 = arith.constant 0 : index
    %396 = vector.load %arg22[%c0_208, %c0_209] : memref<1x32xf32, #tpu.memory_space<vmem>>, vector<1x32xf32>
    %397 = vector.shape_cast %396 : vector<1x32xf32> to vector<1x1x32xf32>
    %398 = vector.broadcast %397 : vector<1x1x32xf32> to vector<2x1x32xf32>
    %399 = arith.mulf %395, %398 : vector<2x1x32xf32>
    %cst_210 = arith.constant dense<0.000000e+00> : vector<2x1xf32>
    %400 = vector.multi_reduction <add>, %399, %cst_210 [2] : vector<2x1x32xf32> to vector<2x1xf32>
    %c0_211 = arith.constant 0 : index
    %c0_212 = arith.constant 0 : index
    %401 = vector.load %arg23[%c0_211, %c0_212] : memref<1x1xf32, #tpu.memory_space<vmem>>, vector<1x1xf32>
    %402 = vector.broadcast %401 : vector<1x1xf32> to vector<2x1xf32>
    %403 = arith.addf %400, %402 : vector<2x1xf32>
    %c0_213 = arith.constant 0 : index
    %c0_214 = arith.constant 0 : index
    %404 = vector.load %arg24[%c0_213, %c0_214] : memref<2x1xf32, #tpu.memory_space<vmem>>, vector<2x1xf32>
    tpu.vector_store %arg24[%c0_213, %c0_214], %403 {strides = array<i32>} : memref<2x1xf32, #tpu.memory_space<vmem>>, vector<2x1xf32>,
    return
  }
}

</mosaic_0001>

<llo_original>
// kernel: models_forward.1
$region0: #{models_forward.1}
  #allocation0 [shape = 'u32[]', space=smem, size = 0x4, offset = 0x4, fixed_abs, tag = 'smem constant byte address 0x4 - core index']
  #allocation1 [shape = 'u32[144,128]{1,0:T(1,128)}', space=vmem, size = 0x12000, scoped, tag = 'internal scratch']
  #allocation2 [shape = 'f32[1,1]{1,0:T(1,128)S(1)}', space=vmem, size = 0x200, scoped, tag = 'scoped memory for models_forward.1']
  %s0 = inlined_call_operand.vmem [shape: f32[2,8,32], index: 0, kind: input, shape index: {}]
  %s1 = inlined_call_operand.vmem [shape: f32[2,8], index: 1, kind: input, shape index: {}]
  %s2 = inlined_call_operand.vmem [shape: f32[1,32], index: 2, kind: input, shape index: {}]
  %s3 = inlined_call_operand.vmem [shape: f32[1,32], index: 3, kind: input, shape index: {}]
  %s4 = inlined_call_operand.vmem [shape: bf16[4,32,16], index: 4, kind: input, shape index: {}]
  %s5 = inlined_call_operand.vmem [shape: f32[4,1,16], index: 5, kind: input, shape index: {}]
  %s6 = inlined_call_operand.vmem [shape: bf16[4,32,16], index: 6, kind: input, shape index: {}]
  %s7 = inlined_call_operand.vmem [shape: f32[4,1,16], index: 7, kind: input, shape index: {}]
  %s8 = inlined_call_operand.vmem [shape: bf16[4,32,16], index: 8, kind: input, shape index: {}]
  %s9 = inlined_call_operand.vmem [shape: f32[4,1,16], index: 9, kind: input, shape index: {}]
  %s10 = inlined_call_operand.vmem [shape: bf16[2,32,32], index: 10, kind: input, shape index: {}]
  %s11 = inlined_call_operand.vmem [shape: f32[2,1,32], index: 11, kind: input, shape index: {}]
  %s12 = inlined_call_operand.vmem [shape: f32[2,1,32], index: 12, kind: input, shape index: {}]
  %s13 = inlined_call_operand.vmem [shape: f32[2,1,32], index: 13, kind: input, shape index: {}]
  %s14 = inlined_call_operand.vmem [shape: bf16[2,32,64], index: 14, kind: input, shape index: {}]
  %s15 = inlined_call_operand.vmem [shape: f32[2,1,64], index: 15, kind: input, shape index: {}]
  %s16 = inlined_call_operand.vmem [shape: bf16[2,64,32], index: 16, kind: input, shape index: {}]
  %s17 = inlined_call_operand.vmem [shape: f32[2,1,32], index: 17, kind: input, shape index: {}]
  %s18 = inlined_call_operand.vmem [shape: f32[2,1,32], index: 18, kind: input, shape index: {}]
  %s19 = inlined_call_operand.vmem [shape: f32[2,1,32], index: 19, kind: input, shape index: {}]
  %s20 = inlined_call_operand.vmem [shape: bf16[32,32], index: 20, kind: input, shape index: {}]
  %s21 = inlined_call_operand.vmem [shape: f32[1,32], index: 21, kind: input, shape index: {}]
  %s22 = inlined_call_operand.vmem [shape: f32[1,32], index: 22, kind: input, shape index: {}]
  %s23 = inlined_call_operand.<no memory space> [shape: f32[1,1], index: 23, kind: input, shape index: {}]
  %s24 = inlined_call_operand.vmem [shape: f32[2,1], index: 24, kind: output, shape index: {}]
  %s25 = sld [smem:[#allocation0]]
  $region106: #{models_forward.1} parent=0
    _
  %s27 = ssub.s32 1, %s25
  %s28 = scalar_select 0, %s27, %s25
  %v29 = vstv %s23
  %30 = vst [vmem:[#allocation2] sm:$0x1] %v29
  // Predicated region
  $region2: #{models_forward.1} parent=0 // pred_check
    _
  $region3: #{models_forward.1} parent=0 // pred_check_branch
    %32 = sbr.rel (0) target = $region5
  $region4: #{models_forward.1} parent=0 // pred_region
    _
  $region5: #{models_forward.1} parent=0 // pred_fallthru
    _
  // Predicated region
  $region6: #{models_forward.1} parent=0 // pred_check
    _
  $region7: #{models_forward.1} parent=0 // pred_check_branch
    %34 = sbr.rel (0) target = $region9
  $region8: #{models_forward.1} parent=0 // pred_region
    _
  $region9: #{models_forward.1} parent=0 // pred_fallthru
    _
  // Predicated region
  $region10: #{models_forward.1} parent=0 // pred_check
    _
  $region11: #{models_forward.1} parent=0 // pred_check_branch
    %36 = sbr.rel (0) target = $region13
  $region12: #{models_forward.1} parent=0 // pred_region
    _
  $region13: #{models_forward.1} parent=0 // pred_fallthru
    _
  // Predicated region
  $region14: #{models_forward.1} parent=0 // pred_check
    _
  $region15: #{models_forward.1} parent=0 // pred_check_branch
    %38 = sbr.rel (0) target = $region17
  $region16: #{models_forward.1} parent=0 // pred_region
    _
  $region17: #{models_forward.1} parent=0 // pred_fallthru
    _
  // Predicated region
  $region18: #{models_forward.1} parent=0 // pred_check
    _
  $region19: #{models_forward.1} parent=0 // pred_check_branch
    %40 = sbr.rel (0) target = $region21
  $region20: #{models_forward.1} parent=0 // pred_region
    _
  $region21: #{models_forward.1} parent=0 // pred_fallthru
    _
  // Predicated region
  $region22: #{models_forward.1} parent=0 // pred_check
    _
  $region23: #{models_forward.1} parent=0 // pred_check_branch
    %42 = sbr.rel (0) target = $region25
  $region24: #{models_forward.1} parent=0 // pred_region
    _
  $region25: #{models_forward.1} parent=0 // pred_fallthru
    _
  // Predicated region
  $region26: #{models_forward.1} parent=0 // pred_check
    _
  $region27: #{models_forward.1} parent=0 // pred_check_branch
    %44 = sbr.rel (0) target = $region29
  $region28: #{models_forward.1} parent=0 // pred_region
    _
  $region29: #{models_forward.1} parent=0 // pred_fallthru
    _
  // Predicated region
  $region30: #{models_forward.1} parent=0 // pred_check
    _
  $region31: #{models_forward.1} parent=0 // pred_check_branch
    %46 = sbr.rel (0) target = $region33
  $region32: #{models_forward.1} parent=0 // pred_region
    _
  $region33: #{models_forward.1} parent=0 // pred_fallthru
    _
  // Predicated region
  $region34: #{models_forward.1} parent=0 // pred_check
    _
  $region35: #{models_forward.1} parent=0 // pred_check_branch
    %48 = sbr.rel (0) target = $region37
  $region36: #{models_forward.1} parent=0 // pred_region
    _
  $region37: #{models_forward.1} parent=0 // pred_fallthru
    _
  // Predicated region
  $region38: #{models_forward.1} parent=0 // pred_check
    _
  $region39: #{models_forward.1} parent=0 // pred_check_branch
    %50 = sbr.rel (0) target = $region41
  $region40: #{models_forward.1} parent=0 // pred_region
    _
  $region41: #{models_forward.1} parent=0 // pred_fallthru
    _
  // Predicated region
  $region42: #{models_forward.1} parent=0 // pred_check
    _
  $region43: #{models_forward.1} parent=0 // pred_check_branch
    %52 = sbr.rel (0) target = $region45
  $region44: #{models_forward.1} parent=0 // pred_region
    _
  $region45: #{models_forward.1} parent=0 // pred_fallthru
    _
  // Predicated region
  $region46: #{models_forward.1} parent=0 // pred_check
    _
  $region47: #{models_forward.1} parent=0 // pred_check_branch
    %54 = sbr.rel (0) target = $region49
  $region48: #{models_forward.1} parent=0 // pred_region
    _
  $region49: #{models_forward.1} parent=0 // pred_fallthru
    _
  // Predicated region
  $region50: #{models_forward.1} parent=0 // pred_check
    _
  $region51: #{models_forward.1} parent=0 // pred_check_branch
    %56 = sbr.rel (0) target = $region53
  $region52: #{models_forward.1} parent=0 // pred_region
    _
  $region53: #{models_forward.1} parent=0 // pred_fallthru
    _
  // Predicated region
  $region54: #{models_forward.1} parent=0 // pred_check
    _
  $region55: #{models_forward.1} parent=0 // pred_check_branch
    %58 = sbr.rel (0) target = $region57
  $region56: #{models_forward.1} parent=0 // pred_region
    _
  $region57: #{models_forward.1} parent=0 // pred_fallthru
    _
  // Predicated region
  $region58: #{models_forward.1} parent=0 // pred_check
    _
  $region59: #{models_forward.1} parent=0 // pred_check_branch
    %60 = sbr.rel (0) target = $region61
  $region60: #{models_forward.1} parent=0 // pred_region
    _
  $region61: #{models_forward.1} parent=0 // pred_fallthru
    _
  // Predicated region
  $region62: #{models_forward.1} parent=0 // pred_check
    _
  $region63: #{models_forward.1} parent=0 // pred_check_branch
    %62 = sbr.rel (0) target = $region65
  $region64: #{models_forward.1} parent=0 // pred_region
    _
  $region65: #{models_forward.1} parent=0 // pred_fallthru
    _
  // Predicated region
  $region66: #{models_forward.1} parent=0 // pred_check
    _
  $region67: #{models_forward.1} parent=0 // pred_check_branch
    %64 = sbr.rel (0) target = $region69
  $region68: #{models_forward.1} parent=0 // pred_region
    _
  $region69: #{models_forward.1} parent=0 // pred_fallthru
    _
  // Predicated region
  $region70: #{models_forward.1} parent=0 // pred_check
    _
  $region71: #{models_forward.1} parent=0 // pred_check_branch
    %66 = sbr.rel (0) target = $region73
  $region72: #{models_forward.1} parent=0 // pred_region
    _
  $region73: #{models_forward.1} parent=0 // pred_fallthru
    _
  // Predicated region
  $region74: #{models_forward.1} parent=0 // pred_check
    _
  $region75: #{models_forward.1} parent=0 // pred_check_branch
    %68 = sbr.rel (0) target = $region77
  $region76: #{models_forward.1} parent=0 // pred_region
    _
  $region77: #{models_forward.1} parent=0 // pred_fallthru
    _
  // Predicated region
  $region78: #{models_forward.1} parent=0 // pred_check
    _
  $region79: #{models_forward.1} parent=0 // pred_check_branch
    %70 = sbr.rel (0) target = $region81
  $region80: #{models_forward.1} parent=0 // pred_region
    _
  $region81: #{models_forward.1} parent=0 // pred_fallthru
    _
  // Predicated region
  $region82: #{models_forward.1} parent=0 // pred_check
    _
  $region83: #{models_forward.1} parent=0 // pred_check_branch
    %72 = sbr.rel (0) target = $region85
  $region84: #{models_forward.1} parent=0 // pred_region
    _
  $region85: #{models_forward.1} parent=0 // pred_fallthru
    _
  // Predicated region
  $region86: #{models_forward.1} parent=0 // pred_check
    _
  $region87: #{models_forward.1} parent=0 // pred_check_branch
    %74 = sbr.rel (0) target = $region89
  $region88: #{models_forward.1} parent=0 // pred_region
    _
  $region89: #{models_forward.1} parent=0 // pred_fallthru
    _
  // Predicated region
  $region90: #{models_forward.1} parent=0 // pred_check
    _
  $region91: #{models_forward.1} parent=0 // pred_check_branch
    %76 = sbr.rel (0) target = $region93
  $region92: #{models_forward.1} parent=0 // pred_region
    _
  $region93: #{models_forward.1} parent=0 // pred_fallthru
    _
  // Predicated region
  $region94: #{models_forward.1} parent=0 // pred_check
    _
  $region95: #{models_forward.1} parent=0 // pred_check_branch
    %78 = sbr.rel (0) target = $region97
  $region96: #{models_forward.1} parent=0 // pred_region
    _
  $region97: #{models_forward.1} parent=0 // pred_fallthru
    _
  %v80 = vld [vmem:[%s0] sm:$0xff]
  %v81 = vld [vmem:[%s0 + $0x8] sm:$0xff]
  %v82 = vld [vmem:[%s2] sm:$0x1]
  %v83 = vld [vmem:[%s3] sm:$0x1]
  %vm84 = vcmask 261120
  %v85 = vsel %vm84, %v80, 0.0
  %86 = vadd.xlane.f32.xlu0 %v85
  %v87 = vpop.xlane.xlu0 %86
  %v88 = vsel %vm84, %v81, 0.0
  %89 = vadd.xlane.f32.xlu0 %v88
  %v90 = vpop.xlane.xlu0 %89
  %v91 = vrcp.pop 32.0
  %v92 = vmul.f32 %v87, %v91
  %v93 = vmul.f32 %v90, %v91
  %v94 = vsub.f32 %v80, %v92
  %v95 = vsub.f32 %v81, %v93
  %v96 = vmul.f32 %v94, %v94
  %v97 = vmul.f32 %v95, %v95
  %v98 = vsel %vm84, %v96, 0.0
  %99 = vadd.xlane.f32.xlu0 %v98
  %v100 = vpop.xlane.xlu0 %99
  %v101 = vsel %vm84, %v97, 0.0
  %102 = vadd.xlane.f32.xlu0 %v101
  %v103 = vpop.xlane.xlu0 %102
  %v104 = vmul.f32 %v100, %v91
  %v105 = vmul.f32 %v103, %v91
  %v106 = vadd.f32 %v104, 1e-12
  %v107 = vadd.f32 %v105, 1e-12
  %v108 = vrsqrt.pop %v106
  %v109 = vrsqrt.pop %v107
  %v110 = vmul.f32 %v94, %v108
  %v111 = vmul.f32 %v95, %v109
  %v113 = vlaneseq
  %v114 = vshrl.u32 %v113, 7
  %v115 = vsub.s32 0, %v114
  %v116 = vrot.slane %v82, %v115
  %v118 = vmul.f32 %v110, %v116
  %v119 = vmul.f32 %v111, %v116
  %v121 = vlaneseq
  %v122 = vshrl.u32 %v121, 7
  %v123 = vsub.s32 0, %v122
  %v124 = vrot.slane %v83, %v123
  %v126 = vadd.f32 %v118, %v124
  %v127 = vadd.f32 %v119, %v124
  %v128 = vld [vmem:[%s1] sm:$0x3]
  %v131 = vunpack.c.l.s4 1966171168
  %v132 = vunpack.c.0.s8 %v131
  %v133 = vlaneseq
  %v134 = vshrl.u32 %v133, 7
  %v135 = vsub.s32 %v132, %v134
  %v136 = vrot.slane %v128, %v135
  %v137 = vcombine.high %v136, %v136
  %v139 = vunpack.c.l.s4 1966171168
  %v140 = vunpack.c.0.s8 %v139
  %v141 = vlaneseq
  %v142 = vshrl.u32 %v141, 7
  %v143 = vsub.s32 %v140, %v142
  %v144 = vrot.slane %v136, %v143
  %v146 = vunpack.c.l.s4 1966171168
  %v147 = vunpack.c.0.s8 %v146
  %v148 = vlaneseq
  %v149 = vshrl.u32 %v148, 7
  %v150 = vsub.s32 %v147, %v149
  %v151 = vrot.slane %v137, %v150
  %v152 = vpack.c.bf16 %v126, %v126
  %v153 = vpack.c.bf16 %v127, %v127
  %v154 = vld [vmem:[%s4] sm:$0xf]
  %v155 = vld [vmem:[%s4 + $0x4] sm:$0xf]
  %v156 = vld [vmem:[%s4 + $0x8] sm:$0xf]
  %v157 = vld [vmem:[%s4 + $0xc] sm:$0xf]
  %v158 = vld [vmem:[%s5] sm:$0x1]
  %v160 = vlaneseq
  %v161 = vshrl.u32 %v160, 7
  %v162 = vsub.s32 0, %v161
  %v163 = vrot.slane %v158, %v162
  %v167 = vunpack.c.l.b16 %v152
  %v168 = vunpack.c.l.b16 %v153
  %v169 = vpack.c.b16 %v168, %v167
  %v174 = vunpack.c.l.b16 %v154
  %v175 = vunpack.c.l.b16 %v155
  %v176 = vunpack.c.l.b16 %v156
  %v177 = vunpack.c.l.b16 %v157
  %v178 = vpack.c.b16 %v175, %v174
  %v179 = vpack.c.b16 %v177, %v176
  %v183 = vsel %vm84, %v169, 0
  %185 = vmatprep.subr.bf16.mxu0 0
  %186 = vmatpush1.bf16.msra.mxu0 0
  %187 = vmatprep.subr.bf16.mxu0 0
  %188 = vmatpush1.bf16.msra.mxu0 0
  %189 = vmatprep.subr.bf16.mxu0 0
  %190 = vmatpush1.bf16.msra.mxu0 0
  %191 = vmatprep.subr.bf16.mxu0 0
  %192 = vmatpush1.bf16.msra.mxu0 0
  %193 = vmatprep.subr.bf16.mxu0 0
  %194 = vmatpush1.bf16.msra.mxu0 0
  %195 = vmatprep.subr.bf16.mxu0 0
  %196 = vmatpush1.bf16.msra.mxu0 0
  %197 = vmatprep.subr.bf16.mxu0 0
  %198 = vmatpush1.bf16.msra.mxu0 %v179
  %199 = vmatprep.subr.bf16.mxu0 0
  %200 = vmatpush1.bf16.msra.mxu0 %v178
  %201 = vmatprep.subr.bf16.mxu0 0
  %202 = vmatpush2.bf16.msra.mxu0 0
  %203 = vmatprep.subr.bf16.mxu0 0
  %204 = vmatpush2.bf16.msra.mxu0 0
  %205 = vmatprep.subr.bf16.mxu0 0
  %206 = vmatpush2.bf16.msra.mxu0 0
  %207 = vmatprep.subr.bf16.mxu0 0
  %208 = vmatpush2.bf16.msra.mxu0 0
  %209 = vmatprep.subr.bf16.mxu0 0
  %210 = vmatpush2.bf16.msra.mxu0 0
  %211 = vmatprep.subr.bf16.mxu0 0
  %212 = vmatpush2.bf16.msra.mxu0 0
  %213 = vmatprep.subr.bf16.mxu0 0
  %214 = vmatpush2.bf16.msra.mxu0 0
  %215 = vmatprep.subr.bf16.mxu0 0
  %216 = vmatpush2.bf16.msra.mxu0 0
  %217 = vmatprep.mubr.bf16.mxu0 0
  %218 = vmatmul.mubr.bf16.gmra.mxu0 %v183
  %v219 = vpop.f32.mrf.mxu0
  %v220 = vadd.f32 %v163, %v219
  %v221 = vpop.f32.mrf.mxu0
  %v222 = vpop.f32.mrf.mxu0
  %v223 = vadd.f32 %v163, %v222
  %v224 = vpop.f32.mrf.mxu0
  %225 = vdwg.mxu0
  %v226 = vpack.c.bf16 %v220, %v220
  %v227 = vpack.c.bf16 %v223, %v223
  %v228 = vld [vmem:[%s6] sm:$0xf]
  %v229 = vld [vmem:[%s6 + $0x4] sm:$0xf]
  %v230 = vld [vmem:[%s6 + $0x8] sm:$0xf]
  %v231 = vld [vmem:[%s6 + $0xc] sm:$0xf]
  %v232 = vld [vmem:[%s7] sm:$0x1]
  %v234 = vlaneseq
  %v235 = vshrl.u32 %v234, 7
  %v236 = vsub.s32 0, %v235
  %v237 = vrot.slane %v232, %v236
  %v243 = vunpack.c.l.b16 %v228
  %v244 = vunpack.c.l.b16 %v229
  %v245 = vunpack.c.l.b16 %v230
  %v246 = vunpack.c.l.b16 %v231
  %v247 = vpack.c.b16 %v244, %v243
  %v248 = vpack.c.b16 %v246, %v245
  %251 = vmatprep.subr.bf16.mxu0 0
  %252 = vmatpush1.bf16.msra.mxu0 0
  %253 = vmatprep.subr.bf16.mxu0 0
  %254 = vmatpush1.bf16.msra.mxu0 0
  %255 = vmatprep.subr.bf16.mxu0 0
  %256 = vmatpush1.bf16.msra.mxu0 0
  %257 = vmatprep.subr.bf16.mxu0 0
  %258 = vmatpush1.bf16.msra.mxu0 0
  %259 = vmatprep.subr.bf16.mxu0 0
  %260 = vmatpush1.bf16.msra.mxu0 0
  %261 = vmatprep.subr.bf16.mxu0 0
  %262 = vmatpush1.bf16.msra.mxu0 0
  %263 = vmatprep.subr.bf16.mxu0 0
  %264 = vmatpush1.bf16.msra.mxu0 %v248
  %265 = vmatprep.subr.bf16.mxu0 0
  %266 = vmatpush1.bf16.msra.mxu0 %v247
  %267 = vmatprep.subr.bf16.mxu0 0
  %268 = vmatpush2.bf16.msra.mxu0 0
  %269 = vmatprep.subr.bf16.mxu0 0
  %270 = vmatpush2.bf16.msra.mxu0 0
  %271 = vmatprep.subr.bf16.mxu0 0
  %272 = vmatpush2.bf16.msra.mxu0 0
  %273 = vmatprep.subr.bf16.mxu0 0
  %274 = vmatpush2.bf16.msra.mxu0 0
  %275 = vmatprep.subr.bf16.mxu0 0
  %276 = vmatpush2.bf16.msra.mxu0 0
  %277 = vmatprep.subr.bf16.mxu0 0
  %278 = vmatpush2.bf16.msra.mxu0 0
  %279 = vmatprep.subr.bf16.mxu0 0
  %280 = vmatpush2.bf16.msra.mxu0 0
  %281 = vmatprep.subr.bf16.mxu0 0
  %282 = vmatpush2.bf16.msra.mxu0 0
  %283 = vmatprep.mubr.bf16.mxu0 0
  %284 = vmatmul.mubr.bf16.gmra.mxu0 %v183
  %v285 = vpop.f32.mrf.mxu0
  %v286 = vadd.f32 %v237, %v285
  %v287 = vpop.f32.mrf.mxu0
  %v288 = vpop.f32.mrf.mxu0
  %v289 = vadd.f32 %v237, %v288
  %v290 = vpop.f32.mrf.mxu0
  %291 = vdwg.mxu0
  %v292 = vpack.c.bf16 %v286, %v286
  %v293 = vpack.c.bf16 %v289, %v289
  %v294 = vld [vmem:[%s8] sm:$0xf]
  %v295 = vld [vmem:[%s8 + $0x4] sm:$0xf]
  %v296 = vld [vmem:[%s8 + $0x8] sm:$0xf]
  %v297 = vld [vmem:[%s8 + $0xc] sm:$0xf]
  %v298 = vld [vmem:[%s9] sm:$0x1]
  %v300 = vlaneseq
  %v301 = vshrl.u32 %v300, 7
  %v302 = vsub.s32 0, %v301
  %v303 = vrot.slane %v298, %v302
  %v309 = vunpack.c.l.b16 %v294
  %v310 = vunpack.c.l.b16 %v295
  %v311 = vunpack.c.l.b16 %v296
  %v312 = vunpack.c.l.b16 %v297
  %v313 = vpack.c.b16 %v310, %v309
  %v314 = vpack.c.b16 %v312, %v311
  %317 = vmatprep.subr.bf16.mxu0 0
  %318 = vmatpush1.bf16.msra.mxu0 0
  %319 = vmatprep.subr.bf16.mxu0 0
  %320 = vmatpush1.bf16.msra.mxu0 0
  %321 = vmatprep.subr.bf16.mxu0 0
  %322 = vmatpush1.bf16.msra.mxu0 0
  %323 = vmatprep.subr.bf16.mxu0 0
  %324 = vmatpush1.bf16.msra.mxu0 0
  %325 = vmatprep.subr.bf16.mxu0 0
  %326 = vmatpush1.bf16.msra.mxu0 0
  %327 = vmatprep.subr.bf16.mxu0 0
  %328 = vmatpush1.bf16.msra.mxu0 0
  %329 = vmatprep.subr.bf16.mxu0 0
  %330 = vmatpush1.bf16.msra.mxu0 %v314
  %331 = vmatprep.subr.bf16.mxu0 0
  %332 = vmatpush1.bf16.msra.mxu0 %v313
  %333 = vmatprep.subr.bf16.mxu0 0
  %334 = vmatpush2.bf16.msra.mxu0 0
  %335 = vmatprep.subr.bf16.mxu0 0
  %336 = vmatpush2.bf16.msra.mxu0 0
  %337 = vmatprep.subr.bf16.mxu0 0
  %338 = vmatpush2.bf16.msra.mxu0 0
  %339 = vmatprep.subr.bf16.mxu0 0
  %340 = vmatpush2.bf16.msra.mxu0 0
  %341 = vmatprep.subr.bf16.mxu0 0
  %342 = vmatpush2.bf16.msra.mxu0 0
  %343 = vmatprep.subr.bf16.mxu0 0
  %344 = vmatpush2.bf16.msra.mxu0 0
  %345 = vmatprep.subr.bf16.mxu0 0
  %346 = vmatpush2.bf16.msra.mxu0 0
  %347 = vmatprep.subr.bf16.mxu0 0
  %348 = vmatpush2.bf16.msra.mxu0 0
  %349 = vmatprep.mubr.bf16.mxu0 0
  %350 = vmatmul.mubr.bf16.gmra.mxu0 %v183
  %v351 = vpop.f32.mrf.mxu0
  %v352 = vadd.f32 %v303, %v351
  %v353 = vpop.f32.mrf.mxu0
  %v354 = vpop.f32.mrf.mxu0
  %v355 = vadd.f32 %v303, %v354
  %v356 = vpop.f32.mrf.mxu0
  %357 = vdwg.mxu0
  %v358 = vpack.c.bf16 %v352, %v352
  %v359 = vpack.c.bf16 %v355, %v355
  %v360 = vlaneseq
  %v361 = vshrl.u32 %v360, 7
  %v362 = vsub.s32 0, %v361
  %v363 = vrot.slane %v144, %v362
  %v364 = vlaneseq
  %v365 = vshrl.u32 %v364, 7
  %v366 = vsub.s32 0, %v365
  %v367 = vrot.slane %v151, %v366
  %vm370 = vcmask 130048
  %v372 = vsel %vm370, %v226, 0
  %v375 = vsel %vm370, %v292, 0
  %377 = vmatprep.subr.bf16.mxu0 0
  %378 = vmatpush1.bf16.xpose.msra.mxu0 0
  %379 = vmatprep.subr.bf16.mxu0 0
  %380 = vmatpush1.bf16.xpose.msra.mxu0 0
  %381 = vmatprep.subr.bf16.mxu0 0
  %382 = vmatpush1.bf16.xpose.msra.mxu0 0
  %383 = vmatprep.subr.bf16.mxu0 0
  %384 = vmatpush1.bf16.xpose.msra.mxu0 0
  %385 = vmatprep.subr.bf16.mxu0 0
  %386 = vmatpush1.bf16.xpose.msra.mxu0 0
  %387 = vmatprep.subr.bf16.mxu0 0
  %388 = vmatpush1.bf16.xpose.msra.mxu0 0
  %389 = vmatprep.subr.bf16.mxu0 0
  %390 = vmatpush1.bf16.xpose.msra.mxu0 0
  %391 = vmatprep.subr.bf16.mxu0 0
  %392 = vmatpush1.bf16.xpose.msra.mxu0 %v375
  %393 = vmatprep.subr.bf16.mxu0 0
  %394 = vmatpush2.bf16.xpose.msra.mxu0 0
  %395 = vmatprep.subr.bf16.mxu0 0
  %396 = vmatpush2.bf16.xpose.msra.mxu0 0
  %397 = vmatprep.subr.bf16.mxu0 0
  %398 = vmatpush2.bf16.xpose.msra.mxu0 0
  %399 = vmatprep.subr.bf16.mxu0 0
  %400 = vmatpush2.bf16.xpose.msra.mxu0 0
  %401 = vmatprep.subr.bf16.mxu0 0
  %402 = vmatpush2.bf16.xpose.msra.mxu0 0
  %403 = vmatprep.subr.bf16.mxu0 0
  %404 = vmatpush2.bf16.xpose.msra.mxu0 0
  %405 = vmatprep.subr.bf16.mxu0 0
  %406 = vmatpush2.bf16.xpose.msra.mxu0 0
  %407 = vmatprep.subr.bf16.mxu0 0
  %408 = vmatpush2.bf16.xpose.msra.mxu0 0
  %409 = vmatprep.mubr.bf16.mxu0 0
  %410 = vmatmul.mubr.bf16.gmra.mxu0 %v372
  %v411 = vpop.f32.mrf.mxu0
  %v412 = vadd.f32 %v363, %v411
  %v413 = vpop.f32.mrf.mxu0
  %v414 = vpop.f32.mrf.mxu0
  %v415 = vpop.f32.mrf.mxu0
  %416 = vdwg.mxu0
  %v418 = vsel %vm370, %v227, 0
  %v421 = vsel %vm370, %v293, 0
  %423 = vmatprep.subr.bf16.mxu0 0
  %424 = vmatpush1.bf16.xpose.msra.mxu0 0
  %425 = vmatprep.subr.bf16.mxu0 0
  %426 = vmatpush1.bf16.xpose.msra.mxu0 0
  %427 = vmatprep.subr.bf16.mxu0 0
  %428 = vmatpush1.bf16.xpose.msra.mxu0 0
  %429 = vmatprep.subr.bf16.mxu0 0
  %430 = vmatpush1.bf16.xpose.msra.mxu0 0
  %431 = vmatprep.subr.bf16.mxu0 0
  %432 = vmatpush1.bf16.xpose.msra.mxu0 0
  %433 = vmatprep.subr.bf16.mxu0 0
  %434 = vmatpush1.bf16.xpose.msra.mxu0 0
  %435 = vmatprep.subr.bf16.mxu0 0
  %436 = vmatpush1.bf16.xpose.msra.mxu0 0
  %437 = vmatprep.subr.bf16.mxu0 0
  %438 = vmatpush1.bf16.xpose.msra.mxu0 %v421
  %439 = vmatprep.subr.bf16.mxu0 0
  %440 = vmatpush2.bf16.xpose.msra.mxu0 0
  %441 = vmatprep.subr.bf16.mxu0 0
  %442 = vmatpush2.bf16.xpose.msra.mxu0 0
  %443 = vmatprep.subr.bf16.mxu0 0
  %444 = vmatpush2.bf16.xpose.msra.mxu0 0
  %445 = vmatprep.subr.bf16.mxu0 0
  %446 = vmatpush2.bf16.xpose.msra.mxu0 0
  %447 = vmatprep.subr.bf16.mxu0 0
  %448 = vmatpush2.bf16.xpose.msra.mxu0 0
  %449 = vmatprep.subr.bf16.mxu0 0
  %450 = vmatpush2.bf16.xpose.msra.mxu0 0
  %451 = vmatprep.subr.bf16.mxu0 0
  %452 = vmatpush2.bf16.xpose.msra.mxu0 0
  %453 = vmatprep.subr.bf16.mxu0 0
  %454 = vmatpush2.bf16.xpose.msra.mxu0 0
  %455 = vmatprep.mubr.bf16.mxu0 0
  %456 = vmatmul.mubr.bf16.gmra.mxu0 %v418
  %v457 = vpop.f32.mrf.mxu0
  %v458 = vadd.f32 %v367, %v457
  %v459 = vpop.f32.mrf.mxu0
  %v460 = vpop.f32.mrf.mxu0
  %v461 = vpop.f32.mrf.mxu0
  %462 = vdwg.mxu0
  %vm463 = vcmask 64512
  %v464 = vsel %vm463, %v412, -inf
  %465 = vmax.xlane.f32.xlu0 %v464
  %v466 = vpop.xlane.xlu0 %465
  %v467 = vsel %vm463, %v458, -inf
  %468 = vmax.xlane.f32.xlu0 %v467
  %v469 = vpop.xlane.xlu0 %468
  %v470 = vsub.f32 %v412, %v466
  %v471 = vsub.f32 %v458, %v469
  %v472 = vmul.f32 %v470, 1.442695
  %v473 = vpow.pop %v472
  %v474 = vmul.f32 %v471, 1.442695
  %v475 = vpow.pop %v474
  %v476 = vsel %vm463, %v473, 0.0
  %477 = vadd.xlane.f32.xlu0 %v476
  %v478 = vpop.xlane.xlu0 %477
  %v479 = vsel %vm463, %v475, 0.0
  %480 = vadd.xlane.f32.xlu0 %v479
  %v481 = vpop.xlane.xlu0 %480
  %v482 = vrcp.pop %v478
  %v483 = vrcp.pop %v481
  %v484 = vmul.f32 %v473, %v482
  %v485 = vmul.f32 %v475, %v483
  %v486 = vpack.c.bf16 %v484, %v484
  %v487 = vpack.c.bf16 %v485, %v485
  %v489 = vsel %vm463, %v486, 0
  %vm491 = vcmask 1043456
  %v493 = vsel %vm491, %v358, 0
  %495 = vmatprep.subr.bf16.mxu0 0
  %496 = vmatpush1.bf16.msra.mxu0 0
  %497 = vmatprep.subr.bf16.mxu0 0
  %498 = vmatpush1.bf16.msra.mxu0 0
  %499 = vmatprep.subr.bf16.mxu0 0
  %500 = vmatpush1.bf16.msra.mxu0 0
  %501 = vmatprep.subr.bf16.mxu0 0
  %502 = vmatpush1.bf16.msra.mxu0 0
  %503 = vmatprep.subr.bf16.mxu0 0
  %504 = vmatpush1.bf16.msra.mxu0 0
  %505 = vmatprep.subr.bf16.mxu0 0
  %506 = vmatpush1.bf16.msra.mxu0 0
  %507 = vmatprep.subr.bf16.mxu0 0
  %508 = vmatpush1.bf16.msra.mxu0 0
  %509 = vmatprep.subr.bf16.mxu0 0
  %510 = vmatpush1.bf16.msra.mxu0 %v493
  %511 = vmatprep.subr.bf16.mxu0 0
  %512 = vmatpush2.bf16.msra.mxu0 0
  %513 = vmatprep.subr.bf16.mxu0 0
  %514 = vmatpush2.bf16.msra.mxu0 0
  %515 = vmatprep.subr.bf16.mxu0 0
  %516 = vmatpush2.bf16.msra.mxu0 0
  %517 = vmatprep.subr.bf16.mxu0 0
  %518 = vmatpush2.bf16.msra.mxu0 0
  %519 = vmatprep.subr.bf16.mxu0 0
  %520 = vmatpush2.bf16.msra.mxu0 0
  %521 = vmatprep.subr.bf16.mxu0 0
  %522 = vmatpush2.bf16.msra.mxu0 0
  %523 = vmatprep.subr.bf16.mxu0 0
  %524 = vmatpush2.bf16.msra.mxu0 0
  %525 = vmatprep.subr.bf16.mxu0 0
  %526 = vmatpush2.bf16.msra.mxu0 0
  %527 = vmatprep.mubr.bf16.mxu0 0
  %528 = vmatmul.mubr.bf16.gmra.mxu0 %v489
  %v529 = vpop.f32.mrf.mxu0
  %v530 = vadd.f32 0.0, %v529
  %v531 = vpop.f32.mrf.mxu0
  %v532 = vpop.f32.mrf.mxu0
  %v533 = vpop.f32.mrf.mxu0
  %534 = vdwg.mxu0
  %v536 = vsel %vm463, %v487, 0
  %v539 = vsel %vm491, %v359, 0
  %541 = vmatprep.subr.bf16.mxu0 0
  %542 = vmatpush1.bf16.msra.mxu0 0
  %543 = vmatprep.subr.bf16.mxu0 0
  %544 = vmatpush1.bf16.msra.mxu0 0
  %545 = vmatprep.subr.bf16.mxu0 0
  %546 = vmatpush1.bf16.msra.mxu0 0
  %547 = vmatprep.subr.bf16.mxu0 0
  %548 = vmatpush1.bf16.msra.mxu0 0
  %549 = vmatprep.subr.bf16.mxu0 0
  %550 = vmatpush1.bf16.msra.mxu0 0
  %551 = vmatprep.subr.bf16.mxu0 0
  %552 = vmatpush1.bf16.msra.mxu0 0
  %553 = vmatprep.subr.bf16.mxu0 0
  %554 = vmatpush1.bf16.msra.mxu0 0
  %555 = vmatprep.subr.bf16.mxu0 0
  %556 = vmatpush1.bf16.msra.mxu0 %v539
  %557 = vmatprep.subr.bf16.mxu0 0
  %558 = vmatpush2.bf16.msra.mxu0 0
  %559 = vmatprep.subr.bf16.mxu0 0
  %560 = vmatpush2.bf16.msra.mxu0 0
  %561 = vmatprep.subr.bf16.mxu0 0
  %562 = vmatpush2.bf16.msra.mxu0 0
  %563 = vmatprep.subr.bf16.mxu0 0
  %564 = vmatpush2.bf16.msra.mxu0 0
  %565 = vmatprep.subr.bf16.mxu0 0
  %566 = vmatpush2.bf16.msra.mxu0 0
  %567 = vmatprep.subr.bf16.mxu0 0
  %568 = vmatpush2.bf16.msra.mxu0 0
  %569 = vmatprep.subr.bf16.mxu0 0
  %570 = vmatpush2.bf16.msra.mxu0 0
  %571 = vmatprep.subr.bf16.mxu0 0
  %572 = vmatpush2.bf16.msra.mxu0 0
  %573 = vmatprep.mubr.bf16.mxu0 0
  %574 = vmatmul.mubr.bf16.gmra.mxu0 %v536
  %v575 = vpop.f32.mrf.mxu0
  %v576 = vadd.f32 0.0, %v575
  %v577 = vpop.f32.mrf.mxu0
  %v578 = vpop.f32.mrf.mxu0
  %v579 = vpop.f32.mrf.mxu0
  %580 = vdwg.mxu0
  %s581 = scalar_lea.vmem %s4, 16
  %v582 = vld [vmem:[%s581] sm:$0xf]
  %v583 = vld [vmem:[%s581 + $0x4] sm:$0xf]
  %v584 = vld [vmem:[%s581 + $0x8] sm:$0xf]
  %v585 = vld [vmem:[%s581 + $0xc] sm:$0xf]
  %s586 = scalar_lea.vmem %s5, 1
  %v587 = vld [vmem:[%s586] sm:$0x1]
  %v589 = vlaneseq
  %v590 = vshrl.u32 %v589, 7
  %v591 = vsub.s32 0, %v590
  %v592 = vrot.slane %v587, %v591
  %v598 = vunpack.c.l.b16 %v582
  %v599 = vunpack.c.l.b16 %v583
  %v600 = vunpack.c.l.b16 %v584
  %v601 = vunpack.c.l.b16 %v585
  %v602 = vpack.c.b16 %v599, %v598
  %v603 = vpack.c.b16 %v601, %v600
  %606 = vmatprep.subr.bf16.mxu0 0
  %607 = vmatpush1.bf16.msra.mxu0 0
  %608 = vmatprep.subr.bf16.mxu0 0
  %609 = vmatpush1.bf16.msra.mxu0 0
  %610 = vmatprep.subr.bf16.mxu0 0
  %611 = vmatpush1.bf16.msra.mxu0 0
  %612 = vmatprep.subr.bf16.mxu0 0
  %613 = vmatpush1.bf16.msra.mxu0 0
  %614 = vmatprep.subr.bf16.mxu0 0
  %615 = vmatpush1.bf16.msra.mxu0 0
  %616 = vmatprep.subr.bf16.mxu0 0
  %617 = vmatpush1.bf16.msra.mxu0 0
  %618 = vmatprep.subr.bf16.mxu0 0
  %619 = vmatpush1.bf16.msra.mxu0 %v603
  %620 = vmatprep.subr.bf16.mxu0 0
  %621 = vmatpush1.bf16.msra.mxu0 %v602
  %622 = vmatprep.subr.bf16.mxu0 0
  %623 = vmatpush2.bf16.msra.mxu0 0
  %624 = vmatprep.subr.bf16.mxu0 0
  %625 = vmatpush2.bf16.msra.mxu0 0
  %626 = vmatprep.subr.bf16.mxu0 0
  %627 = vmatpush2.bf16.msra.mxu0 0
  %628 = vmatprep.subr.bf16.mxu0 0
  %629 = vmatpush2.bf16.msra.mxu0 0
  %630 = vmatprep.subr.bf16.mxu0 0
  %631 = vmatpush2.bf16.msra.mxu0 0
  %632 = vmatprep.subr.bf16.mxu0 0
  %633 = vmatpush2.bf16.msra.mxu0 0
  %634 = vmatprep.subr.bf16.mxu0 0
  %635 = vmatpush2.bf16.msra.mxu0 0
  %636 = vmatprep.subr.bf16.mxu0 0
  %637 = vmatpush2.bf16.msra.mxu0 0
  %638 = vmatprep.mubr.bf16.mxu0 0
  %639 = vmatmul.mubr.bf16.gmra.mxu0 %v183
  %v640 = vpop.f32.mrf.mxu0
  %v641 = vadd.f32 %v592, %v640
  %v642 = vpop.f32.mrf.mxu0
  %v643 = vpop.f32.mrf.mxu0
  %v644 = vadd.f32 %v592, %v643
  %v645 = vpop.f32.mrf.mxu0
  %646 = vdwg.mxu0
  %v647 = vpack.c.bf16 %v641, %v641
  %v648 = vpack.c.bf16 %v644, %v644
  %s649 = scalar_lea.vmem %s6, 16
  %v650 = vld [vmem:[%s649] sm:$0xf]
  %v651 = vld [vmem:[%s649 + $0x4] sm:$0xf]
  %v652 = vld [vmem:[%s649 + $0x8] sm:$0xf]
  %v653 = vld [vmem:[%s649 + $0xc] sm:$0xf]
  %s654 = scalar_lea.vmem %s7, 1
  %v655 = vld [vmem:[%s654] sm:$0x1]
  %v657 = vlaneseq
  %v658 = vshrl.u32 %v657, 7
  %v659 = vsub.s32 0, %v658
  %v660 = vrot.slane %v655, %v659
  %v666 = vunpack.c.l.b16 %v650
  %v667 = vunpack.c.l.b16 %v651
  %v668 = vunpack.c.l.b16 %v652
  %v669 = vunpack.c.l.b16 %v653
  %v670 = vpack.c.b16 %v667, %v666
  %v671 = vpack.c.b16 %v669, %v668
  %674 = vmatprep.subr.bf16.mxu0 0
  %675 = vmatpush1.bf16.msra.mxu0 0
  %676 = vmatprep.subr.bf16.mxu0 0
  %677 = vmatpush1.bf16.msra.mxu0 0
  %678 = vmatprep.subr.bf16.mxu0 0
  %679 = vmatpush1.bf16.msra.mxu0 0
  %680 = vmatprep.subr.bf16.mxu0 0
  %681 = vmatpush1.bf16.msra.mxu0 0
  %682 = vmatprep.subr.bf16.mxu0 0
  %683 = vmatpush1.bf16.msra.mxu0 0
  %684 = vmatprep.subr.bf16.mxu0 0
  %685 = vmatpush1.bf16.msra.mxu0 0
  %686 = vmatprep.subr.bf16.mxu0 0
  %687 = vmatpush1.bf16.msra.mxu0 %v671
  %688 = vmatprep.subr.bf16.mxu0 0
  %689 = vmatpush1.bf16.msra.mxu0 %v670
  %690 = vmatprep.subr.bf16.mxu0 0
  %691 = vmatpush2.bf16.msra.mxu0 0
  %692 = vmatprep.subr.bf16.mxu0 0
  %693 = vmatpush2.bf16.msra.mxu0 0
  %694 = vmatprep.subr.bf16.mxu0 0
  %695 = vmatpush2.bf16.msra.mxu0 0
  %696 = vmatprep.subr.bf16.mxu0 0
  %697 = vmatpush2.bf16.msra.mxu0 0
  %698 = vmatprep.subr.bf16.mxu0 0
  %699 = vmatpush2.bf16.msra.mxu0 0
  %700 = vmatprep.subr.bf16.mxu0 0
  %701 = vmatpush2.bf16.msra.mxu0 0
  %702 = vmatprep.subr.bf16.mxu0 0
  %703 = vmatpush2.bf16.msra.mxu0 0
  %704 = vmatprep.subr.bf16.mxu0 0
  %705 = vmatpush2.bf16.msra.mxu0 0
  %706 = vmatprep.mubr.bf16.mxu0 0
  %707 = vmatmul.mubr.bf16.gmra.mxu0 %v183
  %v708 = vpop.f32.mrf.mxu0
  %v709 = vadd.f32 %v660, %v708
  %v710 = vpop.f32.mrf.mxu0
  %v711 = vpop.f32.mrf.mxu0
  %v712 = vadd.f32 %v660, %v711
  %v713 = vpop.f32.mrf.mxu0
  %714 = vdwg.mxu0
  %v715 = vpack.c.bf16 %v709, %v709
  %v716 = vpack.c.bf16 %v712, %v712
  %s717 = scalar_lea.vmem %s8, 16
  %v718 = vld [vmem:[%s717] sm:$0xf]
  %v719 = vld [vmem:[%s717 + $0x4] sm:$0xf]
  %v720 = vld [vmem:[%s717 + $0x8] sm:$0xf]
  %v721 = vld [vmem:[%s717 + $0xc] sm:$0xf]
  %s722 = scalar_lea.vmem %s9, 1
  %v723 = vld [vmem:[%s722] sm:$0x1]
  %v725 = vlaneseq
  %v726 = vshrl.u32 %v725, 7
  %v727 = vsub.s32 0, %v726
  %v728 = vrot.slane %v723, %v727
  %v734 = vunpack.c.l.b16 %v718
  %v735 = vunpack.c.l.b16 %v719
  %v736 = vunpack.c.l.b16 %v720
  %v737 = vunpack.c.l.b16 %v721
  %v738 = vpack.c.b16 %v735, %v734
  %v739 = vpack.c.b16 %v737, %v736
  %742 = vmatprep.subr.bf16.mxu0 0
  %743 = vmatpush1.bf16.msra.mxu0 0
  %744 = vmatprep.subr.bf16.mxu0 0
  %745 = vmatpush1.bf16.msra.mxu0 0
  %746 = vmatprep.subr.bf16.mxu0 0
  %747 = vmatpush1.bf16.msra.mxu0 0
  %748 = vmatprep.subr.bf16.mxu0 0
  %749 = vmatpush1.bf16.msra.mxu0 0
  %750 = vmatprep.subr.bf16.mxu0 0
  %751 = vmatpush1.bf16.msra.mxu0 0
  %752 = vmatprep.subr.bf16.mxu0 0
  %753 = vmatpush1.bf16.msra.mxu0 0
  %754 = vmatprep.subr.bf16.mxu0 0
  %755 = vmatpush1.bf16.msra.mxu0 %v739
  %756 = vmatprep.subr.bf16.mxu0 0
  %757 = vmatpush1.bf16.msra.mxu0 %v738
  %758 = vmatprep.subr.bf16.mxu0 0
  %759 = vmatpush2.bf16.msra.mxu0 0
  %760 = vmatprep.subr.bf16.mxu0 0
  %761 = vmatpush2.bf16.msra.mxu0 0
  %762 = vmatprep.subr.bf16.mxu0 0
  %763 = vmatpush2.bf16.msra.mxu0 0
  %764 = vmatprep.subr.bf16.mxu0 0
  %765 = vmatpush2.bf16.msra.mxu0 0
  %766 = vmatprep.subr.bf16.mxu0 0
  %767 = vmatpush2.bf16.msra.mxu0 0
  %768 = vmatprep.subr.bf16.mxu0 0
  %769 = vmatpush2.bf16.msra.mxu0 0
  %770 = vmatprep.subr.bf16.mxu0 0
  %771 = vmatpush2.bf16.msra.mxu0 0
  %772 = vmatprep.subr.bf16.mxu0 0
  %773 = vmatpush2.bf16.msra.mxu0 0
  %774 = vmatprep.mubr.bf16.mxu0 0
  %775 = vmatmul.mubr.bf16.gmra.mxu0 %v183
  %v776 = vpop.f32.mrf.mxu0
  %v777 = vadd.f32 %v728, %v776
  %v778 = vpop.f32.mrf.mxu0
  %v779 = vpop.f32.mrf.mxu0
  %v780 = vadd.f32 %v728, %v779
  %v781 = vpop.f32.mrf.mxu0
  %782 = vdwg.mxu0
  %v783 = vpack.c.bf16 %v777, %v777
  %v784 = vpack.c.bf16 %v780, %v780
  %v786 = vsel %vm370, %v647, 0
  %v789 = vsel %vm370, %v715, 0
  %791 = vmatprep.subr.bf16.mxu0 0
  %792 = vmatpush1.bf16.xpose.msra.mxu0 0
  %793 = vmatprep.subr.bf16.mxu0 0
  %794 = vmatpush1.bf16.xpose.msra.mxu0 0
  %795 = vmatprep.subr.bf16.mxu0 0
  %796 = vmatpush1.bf16.xpose.msra.mxu0 0
  %797 = vmatprep.subr.bf16.mxu0 0
  %798 = vmatpush1.bf16.xpose.msra.mxu0 0
  %799 = vmatprep.subr.bf16.mxu0 0
  %800 = vmatpush1.bf16.xpose.msra.mxu0 0
  %801 = vmatprep.subr.bf16.mxu0 0
  %802 = vmatpush1.bf16.xpose.msra.mxu0 0
  %803 = vmatprep.subr.bf16.mxu0 0
  %804 = vmatpush1.bf16.xpose.msra.mxu0 0
  %805 = vmatprep.subr.bf16.mxu0 0
  %806 = vmatpush1.bf16.xpose.msra.mxu0 %v789
  %807 = vmatprep.subr.bf16.mxu0 0
  %808 = vmatpush2.bf16.xpose.msra.mxu0 0
  %809 = vmatprep.subr.bf16.mxu0 0
  %810 = vmatpush2.bf16.xpose.msra.mxu0 0
  %811 = vmatprep.subr.bf16.mxu0 0
  %812 = vmatpush2.bf16.xpose.msra.mxu0 0
  %813 = vmatprep.subr.bf16.mxu0 0
  %814 = vmatpush2.bf16.xpose.msra.mxu0 0
  %815 = vmatprep.subr.bf16.mxu0 0
  %816 = vmatpush2.bf16.xpose.msra.mxu0 0
  %817 = vmatprep.subr.bf16.mxu0 0
  %818 = vmatpush2.bf16.xpose.msra.mxu0 0
  %819 = vmatprep.subr.bf16.mxu0 0
  %820 = vmatpush2.bf16.xpose.msra.mxu0 0
  %821 = vmatprep.subr.bf16.mxu0 0
  %822 = vmatpush2.bf16.xpose.msra.mxu0 0
  %823 = vmatprep.mubr.bf16.mxu0 0
  %824 = vmatmul.mubr.bf16.gmra.mxu0 %v786
  %v825 = vpop.f32.mrf.mxu0
  %v826 = vadd.f32 %v363, %v825
  %v827 = vpop.f32.mrf.mxu0
  %v828 = vpop.f32.mrf.mxu0
  %v829 = vpop.f32.mrf.mxu0
  %830 = vdwg.mxu0
  %v832 = vsel %vm370, %v648, 0
  %v835 = vsel %vm370, %v716, 0
  %837 = vmatprep.subr.bf16.mxu0 0
  %838 = vmatpush1.bf16.xpose.msra.mxu0 0
  %839 = vmatprep.subr.bf16.mxu0 0
  %840 = vmatpush1.bf16.xpose.msra.mxu0 0
  %841 = vmatprep.subr.bf16.mxu0 0
  %842 = vmatpush1.bf16.xpose.msra.mxu0 0
  %843 = vmatprep.subr.bf16.mxu0 0
  %844 = vmatpush1.bf16.xpose.msra.mxu0 0
  %845 = vmatprep.subr.bf16.mxu0 0
  %846 = vmatpush1.bf16.xpose.msra.mxu0 0
  %847 = vmatprep.subr.bf16.mxu0 0
  %848 = vmatpush1.bf16.xpose.msra.mxu0 0
  %849 = vmatprep.subr.bf16.mxu0 0
  %850 = vmatpush1.bf16.xpose.msra.mxu0 0
  %851 = vmatprep.subr.bf16.mxu0 0
  %852 = vmatpush1.bf16.xpose.msra.mxu0 %v835
  %853 = vmatprep.subr.bf16.mxu0 0
  %854 = vmatpush2.bf16.xpose.msra.mxu0 0
  %855 = vmatprep.subr.bf16.mxu0 0
  %856 = vmatpush2.bf16.xpose.msra.mxu0 0
  %857 = vmatprep.subr.bf16.mxu0 0
  %858 = vmatpush2.bf16.xpose.msra.mxu0 0
  %859 = vmatprep.subr.bf16.mxu0 0
  %860 = vmatpush2.bf16.xpose.msra.mxu0 0
  %861 = vmatprep.subr.bf16.mxu0 0
  %862 = vmatpush2.bf16.xpose.msra.mxu0 0
  %863 = vmatprep.subr.bf16.mxu0 0
  %864 = vmatpush2.bf16.xpose.msra.mxu0 0
  %865 = vmatprep.subr.bf16.mxu0 0
  %866 = vmatpush2.bf16.xpose.msra.mxu0 0
  %867 = vmatprep.subr.bf16.mxu0 0
  %868 = vmatpush2.bf16.xpose.msra.mxu0 0
  %869 = vmatprep.mubr.bf16.mxu0 0
  %870 = vmatmul.mubr.bf16.gmra.mxu0 %v832
  %v871 = vpop.f32.mrf.mxu0
  %v872 = vadd.f32 %v367, %v871
  %v873 = vpop.f32.mrf.mxu0
  %v874 = vpop.f32.mrf.mxu0
  %v875 = vpop.f32.mrf.mxu0
  %876 = vdwg.mxu0
  %v877 = vsel %vm463, %v826, -inf
  %878 = vmax.xlane.f32.xlu0 %v877
  %v879 = vpop.xlane.xlu0 %878
  %v880 = vsel %vm463, %v872, -inf
  %881 = vmax.xlane.f32.xlu0 %v880
  %v882 = vpop.xlane.xlu0 %881
  %v883 = vsub.f32 %v826, %v879
  %v884 = vsub.f32 %v872, %v882
  %v885 = vmul.f32 %v883, 1.442695
  %v886 = vpow.pop %v885
  %v887 = vmul.f32 %v884, 1.442695
  %v888 = vpow.pop %v887
  %v889 = vsel %vm463, %v886, 0.0
  %890 = vadd.xlane.f32.xlu0 %v889
  %v891 = vpop.xlane.xlu0 %890
  %v892 = vsel %vm463, %v888, 0.0
  %893 = vadd.xlane.f32.xlu0 %v892
  %v894 = vpop.xlane.xlu0 %893
  %v895 = vrcp.pop %v891
  %v896 = vrcp.pop %v894
  %v897 = vmul.f32 %v886, %v895
  %v898 = vmul.f32 %v888, %v896
  %v899 = vpack.c.bf16 %v897, %v897
  %v900 = vpack.c.bf16 %v898, %v898
  %v902 = vsel %vm463, %v899, 0
  %v905 = vsel %vm491, %v783, 0
  %907 = vmatprep.subr.bf16.mxu0 0
  %908 = vmatpush1.bf16.msra.mxu0 0
  %909 = vmatprep.subr.bf16.mxu0 0
  %910 = vmatpush1.bf16.msra.mxu0 0
  %911 = vmatprep.subr.bf16.mxu0 0
  %912 = vmatpush1.bf16.msra.mxu0 0
  %913 = vmatprep.subr.bf16.mxu0 0
  %914 = vmatpush1.bf16.msra.mxu0 0
  %915 = vmatprep.subr.bf16.mxu0 0
  %916 = vmatpush1.bf16.msra.mxu0 0
  %917 = vmatprep.subr.bf16.mxu0 0
  %918 = vmatpush1.bf16.msra.mxu0 0
  %919 = vmatprep.subr.bf16.mxu0 0
  %920 = vmatpush1.bf16.msra.mxu0 0
  %921 = vmatprep.subr.bf16.mxu0 0
  %922 = vmatpush1.bf16.msra.mxu0 %v905
  %923 = vmatprep.subr.bf16.mxu0 0
  %924 = vmatpush2.bf16.msra.mxu0 0
  %925 = vmatprep.subr.bf16.mxu0 0
  %926 = vmatpush2.bf16.msra.mxu0 0
  %927 = vmatprep.subr.bf16.mxu0 0
  %928 = vmatpush2.bf16.msra.mxu0 0
  %929 = vmatprep.subr.bf16.mxu0 0
  %930 = vmatpush2.bf16.msra.mxu0 0
  %931 = vmatprep.subr.bf16.mxu0 0
  %932 = vmatpush2.bf16.msra.mxu0 0
  %933 = vmatprep.subr.bf16.mxu0 0
  %934 = vmatpush2.bf16.msra.mxu0 0
  %935 = vmatprep.subr.bf16.mxu0 0
  %936 = vmatpush2.bf16.msra.mxu0 0
  %937 = vmatprep.subr.bf16.mxu0 0
  %938 = vmatpush2.bf16.msra.mxu0 0
  %939 = vmatprep.mubr.bf16.mxu0 0
  %940 = vmatmul.mubr.bf16.gmra.mxu0 %v902
  %v941 = vpop.f32.mrf.mxu0
  %v942 = vadd.f32 0.0, %v941
  %v943 = vpop.f32.mrf.mxu0
  %v944 = vpop.f32.mrf.mxu0
  %v945 = vpop.f32.mrf.mxu0
  %946 = vdwg.mxu0
  %v948 = vsel %vm463, %v900, 0
  %v951 = vsel %vm491, %v784, 0
  %953 = vmatprep.subr.bf16.mxu0 0
  %954 = vmatpush1.bf16.msra.mxu0 0
  %955 = vmatprep.subr.bf16.mxu0 0
  %956 = vmatpush1.bf16.msra.mxu0 0
  %957 = vmatprep.subr.bf16.mxu0 0
  %958 = vmatpush1.bf16.msra.mxu0 0
  %959 = vmatprep.subr.bf16.mxu0 0
  %960 = vmatpush1.bf16.msra.mxu0 0
  %961 = vmatprep.subr.bf16.mxu0 0
  %962 = vmatpush1.bf16.msra.mxu0 0
  %963 = vmatprep.subr.bf16.mxu0 0
  %964 = vmatpush1.bf16.msra.mxu0 0
  %965 = vmatprep.subr.bf16.mxu0 0
  %966 = vmatpush1.bf16.msra.mxu0 0
  %967 = vmatprep.subr.bf16.mxu0 0
  %968 = vmatpush1.bf16.msra.mxu0 %v951
  %969 = vmatprep.subr.bf16.mxu0 0
  %970 = vmatpush2.bf16.msra.mxu0 0
  %971 = vmatprep.subr.bf16.mxu0 0
  %972 = vmatpush2.bf16.msra.mxu0 0
  %973 = vmatprep.subr.bf16.mxu0 0
  %974 = vmatpush2.bf16.msra.mxu0 0
  %975 = vmatprep.subr.bf16.mxu0 0
  %976 = vmatpush2.bf16.msra.mxu0 0
  %977 = vmatprep.subr.bf16.mxu0 0
  %978 = vmatpush2.bf16.msra.mxu0 0
  %979 = vmatprep.subr.bf16.mxu0 0
  %980 = vmatpush2.bf16.msra.mxu0 0
  %981 = vmatprep.subr.bf16.mxu0 0
  %982 = vmatpush2.bf16.msra.mxu0 0
  %983 = vmatprep.subr.bf16.mxu0 0
  %984 = vmatpush2.bf16.msra.mxu0 0
  %985 = vmatprep.mubr.bf16.mxu0 0
  %986 = vmatmul.mubr.bf16.gmra.mxu0 %v948
  %v987 = vpop.f32.mrf.mxu0
  %v988 = vadd.f32 0.0, %v987
  %v989 = vpop.f32.mrf.mxu0
  %v990 = vpop.f32.mrf.mxu0
  %v991 = vpop.f32.mrf.mxu0
  %992 = vdwg.mxu0
  %995 = vrot.lane.b32.xlu0 %v942, 16
  %v996 = vpop.permute.xlu0 %995
  %997 = vrot.lane.b32.xlu0 %v988, 16
  %v998 = vpop.permute.xlu0 %997
  %v1001 = vsel %vm370, %v530, %v996
  %v1002 = vsel %vm370, %v576, %v998
  %v1003 = vpack.c.bf16 %v1001, %v1001
  %v1004 = vpack.c.bf16 %v1002, %v1002
  %v1005 = vld [vmem:[%s10] sm:$0xf]
  %v1006 = vld [vmem:[%s10 + $0x4] sm:$0xf]
  %v1007 = vld [vmem:[%s10 + $0x8] sm:$0xf]
  %v1008 = vld [vmem:[%s10 + $0xc] sm:$0xf]
  %v1009 = vld [vmem:[%s11] sm:$0x1]
  %v1011 = vlaneseq
  %v1012 = vshrl.u32 %v1011, 7
  %v1013 = vsub.s32 0, %v1012
  %v1014 = vrot.slane %v1009, %v1013
  %v1018 = vunpack.c.l.b16 %v1003
  %v1019 = vunpack.c.l.b16 %v1004
  %v1020 = vpack.c.b16 %v1019, %v1018
  %v1025 = vunpack.c.l.b16 %v1005
  %v1026 = vunpack.c.l.b16 %v1006
  %v1027 = vunpack.c.l.b16 %v1007
  %v1028 = vunpack.c.l.b16 %v1008
  %v1029 = vpack.c.b16 %v1026, %v1025
  %v1030 = vpack.c.b16 %v1028, %v1027
  %v1034 = vsel %vm84, %v1020, 0
  %1036 = vmatprep.subr.bf16.mxu0 0
  %1037 = vmatpush1.bf16.msra.mxu0 0
  %1038 = vmatprep.subr.bf16.mxu0 0
  %1039 = vmatpush1.bf16.msra.mxu0 0
  %1040 = vmatprep.subr.bf16.mxu0 0
  %1041 = vmatpush1.bf16.msra.mxu0 0
  %1042 = vmatprep.subr.bf16.mxu0 0
  %1043 = vmatpush1.bf16.msra.mxu0 0
  %1044 = vmatprep.subr.bf16.mxu0 0
  %1045 = vmatpush1.bf16.msra.mxu0 0
  %1046 = vmatprep.subr.bf16.mxu0 0
  %1047 = vmatpush1.bf16.msra.mxu0 0
  %1048 = vmatprep.subr.bf16.mxu0 0
  %1049 = vmatpush1.bf16.msra.mxu0 %v1030
  %1050 = vmatprep.subr.bf16.mxu0 0
  %1051 = vmatpush1.bf16.msra.mxu0 %v1029
  %1052 = vmatprep.subr.bf16.mxu0 0
  %1053 = vmatpush2.bf16.msra.mxu0 0
  %1054 = vmatprep.subr.bf16.mxu0 0
  %1055 = vmatpush2.bf16.msra.mxu0 0
  %1056 = vmatprep.subr.bf16.mxu0 0
  %1057 = vmatpush2.bf16.msra.mxu0 0
  %1058 = vmatprep.subr.bf16.mxu0 0
  %1059 = vmatpush2.bf16.msra.mxu0 0
  %1060 = vmatprep.subr.bf16.mxu0 0
  %1061 = vmatpush2.bf16.msra.mxu0 0
  %1062 = vmatprep.subr.bf16.mxu0 0
  %1063 = vmatpush2.bf16.msra.mxu0 0
  %1064 = vmatprep.subr.bf16.mxu0 0
  %1065 = vmatpush2.bf16.msra.mxu0 0
  %1066 = vmatprep.subr.bf16.mxu0 0
  %1067 = vmatpush2.bf16.msra.mxu0 0
  %1068 = vmatprep.mubr.bf16.mxu0 0
  %1069 = vmatmul.mubr.bf16.gmra.mxu0 %v1034
  %v1070 = vpop.f32.mrf.mxu0
  %v1071 = vadd.f32 %v1014, %v1070
  %v1072 = vpop.f32.mrf.mxu0
  %v1073 = vpop.f32.mrf.mxu0
  %v1074 = vadd.f32 %v1014, %v1073
  %v1075 = vpop.f32.mrf.mxu0
  %1076 = vdwg.mxu0
  %v1077 = vadd.f32 %v1071, %v126
  %v1078 = vadd.f32 %v1074, %v127
  %v1079 = vld [vmem:[%s12] sm:$0x1]
  %v1080 = vld [vmem:[%s13] sm:$0x1]
  %v1081 = vsel %vm84, %v1077, 0.0
  %1082 = vadd.xlane.f32.xlu0 %v1081
  %v1083 = vpop.xlane.xlu0 %1082
  %v1084 = vsel %vm84, %v1078, 0.0
  %1085 = vadd.xlane.f32.xlu0 %v1084
  %v1086 = vpop.xlane.xlu0 %1085
  %v1087 = vmul.f32 %v1083, %v91
  %v1088 = vmul.f32 %v1086, %v91
  %v1089 = vsub.f32 %v1077, %v1087
  %v1090 = vsub.f32 %v1078, %v1088
  %v1091 = vmul.f32 %v1089, %v1089
  %v1092 = vmul.f32 %v1090, %v1090
  %v1093 = vsel %vm84, %v1091, 0.0
  %1094 = vadd.xlane.f32.xlu0 %v1093
  %v1095 = vpop.xlane.xlu0 %1094
  %v1096 = vsel %vm84, %v1092, 0.0
  %1097 = vadd.xlane.f32.xlu0 %v1096
  %v1098 = vpop.xlane.xlu0 %1097
  %v1099 = vmul.f32 %v1095, %v91
  %v1100 = vmul.f32 %v1098, %v91
  %v1101 = vadd.f32 %v1099, 1e-12
  %v1102 = vadd.f32 %v1100, 1e-12
  %v1103 = vrsqrt.pop %v1101
  %v1104 = vrsqrt.pop %v1102
  %v1105 = vmul.f32 %v1089, %v1103
  %v1106 = vmul.f32 %v1090, %v1104
  %v1108 = vlaneseq
  %v1109 = vshrl.u32 %v1108, 7
  %v1110 = vsub.s32 0, %v1109
  %v1111 = vrot.slane %v1079, %v1110
  %v1113 = vmul.f32 %v1105, %v1111
  %v1114 = vmul.f32 %v1106, %v1111
  %v1116 = vlaneseq
  %v1117 = vshrl.u32 %v1116, 7
  %v1118 = vsub.s32 0, %v1117
  %v1119 = vrot.slane %v1080, %v1118
  %v1121 = vadd.f32 %v1113, %v1119
  %v1122 = vadd.f32 %v1114, %v1119
  %v1123 = vpack.c.bf16 %v1121, %v1121
  %v1124 = vpack.c.bf16 %v1122, %v1122
  %v1125 = vld [vmem:[%s14] sm:$0xf]
  %v1126 = vld [vmem:[%s14 + $0x4] sm:$0xf]
  %v1127 = vld [vmem:[%s14 + $0x8] sm:$0xf]
  %v1128 = vld [vmem:[%s14 + $0xc] sm:$0xf]
  %v1129 = vld [vmem:[%s15] sm:$0x1]
  %v1131 = vlaneseq
  %v1132 = vshrl.u32 %v1131, 7
  %v1133 = vsub.s32 0, %v1132
  %v1134 = vrot.slane %v1129, %v1133
  %v1138 = vunpack.c.l.b16 %v1123
  %v1139 = vunpack.c.l.b16 %v1124
  %v1140 = vpack.c.b16 %v1139, %v1138
  %v1145 = vunpack.c.l.b16 %v1125
  %v1146 = vunpack.c.l.b16 %v1126
  %v1147 = vunpack.c.l.b16 %v1127
  %v1148 = vunpack.c.l.b16 %v1128
  %v1149 = vpack.c.b16 %v1146, %v1145
  %v1150 = vpack.c.b16 %v1148, %v1147
  %v1154 = vsel %vm84, %v1140, 0
  %1156 = vmatprep.subr.bf16.mxu0 0
  %1157 = vmatpush1.bf16.msra.mxu0 0
  %1158 = vmatprep.subr.bf16.mxu0 0
  %1159 = vmatpush1.bf16.msra.mxu0 0
  %1160 = vmatprep.subr.bf16.mxu0 0
  %1161 = vmatpush1.bf16.msra.mxu0 0
  %1162 = vmatprep.subr.bf16.mxu0 0
  %1163 = vmatpush1.bf16.msra.mxu0 0
  %1164 = vmatprep.subr.bf16.mxu0 0
  %1165 = vmatpush1.bf16.msra.mxu0 0
  %1166 = vmatprep.subr.bf16.mxu0 0
  %1167 = vmatpush1.bf16.msra.mxu0 0
  %1168 = vmatprep.subr.bf16.mxu0 0
  %1169 = vmatpush1.bf16.msra.mxu0 %v1150
  %1170 = vmatprep.subr.bf16.mxu0 0
  %1171 = vmatpush1.bf16.msra.mxu0 %v1149
  %1172 = vmatprep.subr.bf16.mxu0 0
  %1173 = vmatpush2.bf16.msra.mxu0 0
  %1174 = vmatprep.subr.bf16.mxu0 0
  %1175 = vmatpush2.bf16.msra.mxu0 0
  %1176 = vmatprep.subr.bf16.mxu0 0
  %1177 = vmatpush2.bf16.msra.mxu0 0
  %1178 = vmatprep.subr.bf16.mxu0 0
  %1179 = vmatpush2.bf16.msra.mxu0 0
  %1180 = vmatprep.subr.bf16.mxu0 0
  %1181 = vmatpush2.bf16.msra.mxu0 0
  %1182 = vmatprep.subr.bf16.mxu0 0
  %1183 = vmatpush2.bf16.msra.mxu0 0
  %1184 = vmatprep.subr.bf16.mxu0 0
  %1185 = vmatpush2.bf16.msra.mxu0 0
  %1186 = vmatprep.subr.bf16.mxu0 0
  %1187 = vmatpush2.bf16.msra.mxu0 0
  %1188 = vmatprep.mubr.bf16.mxu0 0
  %1189 = vmatmul.mubr.bf16.gmra.mxu0 %v1154
  %v1190 = vpop.f32.mrf.mxu0
  %v1191 = vadd.f32 %v1134, %v1190
  %v1192 = vpop.f32.mrf.mxu0
  %v1193 = vpop.f32.mrf.mxu0
  %v1194 = vadd.f32 %v1134, %v1193
  %v1195 = vpop.f32.mrf.mxu0
  %1196 = vdwg.mxu0
  %v1197 = vmul.f32 %v1191, %v1191
  %v1198 = vmul.f32 %v1194, %v1194
  %v1199 = vmul.f32 %v1191, %v1197
  %v1200 = vmul.f32 %v1194, %v1198
  %v1201 = vmul.f32 %v1199, 0.044715
  %v1202 = vmul.f32 %v1200, 0.044715
  %v1203 = vadd.f32 %v1191, %v1201
  %v1204 = vadd.f32 %v1194, %v1202
  %v1205 = vmul.f32 %v1203, 0.7978846
  %v1206 = vmul.f32 %v1204, 0.7978846
  %v1207 = vtanh.pop %v1205
  %v1208 = vtanh.pop %v1206
  %v1209 = vadd.f32 %v1207, 1.0
  %v1210 = vadd.f32 %v1208, 1.0
  %v1211 = vmul.f32 %v1209, 0.5
  %v1212 = vmul.f32 %v1210, 0.5
  %v1213 = vmul.f32 %v1191, %v1211
  %v1214 = vmul.f32 %v1194, %v1212
  %v1215 = vpack.c.bf16 %v1213, %v1213
  %v1216 = vpack.c.bf16 %v1214, %v1214
  %v1217 = vld [vmem:[%s16] sm:$0xf]
  %v1218 = vld [vmem:[%s16 + $0x4] sm:$0xf]
  %v1219 = vld [vmem:[%s16 + $0x8] sm:$0xf]
  %v1220 = vld [vmem:[%s16 + $0xc] sm:$0xf]
  %v1221 = vld [vmem:[%s16 + $0x10] sm:$0xf]
  %v1222 = vld [vmem:[%s16 + $0x14] sm:$0xf]
  %v1223 = vld [vmem:[%s16 + $0x18] sm:$0xf]
  %v1224 = vld [vmem:[%s16 + $0x1c] sm:$0xf]
  %v1225 = vld [vmem:[%s17] sm:$0x1]
  %v1227 = vlaneseq
  %v1228 = vshrl.u32 %v1227, 7
  %v1229 = vsub.s32 0, %v1228
  %v1230 = vrot.slane %v1225, %v1229
  %v1234 = vunpack.c.l.b16 %v1215
  %v1235 = vunpack.c.l.b16 %v1216
  %v1236 = vpack.c.b16 %v1235, %v1234
  %v1245 = vunpack.c.l.b16 %v1217
  %v1246 = vunpack.c.l.b16 %v1218
  %v1247 = vunpack.c.l.b16 %v1219
  %v1248 = vunpack.c.l.b16 %v1220
  %v1249 = vunpack.c.l.b16 %v1221
  %v1250 = vunpack.c.l.b16 %v1222
  %v1251 = vunpack.c.l.b16 %v1223
  %v1252 = vunpack.c.l.b16 %v1224
  %v1253 = vpack.c.b16 %v1246, %v1245
  %v1254 = vpack.c.b16 %v1248, %v1247
  %v1255 = vpack.c.b16 %v1250, %v1249
  %v1256 = vpack.c.b16 %v1252, %v1251
  %vm1261 = vcmask 523264
  %v1263 = vsel %vm1261, %v1236, 0
  %1265 = vmatprep.subr.bf16.mxu0 0
  %1266 = vmatpush1.bf16.msra.mxu0 0
  %1267 = vmatprep.subr.bf16.mxu0 0
  %1268 = vmatpush1.bf16.msra.mxu0 0
  %1269 = vmatprep.subr.bf16.mxu0 0
  %1270 = vmatpush1.bf16.msra.mxu0 0
  %1271 = vmatprep.subr.bf16.mxu0 0
  %1272 = vmatpush1.bf16.msra.mxu0 0
  %1273 = vmatprep.subr.bf16.mxu0 0
  %1274 = vmatpush1.bf16.msra.mxu0 %v1256
  %1275 = vmatprep.subr.bf16.mxu0 0
  %1276 = vmatpush1.bf16.msra.mxu0 %v1255
  %1277 = vmatprep.subr.bf16.mxu0 0
  %1278 = vmatpush1.bf16.msra.mxu0 %v1254
  %1279 = vmatprep.subr.bf16.mxu0 0
  %1280 = vmatpush1.bf16.msra.mxu0 %v1253
  %1281 = vmatprep.subr.bf16.mxu0 0
  %1282 = vmatpush2.bf16.msra.mxu0 0
  %1283 = vmatprep.subr.bf16.mxu0 0
  %1284 = vmatpush2.bf16.msra.mxu0 0
  %1285 = vmatprep.subr.bf16.mxu0 0
  %1286 = vmatpush2.bf16.msra.mxu0 0
  %1287 = vmatprep.subr.bf16.mxu0 0
  %1288 = vmatpush2.bf16.msra.mxu0 0
  %1289 = vmatprep.subr.bf16.mxu0 0
  %1290 = vmatpush2.bf16.msra.mxu0 0
  %1291 = vmatprep.subr.bf16.mxu0 0
  %1292 = vmatpush2.bf16.msra.mxu0 0
  %1293 = vmatprep.subr.bf16.mxu0 0
  %1294 = vmatpush2.bf16.msra.mxu0 0
  %1295 = vmatprep.subr.bf16.mxu0 0
  %1296 = vmatpush2.bf16.msra.mxu0 0
  %1297 = vmatprep.mubr.bf16.mxu0 0
  %1298 = vmatmul.mubr.bf16.gmra.mxu0 %v1263
  %v1299 = vpop.f32.mrf.mxu0
  %v1300 = vadd.f32 %v1230, %v1299
  %v1301 = vpop.f32.mrf.mxu0
  %v1302 = vpop.f32.mrf.mxu0
  %v1303 = vadd.f32 %v1230, %v1302
  %v1304 = vpop.f32.mrf.mxu0
  %1305 = vdwg.mxu0
  %v1306 = vadd.f32 %v1300, %v1121
  %v1307 = vadd.f32 %v1303, %v1122
  %v1308 = vld [vmem:[%s18] sm:$0x1]
  %v1309 = vld [vmem:[%s19] sm:$0x1]
  %v1310 = vsel %vm84, %v1306, 0.0
  %1311 = vadd.xlane.f32.xlu0 %v1310
  %v1312 = vpop.xlane.xlu0 %1311
  %v1313 = vsel %vm84, %v1307, 0.0
  %1314 = vadd.xlane.f32.xlu0 %v1313
  %v1315 = vpop.xlane.xlu0 %1314
  %v1316 = vmul.f32 %v1312, %v91
  %v1317 = vmul.f32 %v1315, %v91
  %v1318 = vsub.f32 %v1306, %v1316
  %v1319 = vsub.f32 %v1307, %v1317
  %v1320 = vmul.f32 %v1318, %v1318
  %v1321 = vmul.f32 %v1319, %v1319
  %v1322 = vsel %vm84, %v1320, 0.0
  %1323 = vadd.xlane.f32.xlu0 %v1322
  %v1324 = vpop.xlane.xlu0 %1323
  %v1325 = vsel %vm84, %v1321, 0.0
  %1326 = vadd.xlane.f32.xlu0 %v1325
  %v1327 = vpop.xlane.xlu0 %1326
  %v1328 = vmul.f32 %v1324, %v91
  %v1329 = vmul.f32 %v1327, %v91
  %v1330 = vadd.f32 %v1328, 1e-12
  %v1331 = vadd.f32 %v1329, 1e-12
  %v1332 = vrsqrt.pop %v1330
  %v1333 = vrsqrt.pop %v1331
  %v1334 = vmul.f32 %v1318, %v1332
  %v1335 = vmul.f32 %v1319, %v1333
  %v1337 = vlaneseq
  %v1338 = vshrl.u32 %v1337, 7
  %v1339 = vsub.s32 0, %v1338
  %v1340 = vrot.slane %v1308, %v1339
  %v1342 = vmul.f32 %v1334, %v1340
  %v1343 = vmul.f32 %v1335, %v1340
  %v1345 = vlaneseq
  %v1346 = vshrl.u32 %v1345, 7
  %v1347 = vsub.s32 0, %v1346
  %v1348 = vrot.slane %v1309, %v1347
  %v1350 = vadd.f32 %v1342, %v1348
  %v1351 = vadd.f32 %v1343, %v1348
  %v1352 = vpack.c.bf16 %v1350, %v1350
  %v1353 = vpack.c.bf16 %v1351, %v1351
  %s1354 = scalar_lea.vmem %s4, 32
  %v1355 = vld [vmem:[%s1354] sm:$0xf]
  %v1356 = vld [vmem:[%s1354 + $0x4] sm:$0xf]
  %v1357 = vld [vmem:[%s1354 + $0x8] sm:$0xf]
  %v1358 = vld [vmem:[%s1354 + $0xc] sm:$0xf]
  %s1359 = scalar_lea.vmem %s5, 2
  %v1360 = vld [vmem:[%s1359] sm:$0x1]
  %v1362 = vlaneseq
  %v1363 = vshrl.u32 %v1362, 7
  %v1364 = vsub.s32 0, %v1363
  %v1365 = vrot.slane %v1360, %v1364
  %v1369 = vunpack.c.l.b16 %v1352
  %v1370 = vunpack.c.l.b16 %v1353
  %v1371 = vpack.c.b16 %v1370, %v1369
  %v1376 = vunpack.c.l.b16 %v1355
  %v1377 = vunpack.c.l.b16 %v1356
  %v1378 = vunpack.c.l.b16 %v1357
  %v1379 = vunpack.c.l.b16 %v1358
  %v1380 = vpack.c.b16 %v1377, %v1376
  %v1381 = vpack.c.b16 %v1379, %v1378
  %v1385 = vsel %vm84, %v1371, 0
  %1387 = vmatprep.subr.bf16.mxu0 0
  %1388 = vmatpush1.bf16.msra.mxu0 0
  %1389 = vmatprep.subr.bf16.mxu0 0
  %1390 = vmatpush1.bf16.msra.mxu0 0
  %1391 = vmatprep.subr.bf16.mxu0 0
  %1392 = vmatpush1.bf16.msra.mxu0 0
  %1393 = vmatprep.subr.bf16.mxu0 0
  %1394 = vmatpush1.bf16.msra.mxu0 0
  %1395 = vmatprep.subr.bf16.mxu0 0
  %1396 = vmatpush1.bf16.msra.mxu0 0
  %1397 = vmatprep.subr.bf16.mxu0 0
  %1398 = vmatpush1.bf16.msra.mxu0 0
  %1399 = vmatprep.subr.bf16.mxu0 0
  %1400 = vmatpush1.bf16.msra.mxu0 %v1381
  %1401 = vmatprep.subr.bf16.mxu0 0
  %1402 = vmatpush1.bf16.msra.mxu0 %v1380
  %1403 = vmatprep.subr.bf16.mxu0 0
  %1404 = vmatpush2.bf16.msra.mxu0 0
  %1405 = vmatprep.subr.bf16.mxu0 0
  %1406 = vmatpush2.bf16.msra.mxu0 0
  %1407 = vmatprep.subr.bf16.mxu0 0
  %1408 = vmatpush2.bf16.msra.mxu0 0
  %1409 = vmatprep.subr.bf16.mxu0 0
  %1410 = vmatpush2.bf16.msra.mxu0 0
  %1411 = vmatprep.subr.bf16.mxu0 0
  %1412 = vmatpush2.bf16.msra.mxu0 0
  %1413 = vmatprep.subr.bf16.mxu0 0
  %1414 = vmatpush2.bf16.msra.mxu0 0
  %1415 = vmatprep.subr.bf16.mxu0 0
  %1416 = vmatpush2.bf16.msra.mxu0 0
  %1417 = vmatprep.subr.bf16.mxu0 0
  %1418 = vmatpush2.bf16.msra.mxu0 0
  %1419 = vmatprep.mubr.bf16.mxu0 0
  %1420 = vmatmul.mubr.bf16.gmra.mxu0 %v1385
  %v1421 = vpop.f32.mrf.mxu0
  %v1422 = vadd.f32 %v1365, %v1421
  %v1423 = vpop.f32.mrf.mxu0
  %v1424 = vpop.f32.mrf.mxu0
  %v1425 = vadd.f32 %v1365, %v1424
  %v1426 = vpop.f32.mrf.mxu0
  %1427 = vdwg.mxu0
  %v1428 = vpack.c.bf16 %v1422, %v1422
  %v1429 = vpack.c.bf16 %v1425, %v1425
  %s1430 = scalar_lea.vmem %s6, 32
  %v1431 = vld [vmem:[%s1430] sm:$0xf]
  %v1432 = vld [vmem:[%s1430 + $0x4] sm:$0xf]
  %v1433 = vld [vmem:[%s1430 + $0x8] sm:$0xf]
  %v1434 = vld [vmem:[%s1430 + $0xc] sm:$0xf]
  %s1435 = scalar_lea.vmem %s7, 2
  %v1436 = vld [vmem:[%s1435] sm:$0x1]
  %v1438 = vlaneseq
  %v1439 = vshrl.u32 %v1438, 7
  %v1440 = vsub.s32 0, %v1439
  %v1441 = vrot.slane %v1436, %v1440
  %v1447 = vunpack.c.l.b16 %v1431
  %v1448 = vunpack.c.l.b16 %v1432
  %v1449 = vunpack.c.l.b16 %v1433
  %v1450 = vunpack.c.l.b16 %v1434
  %v1451 = vpack.c.b16 %v1448, %v1447
  %v1452 = vpack.c.b16 %v1450, %v1449
  %1455 = vmatprep.subr.bf16.mxu0 0
  %1456 = vmatpush1.bf16.msra.mxu0 0
  %1457 = vmatprep.subr.bf16.mxu0 0
  %1458 = vmatpush1.bf16.msra.mxu0 0
  %1459 = vmatprep.subr.bf16.mxu0 0
  %1460 = vmatpush1.bf16.msra.mxu0 0
  %1461 = vmatprep.subr.bf16.mxu0 0
  %1462 = vmatpush1.bf16.msra.mxu0 0
  %1463 = vmatprep.subr.bf16.mxu0 0
  %1464 = vmatpush1.bf16.msra.mxu0 0
  %1465 = vmatprep.subr.bf16.mxu0 0
  %1466 = vmatpush1.bf16.msra.mxu0 0
  %1467 = vmatprep.subr.bf16.mxu0 0
  %1468 = vmatpush1.bf16.msra.mxu0 %v1452
  %1469 = vmatprep.subr.bf16.mxu0 0
  %1470 = vmatpush1.bf16.msra.mxu0 %v1451
  %1471 = vmatprep.subr.bf16.mxu0 0
  %1472 = vmatpush2.bf16.msra.mxu0 0
  %1473 = vmatprep.subr.bf16.mxu0 0
  %1474 = vmatpush2.bf16.msra.mxu0 0
  %1475 = vmatprep.subr.bf16.mxu0 0
  %1476 = vmatpush2.bf16.msra.mxu0 0
  %1477 = vmatprep.subr.bf16.mxu0 0
  %1478 = vmatpush2.bf16.msra.mxu0 0
  %1479 = vmatprep.subr.bf16.mxu0 0
  %1480 = vmatpush2.bf16.msra.mxu0 0
  %1481 = vmatprep.subr.bf16.mxu0 0
  %1482 = vmatpush2.bf16.msra.mxu0 0
  %1483 = vmatprep.subr.bf16.mxu0 0
  %1484 = vmatpush2.bf16.msra.mxu0 0
  %1485 = vmatprep.subr.bf16.mxu0 0
  %1486 = vmatpush2.bf16.msra.mxu0 0
  %1487 = vmatprep.mubr.bf16.mxu0 0
  %1488 = vmatmul.mubr.bf16.gmra.mxu0 %v1385
  %v1489 = vpop.f32.mrf.mxu0
  %v1490 = vadd.f32 %v1441, %v1489
  %v1491 = vpop.f32.mrf.mxu0
  %v1492 = vpop.f32.mrf.mxu0
  %v1493 = vadd.f32 %v1441, %v1492
  %v1494 = vpop.f32.mrf.mxu0
  %1495 = vdwg.mxu0
  %v1496 = vpack.c.bf16 %v1490, %v1490
  %v1497 = vpack.c.bf16 %v1493, %v1493
  %s1498 = scalar_lea.vmem %s8, 32
  %v1499 = vld [vmem:[%s1498] sm:$0xf]
  %v1500 = vld [vmem:[%s1498 + $0x4] sm:$0xf]
  %v1501 = vld [vmem:[%s1498 + $0x8] sm:$0xf]
  %v1502 = vld [vmem:[%s1498 + $0xc] sm:$0xf]
  %s1503 = scalar_lea.vmem %s9, 2
  %v1504 = vld [vmem:[%s1503] sm:$0x1]
  %v1506 = vlaneseq
  %v1507 = vshrl.u32 %v1506, 7
  %v1508 = vsub.s32 0, %v1507
  %v1509 = vrot.slane %v1504, %v1508
  %v1515 = vunpack.c.l.b16 %v1499
  %v1516 = vunpack.c.l.b16 %v1500
  %v1517 = vunpack.c.l.b16 %v1501
  %v1518 = vunpack.c.l.b16 %v1502
  %v1519 = vpack.c.b16 %v1516, %v1515
  %v1520 = vpack.c.b16 %v1518, %v1517
  %1523 = vmatprep.subr.bf16.mxu0 0
  %1524 = vmatpush1.bf16.msra.mxu0 0
  %1525 = vmatprep.subr.bf16.mxu0 0
  %1526 = vmatpush1.bf16.msra.mxu0 0
  %1527 = vmatprep.subr.bf16.mxu0 0
  %1528 = vmatpush1.bf16.msra.mxu0 0
  %1529 = vmatprep.subr.bf16.mxu0 0
  %1530 = vmatpush1.bf16.msra.mxu0 0
  %1531 = vmatprep.subr.bf16.mxu0 0
  %1532 = vmatpush1.bf16.msra.mxu0 0
  %1533 = vmatprep.subr.bf16.mxu0 0
  %1534 = vmatpush1.bf16.msra.mxu0 0
  %1535 = vmatprep.subr.bf16.mxu0 0
  %1536 = vmatpush1.bf16.msra.mxu0 %v1520
  %1537 = vmatprep.subr.bf16.mxu0 0
  %1538 = vmatpush1.bf16.msra.mxu0 %v1519
  %1539 = vmatprep.subr.bf16.mxu0 0
  %1540 = vmatpush2.bf16.msra.mxu0 0
  %1541 = vmatprep.subr.bf16.mxu0 0
  %1542 = vmatpush2.bf16.msra.mxu0 0
  %1543 = vmatprep.subr.bf16.mxu0 0
  %1544 = vmatpush2.bf16.msra.mxu0 0
  %1545 = vmatprep.subr.bf16.mxu0 0
  %1546 = vmatpush2.bf16.msra.mxu0 0
  %1547 = vmatprep.subr.bf16.mxu0 0
  %1548 = vmatpush2.bf16.msra.mxu0 0
  %1549 = vmatprep.subr.bf16.mxu0 0
  %1550 = vmatpush2.bf16.msra.mxu0 0
  %1551 = vmatprep.subr.bf16.mxu0 0
  %1552 = vmatpush2.bf16.msra.mxu0 0
  %1553 = vmatprep.subr.bf16.mxu0 0
  %1554 = vmatpush2.bf16.msra.mxu0 0
  %1555 = vmatprep.mubr.bf16.mxu0 0
  %1556 = vmatmul.mubr.bf16.gmra.mxu0 %v1385
  %v1557 = vpop.f32.mrf.mxu0
  %v1558 = vadd.f32 %v1509, %v1557
  %v1559 = vpop.f32.mrf.mxu0
  %v1560 = vpop.f32.mrf.mxu0
  %v1561 = vadd.f32 %v1509, %v1560
  %v1562 = vpop.f32.mrf.mxu0
  %1563 = vdwg.mxu0
  %v1564 = vpack.c.bf16 %v1558, %v1558
  %v1565 = vpack.c.bf16 %v1561, %v1561
  %v1567 = vsel %vm370, %v1428, 0
  %v1570 = vsel %vm370, %v1496, 0
  %1572 = vmatprep.subr.bf16.mxu0 0
  %1573 = vmatpush1.bf16.xpose.msra.mxu0 0
  %1574 = vmatprep.subr.bf16.mxu0 0
  %1575 = vmatpush1.bf16.xpose.msra.mxu0 0
  %1576 = vmatprep.subr.bf16.mxu0 0
  %1577 = vmatpush1.bf16.xpose.msra.mxu0 0
  %1578 = vmatprep.subr.bf16.mxu0 0
  %1579 = vmatpush1.bf16.xpose.msra.mxu0 0
  %1580 = vmatprep.subr.bf16.mxu0 0
  %1581 = vmatpush1.bf16.xpose.msra.mxu0 0
  %1582 = vmatprep.subr.bf16.mxu0 0
  %1583 = vmatpush1.bf16.xpose.msra.mxu0 0
  %1584 = vmatprep.subr.bf16.mxu0 0
  %1585 = vmatpush1.bf16.xpose.msra.mxu0 0
  %1586 = vmatprep.subr.bf16.mxu0 0
  %1587 = vmatpush1.bf16.xpose.msra.mxu0 %v1570
  %1588 = vmatprep.subr.bf16.mxu0 0
  %1589 = vmatpush2.bf16.xpose.msra.mxu0 0
  %1590 = vmatprep.subr.bf16.mxu0 0
  %1591 = vmatpush2.bf16.xpose.msra.mxu0 0
  %1592 = vmatprep.subr.bf16.mxu0 0
  %1593 = vmatpush2.bf16.xpose.msra.mxu0 0
  %1594 = vmatprep.subr.bf16.mxu0 0
  %1595 = vmatpush2.bf16.xpose.msra.mxu0 0
  %1596 = vmatprep.subr.bf16.mxu0 0
  %1597 = vmatpush2.bf16.xpose.msra.mxu0 0
  %1598 = vmatprep.subr.bf16.mxu0 0
  %1599 = vmatpush2.bf16.xpose.msra.mxu0 0
  %1600 = vmatprep.subr.bf16.mxu0 0
  %1601 = vmatpush2.bf16.xpose.msra.mxu0 0
  %1602 = vmatprep.subr.bf16.mxu0 0
  %1603 = vmatpush2.bf16.xpose.msra.mxu0 0
  %1604 = vmatprep.mubr.bf16.mxu0 0
  %1605 = vmatmul.mubr.bf16.gmra.mxu0 %v1567
  %v1606 = vpop.f32.mrf.mxu0
  %v1607 = vadd.f32 %v363, %v1606
  %v1608 = vpop.f32.mrf.mxu0
  %v1609 = vpop.f32.mrf.mxu0
  %v1610 = vpop.f32.mrf.mxu0
  %1611 = vdwg.mxu0
  %v1613 = vsel %vm370, %v1429, 0
  %v1616 = vsel %vm370, %v1497, 0
  %1618 = vmatprep.subr.bf16.mxu0 0
  %1619 = vmatpush1.bf16.xpose.msra.mxu0 0
  %1620 = vmatprep.subr.bf16.mxu0 0
  %1621 = vmatpush1.bf16.xpose.msra.mxu0 0
  %1622 = vmatprep.subr.bf16.mxu0 0
  %1623 = vmatpush1.bf16.xpose.msra.mxu0 0
  %1624 = vmatprep.subr.bf16.mxu0 0
  %1625 = vmatpush1.bf16.xpose.msra.mxu0 0
  %1626 = vmatprep.subr.bf16.mxu0 0
  %1627 = vmatpush1.bf16.xpose.msra.mxu0 0
  %1628 = vmatprep.subr.bf16.mxu0 0
  %1629 = vmatpush1.bf16.xpose.msra.mxu0 0
  %1630 = vmatprep.subr.bf16.mxu0 0
  %1631 = vmatpush1.bf16.xpose.msra.mxu0 0
  %1632 = vmatprep.subr.bf16.mxu0 0
  %1633 = vmatpush1.bf16.xpose.msra.mxu0 %v1616
  %1634 = vmatprep.subr.bf16.mxu0 0
  %1635 = vmatpush2.bf16.xpose.msra.mxu0 0
  %1636 = vmatprep.subr.bf16.mxu0 0
  %1637 = vmatpush2.bf16.xpose.msra.mxu0 0
  %1638 = vmatprep.subr.bf16.mxu0 0
  %1639 = vmatpush2.bf16.xpose.msra.mxu0 0
  %1640 = vmatprep.subr.bf16.mxu0 0
  %1641 = vmatpush2.bf16.xpose.msra.mxu0 0
  %1642 = vmatprep.subr.bf16.mxu0 0
  %1643 = vmatpush2.bf16.xpose.msra.mxu0 0
  %1644 = vmatprep.subr.bf16.mxu0 0
  %1645 = vmatpush2.bf16.xpose.msra.mxu0 0
  %1646 = vmatprep.subr.bf16.mxu0 0
  %1647 = vmatpush2.bf16.xpose.msra.mxu0 0
  %1648 = vmatprep.subr.bf16.mxu0 0
  %1649 = vmatpush2.bf16.xpose.msra.mxu0 0
  %1650 = vmatprep.mubr.bf16.mxu0 0
  %1651 = vmatmul.mubr.bf16.gmra.mxu0 %v1613
  %v1652 = vpop.f32.mrf.mxu0
  %v1653 = vadd.f32 %v367, %v1652
  %v1654 = vpop.f32.mrf.mxu0
  %v1655 = vpop.f32.mrf.mxu0
  %v1656 = vpop.f32.mrf.mxu0
  %1657 = vdwg.mxu0
  %v1658 = vsel %vm463, %v1607, -inf
  %1659 = vmax.xlane.f32.xlu0 %v1658
  %v1660 = vpop.xlane.xlu0 %1659
  %v1661 = vsel %vm463, %v1653, -inf
  %1662 = vmax.xlane.f32.xlu0 %v1661
  %v1663 = vpop.xlane.xlu0 %1662
  %v1664 = vsub.f32 %v1607, %v1660
  %v1665 = vsub.f32 %v1653, %v1663
  %v1666 = vmul.f32 %v1664, 1.442695
  %v1667 = vpow.pop %v1666
  %v1668 = vmul.f32 %v1665, 1.442695
  %v1669 = vpow.pop %v1668
  %v1670 = vsel %vm463, %v1667, 0.0
  %1671 = vadd.xlane.f32.xlu0 %v1670
  %v1672 = vpop.xlane.xlu0 %1671
  %v1673 = vsel %vm463, %v1669, 0.0
  %1674 = vadd.xlane.f32.xlu0 %v1673
  %v1675 = vpop.xlane.xlu0 %1674
  %v1676 = vrcp.pop %v1672
  %v1677 = vrcp.pop %v1675
  %v1678 = vmul.f32 %v1667, %v1676
  %v1679 = vmul.f32 %v1669, %v1677
  %v1680 = vpack.c.bf16 %v1678, %v1678
  %v1681 = vpack.c.bf16 %v1679, %v1679
  %v1683 = vsel %vm463, %v1680, 0
  %v1686 = vsel %vm491, %v1564, 0
  %1688 = vmatprep.subr.bf16.mxu0 0
  %1689 = vmatpush1.bf16.msra.mxu0 0
  %1690 = vmatprep.subr.bf16.mxu0 0
  %1691 = vmatpush1.bf16.msra.mxu0 0
  %1692 = vmatprep.subr.bf16.mxu0 0
  %1693 = vmatpush1.bf16.msra.mxu0 0
  %1694 = vmatprep.subr.bf16.mxu0 0
  %1695 = vmatpush1.bf16.msra.mxu0 0
  %1696 = vmatprep.subr.bf16.mxu0 0
  %1697 = vmatpush1.bf16.msra.mxu0 0
  %1698 = vmatprep.subr.bf16.mxu0 0
  %1699 = vmatpush1.bf16.msra.mxu0 0
  %1700 = vmatprep.subr.bf16.mxu0 0
  %1701 = vmatpush1.bf16.msra.mxu0 0
  %1702 = vmatprep.subr.bf16.mxu0 0
  %1703 = vmatpush1.bf16.msra.mxu0 %v1686
  %1704 = vmatprep.subr.bf16.mxu0 0
  %1705 = vmatpush2.bf16.msra.mxu0 0
  %1706 = vmatprep.subr.bf16.mxu0 0
  %1707 = vmatpush2.bf16.msra.mxu0 0
  %1708 = vmatprep.subr.bf16.mxu0 0
  %1709 = vmatpush2.bf16.msra.mxu0 0
  %1710 = vmatprep.subr.bf16.mxu0 0
  %1711 = vmatpush2.bf16.msra.mxu0 0
  %1712 = vmatprep.subr.bf16.mxu0 0
  %1713 = vmatpush2.bf16.msra.mxu0 0
  %1714 = vmatprep.subr.bf16.mxu0 0
  %1715 = vmatpush2.bf16.msra.mxu0 0
  %1716 = vmatprep.subr.bf16.mxu0 0
  %1717 = vmatpush2.bf16.msra.mxu0 0
  %1718 = vmatprep.subr.bf16.mxu0 0
  %1719 = vmatpush2.bf16.msra.mxu0 0
  %1720 = vmatprep.mubr.bf16.mxu0 0
  %1721 = vmatmul.mubr.bf16.gmra.mxu0 %v1683
  %v1722 = vpop.f32.mrf.mxu0
  %v1723 = vadd.f32 0.0, %v1722
  %v1724 = vpop.f32.mrf.mxu0
  %v1725 = vpop.f32.mrf.mxu0
  %v1726 = vpop.f32.mrf.mxu0
  %1727 = vdwg.mxu0
  %v1729 = vsel %vm463, %v1681, 0
  %v1732 = vsel %vm491, %v1565, 0
  %1734 = vmatprep.subr.bf16.mxu0 0
  %1735 = vmatpush1.bf16.msra.mxu0 0
  %1736 = vmatprep.subr.bf16.mxu0 0
  %1737 = vmatpush1.bf16.msra.mxu0 0
  %1738 = vmatprep.subr.bf16.mxu0 0
  %1739 = vmatpush1.bf16.msra.mxu0 0
  %1740 = vmatprep.subr.bf16.mxu0 0
  %1741 = vmatpush1.bf16.msra.mxu0 0
  %1742 = vmatprep.subr.bf16.mxu0 0
  %1743 = vmatpush1.bf16.msra.mxu0 0
  %1744 = vmatprep.subr.bf16.mxu0 0
  %1745 = vmatpush1.bf16.msra.mxu0 0
  %1746 = vmatprep.subr.bf16.mxu0 0
  %1747 = vmatpush1.bf16.msra.mxu0 0
  %1748 = vmatprep.subr.bf16.mxu0 0
  %1749 = vmatpush1.bf16.msra.mxu0 %v1732
  %1750 = vmatprep.subr.bf16.mxu0 0
  %1751 = vmatpush2.bf16.msra.mxu0 0
  %1752 = vmatprep.subr.bf16.mxu0 0
  %1753 = vmatpush2.bf16.msra.mxu0 0
  %1754 = vmatprep.subr.bf16.mxu0 0
  %1755 = vmatpush2.bf16.msra.mxu0 0
  %1756 = vmatprep.subr.bf16.mxu0 0
  %1757 = vmatpush2.bf16.msra.mxu0 0
  %1758 = vmatprep.subr.bf16.mxu0 0
  %1759 = vmatpush2.bf16.msra.mxu0 0
  %1760 = vmatprep.subr.bf16.mxu0 0
  %1761 = vmatpush2.bf16.msra.mxu0 0
  %1762 = vmatprep.subr.bf16.mxu0 0
  %1763 = vmatpush2.bf16.msra.mxu0 0
  %1764 = vmatprep.subr.bf16.mxu0 0
  %1765 = vmatpush2.bf16.msra.mxu0 0
  %1766 = vmatprep.mubr.bf16.mxu0 0
  %1767 = vmatmul.mubr.bf16.gmra.mxu0 %v1729
  %v1768 = vpop.f32.mrf.mxu0
  %v1769 = vadd.f32 0.0, %v1768
  %v1770 = vpop.f32.mrf.mxu0
  %v1771 = vpop.f32.mrf.mxu0
  %v1772 = vpop.f32.mrf.mxu0
  %1773 = vdwg.mxu0
  %s1774 = scalar_lea.vmem %s4, 48
  %v1775 = vld [vmem:[%s1774] sm:$0xf]
  %v1776 = vld [vmem:[%s1774 + $0x4] sm:$0xf]
  %v1777 = vld [vmem:[%s1774 + $0x8] sm:$0xf]
  %v1778 = vld [vmem:[%s1774 + $0xc] sm:$0xf]
  %s1779 = scalar_lea.vmem %s5, 3
  %v1780 = vld [vmem:[%s1779] sm:$0x1]
  %v1782 = vlaneseq
  %v1783 = vshrl.u32 %v1782, 7
  %v1784 = vsub.s32 0, %v1783
  %v1785 = vrot.slane %v1780, %v1784
  %v1791 = vunpack.c.l.b16 %v1775
  %v1792 = vunpack.c.l.b16 %v1776
  %v1793 = vunpack.c.l.b16 %v1777
  %v1794 = vunpack.c.l.b16 %v1778
  %v1795 = vpack.c.b16 %v1792, %v1791
  %v1796 = vpack.c.b16 %v1794, %v1793
  %1799 = vmatprep.subr.bf16.mxu0 0
  %1800 = vmatpush1.bf16.msra.mxu0 0
  %1801 = vmatprep.subr.bf16.mxu0 0
  %1802 = vmatpush1.bf16.msra.mxu0 0
  %1803 = vmatprep.subr.bf16.mxu0 0
  %1804 = vmatpush1.bf16.msra.mxu0 0
  %1805 = vmatprep.subr.bf16.mxu0 0
  %1806 = vmatpush1.bf16.msra.mxu0 0
  %1807 = vmatprep.subr.bf16.mxu0 0
  %1808 = vmatpush1.bf16.msra.mxu0 0
  %1809 = vmatprep.subr.bf16.mxu0 0
  %1810 = vmatpush1.bf16.msra.mxu0 0
  %1811 = vmatprep.subr.bf16.mxu0 0
  %1812 = vmatpush1.bf16.msra.mxu0 %v1796
  %1813 = vmatprep.subr.bf16.mxu0 0
  %1814 = vmatpush1.bf16.msra.mxu0 %v1795
  %1815 = vmatprep.subr.bf16.mxu0 0
  %1816 = vmatpush2.bf16.msra.mxu0 0
  %1817 = vmatprep.subr.bf16.mxu0 0
  %1818 = vmatpush2.bf16.msra.mxu0 0
  %1819 = vmatprep.subr.bf16.mxu0 0
  %1820 = vmatpush2.bf16.msra.mxu0 0
  %1821 = vmatprep.subr.bf16.mxu0 0
  %1822 = vmatpush2.bf16.msra.mxu0 0
  %1823 = vmatprep.subr.bf16.mxu0 0
  %1824 = vmatpush2.bf16.msra.mxu0 0
  %1825 = vmatprep.subr.bf16.mxu0 0
  %1826 = vmatpush2.bf16.msra.mxu0 0
  %1827 = vmatprep.subr.bf16.mxu0 0
  %1828 = vmatpush2.bf16.msra.mxu0 0
  %1829 = vmatprep.subr.bf16.mxu0 0
  %1830 = vmatpush2.bf16.msra.mxu0 0
  %1831 = vmatprep.mubr.bf16.mxu0 0
  %1832 = vmatmul.mubr.bf16.gmra.mxu0 %v1385
  %v1833 = vpop.f32.mrf.mxu0
  %v1834 = vadd.f32 %v1785, %v1833
  %v1835 = vpop.f32.mrf.mxu0
  %v1836 = vpop.f32.mrf.mxu0
  %v1837 = vadd.f32 %v1785, %v1836
  %v1838 = vpop.f32.mrf.mxu0
  %1839 = vdwg.mxu0
  %v1840 = vpack.c.bf16 %v1834, %v1834
  %v1841 = vpack.c.bf16 %v1837, %v1837
  %s1842 = scalar_lea.vmem %s6, 48
  %v1843 = vld [vmem:[%s1842] sm:$0xf]
  %v1844 = vld [vmem:[%s1842 + $0x4] sm:$0xf]
  %v1845 = vld [vmem:[%s1842 + $0x8] sm:$0xf]
  %v1846 = vld [vmem:[%s1842 + $0xc] sm:$0xf]
  %s1847 = scalar_lea.vmem %s7, 3
  %v1848 = vld [vmem:[%s1847] sm:$0x1]
  %v1850 = vlaneseq
  %v1851 = vshrl.u32 %v1850, 7
  %v1852 = vsub.s32 0, %v1851
  %v1853 = vrot.slane %v1848, %v1852
  %v1859 = vunpack.c.l.b16 %v1843
  %v1860 = vunpack.c.l.b16 %v1844
  %v1861 = vunpack.c.l.b16 %v1845
  %v1862 = vunpack.c.l.b16 %v1846
  %v1863 = vpack.c.b16 %v1860, %v1859
  %v1864 = vpack.c.b16 %v1862, %v1861
  %1867 = vmatprep.subr.bf16.mxu0 0
  %1868 = vmatpush1.bf16.msra.mxu0 0
  %1869 = vmatprep.subr.bf16.mxu0 0
  %1870 = vmatpush1.bf16.msra.mxu0 0
  %1871 = vmatprep.subr.bf16.mxu0 0
  %1872 = vmatpush1.bf16.msra.mxu0 0
  %1873 = vmatprep.subr.bf16.mxu0 0
  %1874 = vmatpush1.bf16.msra.mxu0 0
  %1875 = vmatprep.subr.bf16.mxu0 0
  %1876 = vmatpush1.bf16.msra.mxu0 0
  %1877 = vmatprep.subr.bf16.mxu0 0
  %1878 = vmatpush1.bf16.msra.mxu0 0
  %1879 = vmatprep.subr.bf16.mxu0 0
  %1880 = vmatpush1.bf16.msra.mxu0 %v1864
  %1881 = vmatprep.subr.bf16.mxu0 0
  %1882 = vmatpush1.bf16.msra.mxu0 %v1863
  %1883 = vmatprep.subr.bf16.mxu0 0
  %1884 = vmatpush2.bf16.msra.mxu0 0
  %1885 = vmatprep.subr.bf16.mxu0 0
  %1886 = vmatpush2.bf16.msra.mxu0 0
  %1887 = vmatprep.subr.bf16.mxu0 0
  %1888 = vmatpush2.bf16.msra.mxu0 0
  %1889 = vmatprep.subr.bf16.mxu0 0
  %1890 = vmatpush2.bf16.msra.mxu0 0
  %1891 = vmatprep.subr.bf16.mxu0 0
  %1892 = vmatpush2.bf16.msra.mxu0 0
  %1893 = vmatprep.subr.bf16.mxu0 0
  %1894 = vmatpush2.bf16.msra.mxu0 0
  %1895 = vmatprep.subr.bf16.mxu0 0
  %1896 = vmatpush2.bf16.msra.mxu0 0
  %1897 = vmatprep.subr.bf16.mxu0 0
  %1898 = vmatpush2.bf16.msra.mxu0 0
  %1899 = vmatprep.mubr.bf16.mxu0 0
  %1900 = vmatmul.mubr.bf16.gmra.mxu0 %v1385
  %v1901 = vpop.f32.mrf.mxu0
  %v1902 = vadd.f32 %v1853, %v1901
  %v1903 = vpop.f32.mrf.mxu0
  %v1904 = vpop.f32.mrf.mxu0
  %v1905 = vadd.f32 %v1853, %v1904
  %v1906 = vpop.f32.mrf.mxu0
  %1907 = vdwg.mxu0
  %v1908 = vpack.c.bf16 %v1902, %v1902
  %v1909 = vpack.c.bf16 %v1905, %v1905
  %s1910 = scalar_lea.vmem %s8, 48
  %v1911 = vld [vmem:[%s1910] sm:$0xf]
  %v1912 = vld [vmem:[%s1910 + $0x4] sm:$0xf]
  %v1913 = vld [vmem:[%s1910 + $0x8] sm:$0xf]
  %v1914 = vld [vmem:[%s1910 + $0xc] sm:$0xf]
  %s1915 = scalar_lea.vmem %s9, 3
  %v1916 = vld [vmem:[%s1915] sm:$0x1]
  %v1918 = vlaneseq
  %v1919 = vshrl.u32 %v1918, 7
  %v1920 = vsub.s32 0, %v1919
  %v1921 = vrot.slane %v1916, %v1920
  %v1927 = vunpack.c.l.b16 %v1911
  %v1928 = vunpack.c.l.b16 %v1912
  %v1929 = vunpack.c.l.b16 %v1913
  %v1930 = vunpack.c.l.b16 %v1914
  %v1931 = vpack.c.b16 %v1928, %v1927
  %v1932 = vpack.c.b16 %v1930, %v1929
  %1935 = vmatprep.subr.bf16.mxu0 0
  %1936 = vmatpush1.bf16.msra.mxu0 0
  %1937 = vmatprep.subr.bf16.mxu0 0
  %1938 = vmatpush1.bf16.msra.mxu0 0
  %1939 = vmatprep.subr.bf16.mxu0 0
  %1940 = vmatpush1.bf16.msra.mxu0 0
  %1941 = vmatprep.subr.bf16.mxu0 0
  %1942 = vmatpush1.bf16.msra.mxu0 0
  %1943 = vmatprep.subr.bf16.mxu0 0
  %1944 = vmatpush1.bf16.msra.mxu0 0
  %1945 = vmatprep.subr.bf16.mxu0 0
  %1946 = vmatpush1.bf16.msra.mxu0 0
  %1947 = vmatprep.subr.bf16.mxu0 0
  %1948 = vmatpush1.bf16.msra.mxu0 %v1932
  %1949 = vmatprep.subr.bf16.mxu0 0
  %1950 = vmatpush1.bf16.msra.mxu0 %v1931
  %1951 = vmatprep.subr.bf16.mxu0 0
  %1952 = vmatpush2.bf16.msra.mxu0 0
  %1953 = vmatprep.subr.bf16.mxu0 0
  %1954 = vmatpush2.bf16.msra.mxu0 0
  %1955 = vmatprep.subr.bf16.mxu0 0
  %1956 = vmatpush2.bf16.msra.mxu0 0
  %1957 = vmatprep.subr.bf16.mxu0 0
  %1958 = vmatpush2.bf16.msra.mxu0 0
  %1959 = vmatprep.subr.bf16.mxu0 0
  %1960 = vmatpush2.bf16.msra.mxu0 0
  %1961 = vmatprep.subr.bf16.mxu0 0
  %1962 = vmatpush2.bf16.msra.mxu0 0
  %1963 = vmatprep.subr.bf16.mxu0 0
  %1964 = vmatpush2.bf16.msra.mxu0 0
  %1965 = vmatprep.subr.bf16.mxu0 0
  %1966 = vmatpush2.bf16.msra.mxu0 0
  %1967 = vmatprep.mubr.bf16.mxu0 0
  %1968 = vmatmul.mubr.bf16.gmra.mxu0 %v1385
  %v1969 = vpop.f32.mrf.mxu0
  %v1970 = vadd.f32 %v1921, %v1969
  %v1971 = vpop.f32.mrf.mxu0
  %v1972 = vpop.f32.mrf.mxu0
  %v1973 = vadd.f32 %v1921, %v1972
  %v1974 = vpop.f32.mrf.mxu0
  %1975 = vdwg.mxu0
  %v1976 = vpack.c.bf16 %v1970, %v1970
  %v1977 = vpack.c.bf16 %v1973, %v1973
  %v1979 = vsel %vm370, %v1840, 0
  %v1982 = vsel %vm370, %v1908, 0
  %1984 = vmatprep.subr.bf16.mxu0 0
  %1985 = vmatpush1.bf16.xpose.msra.mxu0 0
  %1986 = vmatprep.subr.bf16.mxu0 0
  %1987 = vmatpush1.bf16.xpose.msra.mxu0 0
  %1988 = vmatprep.subr.bf16.mxu0 0
  %1989 = vmatpush1.bf16.xpose.msra.mxu0 0
  %1990 = vmatprep.subr.bf16.mxu0 0
  %1991 = vmatpush1.bf16.xpose.msra.mxu0 0
  %1992 = vmatprep.subr.bf16.mxu0 0
  %1993 = vmatpush1.bf16.xpose.msra.mxu0 0
  %1994 = vmatprep.subr.bf16.mxu0 0
  %1995 = vmatpush1.bf16.xpose.msra.mxu0 0
  %1996 = vmatprep.subr.bf16.mxu0 0
  %1997 = vmatpush1.bf16.xpose.msra.mxu0 0
  %1998 = vmatprep.subr.bf16.mxu0 0
  %1999 = vmatpush1.bf16.xpose.msra.mxu0 %v1982
  %2000 = vmatprep.subr.bf16.mxu0 0
  %2001 = vmatpush2.bf16.xpose.msra.mxu0 0
  %2002 = vmatprep.subr.bf16.mxu0 0
  %2003 = vmatpush2.bf16.xpose.msra.mxu0 0
  %2004 = vmatprep.subr.bf16.mxu0 0
  %2005 = vmatpush2.bf16.xpose.msra.mxu0 0
  %2006 = vmatprep.subr.bf16.mxu0 0
  %2007 = vmatpush2.bf16.xpose.msra.mxu0 0
  %2008 = vmatprep.subr.bf16.mxu0 0
  %2009 = vmatpush2.bf16.xpose.msra.mxu0 0
  %2010 = vmatprep.subr.bf16.mxu0 0
  %2011 = vmatpush2.bf16.xpose.msra.mxu0 0
  %2012 = vmatprep.subr.bf16.mxu0 0
  %2013 = vmatpush2.bf16.xpose.msra.mxu0 0
  %2014 = vmatprep.subr.bf16.mxu0 0
  %2015 = vmatpush2.bf16.xpose.msra.mxu0 0
  %2016 = vmatprep.mubr.bf16.mxu0 0
  %2017 = vmatmul.mubr.bf16.gmra.mxu0 %v1979
  %v2018 = vpop.f32.mrf.mxu0
  %v2019 = vadd.f32 %v363, %v2018
  %v2020 = vpop.f32.mrf.mxu0
  %v2021 = vpop.f32.mrf.mxu0
  %v2022 = vpop.f32.mrf.mxu0
  %2023 = vdwg.mxu0
  %v2025 = vsel %vm370, %v1841, 0
  %v2028 = vsel %vm370, %v1909, 0
  %2030 = vmatprep.subr.bf16.mxu0 0
  %2031 = vmatpush1.bf16.xpose.msra.mxu0 0
  %2032 = vmatprep.subr.bf16.mxu0 0
  %2033 = vmatpush1.bf16.xpose.msra.mxu0 0
  %2034 = vmatprep.subr.bf16.mxu0 0
  %2035 = vmatpush1.bf16.xpose.msra.mxu0 0
  %2036 = vmatprep.subr.bf16.mxu0 0
  %2037 = vmatpush1.bf16.xpose.msra.mxu0 0
  %2038 = vmatprep.subr.bf16.mxu0 0
  %2039 = vmatpush1.bf16.xpose.msra.mxu0 0
  %2040 = vmatprep.subr.bf16.mxu0 0
  %2041 = vmatpush1.bf16.xpose.msra.mxu0 0
  %2042 = vmatprep.subr.bf16.mxu0 0
  %2043 = vmatpush1.bf16.xpose.msra.mxu0 0
  %2044 = vmatprep.subr.bf16.mxu0 0
  %2045 = vmatpush1.bf16.xpose.msra.mxu0 %v2028
  %2046 = vmatprep.subr.bf16.mxu0 0
  %2047 = vmatpush2.bf16.xpose.msra.mxu0 0
  %2048 = vmatprep.subr.bf16.mxu0 0
  %2049 = vmatpush2.bf16.xpose.msra.mxu0 0
  %2050 = vmatprep.subr.bf16.mxu0 0
  %2051 = vmatpush2.bf16.xpose.msra.mxu0 0
  %2052 = vmatprep.subr.bf16.mxu0 0
  %2053 = vmatpush2.bf16.xpose.msra.mxu0 0
  %2054 = vmatprep.subr.bf16.mxu0 0
  %2055 = vmatpush2.bf16.xpose.msra.mxu0 0
  %2056 = vmatprep.subr.bf16.mxu0 0
  %2057 = vmatpush2.bf16.xpose.msra.mxu0 0
  %2058 = vmatprep.subr.bf16.mxu0 0
  %2059 = vmatpush2.bf16.xpose.msra.mxu0 0
  %2060 = vmatprep.subr.bf16.mxu0 0
  %2061 = vmatpush2.bf16.xpose.msra.mxu0 0
  %2062 = vmatprep.mubr.bf16.mxu0 0
  %2063 = vmatmul.mubr.bf16.gmra.mxu0 %v2025
  %v2064 = vpop.f32.mrf.mxu0
  %v2065 = vadd.f32 %v367, %v2064
  %v2066 = vpop.f32.mrf.mxu0
  %v2067 = vpop.f32.mrf.mxu0
  %v2068 = vpop.f32.mrf.mxu0
  %2069 = vdwg.mxu0
  %v2070 = vsel %vm463, %v2019, -inf
  %2071 = vmax.xlane.f32.xlu0 %v2070
  %v2072 = vpop.xlane.xlu0 %2071
  %v2073 = vsel %vm463, %v2065, -inf
  %2074 = vmax.xlane.f32.xlu0 %v2073
  %v2075 = vpop.xlane.xlu0 %2074
  %v2076 = vsub.f32 %v2019, %v2072
  %v2077 = vsub.f32 %v2065, %v2075
  %v2078 = vmul.f32 %v2076, 1.442695
  %v2079 = vpow.pop %v2078
  %v2080 = vmul.f32 %v2077, 1.442695
  %v2081 = vpow.pop %v2080
  %v2082 = vsel %vm463, %v2079, 0.0
  %2083 = vadd.xlane.f32.xlu0 %v2082
  %v2084 = vpop.xlane.xlu0 %2083
  %v2085 = vsel %vm463, %v2081, 0.0
  %2086 = vadd.xlane.f32.xlu0 %v2085
  %v2087 = vpop.xlane.xlu0 %2086
  %v2088 = vrcp.pop %v2084
  %v2089 = vrcp.pop %v2087
  %v2090 = vmul.f32 %v2079, %v2088
  %v2091 = vmul.f32 %v2081, %v2089
  %v2092 = vpack.c.bf16 %v2090, %v2090
  %v2093 = vpack.c.bf16 %v2091, %v2091
  %v2095 = vsel %vm463, %v2092, 0
  %v2098 = vsel %vm491, %v1976, 0
  %2100 = vmatprep.subr.bf16.mxu0 0
  %2101 = vmatpush1.bf16.msra.mxu0 0
  %2102 = vmatprep.subr.bf16.mxu0 0
  %2103 = vmatpush1.bf16.msra.mxu0 0
  %2104 = vmatprep.subr.bf16.mxu0 0
  %2105 = vmatpush1.bf16.msra.mxu0 0
  %2106 = vmatprep.subr.bf16.mxu0 0
  %2107 = vmatpush1.bf16.msra.mxu0 0
  %2108 = vmatprep.subr.bf16.mxu0 0
  %2109 = vmatpush1.bf16.msra.mxu0 0
  %2110 = vmatprep.subr.bf16.mxu0 0
  %2111 = vmatpush1.bf16.msra.mxu0 0
  %2112 = vmatprep.subr.bf16.mxu0 0
  %2113 = vmatpush1.bf16.msra.mxu0 0
  %2114 = vmatprep.subr.bf16.mxu0 0
  %2115 = vmatpush1.bf16.msra.mxu0 %v2098
  %2116 = vmatprep.subr.bf16.mxu0 0
  %2117 = vmatpush2.bf16.msra.mxu0 0
  %2118 = vmatprep.subr.bf16.mxu0 0
  %2119 = vmatpush2.bf16.msra.mxu0 0
  %2120 = vmatprep.subr.bf16.mxu0 0
  %2121 = vmatpush2.bf16.msra.mxu0 0
  %2122 = vmatprep.subr.bf16.mxu0 0
  %2123 = vmatpush2.bf16.msra.mxu0 0
  %2124 = vmatprep.subr.bf16.mxu0 0
  %2125 = vmatpush2.bf16.msra.mxu0 0
  %2126 = vmatprep.subr.bf16.mxu0 0
  %2127 = vmatpush2.bf16.msra.mxu0 0
  %2128 = vmatprep.subr.bf16.mxu0 0
  %2129 = vmatpush2.bf16.msra.mxu0 0
  %2130 = vmatprep.subr.bf16.mxu0 0
  %2131 = vmatpush2.bf16.msra.mxu0 0
  %2132 = vmatprep.mubr.bf16.mxu0 0
  %2133 = vmatmul.mubr.bf16.gmra.mxu0 %v2095
  %v2134 = vpop.f32.mrf.mxu0
  %v2135 = vadd.f32 0.0, %v2134
  %v2136 = vpop.f32.mrf.mxu0
  %v2137 = vpop.f32.mrf.mxu0
  %v2138 = vpop.f32.mrf.mxu0
  %2139 = vdwg.mxu0
  %v2141 = vsel %vm463, %v2093, 0
  %v2144 = vsel %vm491, %v1977, 0
  %2146 = vmatprep.subr.bf16.mxu0 0
  %2147 = vmatpush1.bf16.msra.mxu0 0
  %2148 = vmatprep.subr.bf16.mxu0 0
  %2149 = vmatpush1.bf16.msra.mxu0 0
  %2150 = vmatprep.subr.bf16.mxu0 0
  %2151 = vmatpush1.bf16.msra.mxu0 0
  %2152 = vmatprep.subr.bf16.mxu0 0
  %2153 = vmatpush1.bf16.msra.mxu0 0
  %2154 = vmatprep.subr.bf16.mxu0 0
  %2155 = vmatpush1.bf16.msra.mxu0 0
  %2156 = vmatprep.subr.bf16.mxu0 0
  %2157 = vmatpush1.bf16.msra.mxu0 0
  %2158 = vmatprep.subr.bf16.mxu0 0
  %2159 = vmatpush1.bf16.msra.mxu0 0
  %2160 = vmatprep.subr.bf16.mxu0 0
  %2161 = vmatpush1.bf16.msra.mxu0 %v2144
  %2162 = vmatprep.subr.bf16.mxu0 0
  %2163 = vmatpush2.bf16.msra.mxu0 0
  %2164 = vmatprep.subr.bf16.mxu0 0
  %2165 = vmatpush2.bf16.msra.mxu0 0
  %2166 = vmatprep.subr.bf16.mxu0 0
  %2167 = vmatpush2.bf16.msra.mxu0 0
  %2168 = vmatprep.subr.bf16.mxu0 0
  %2169 = vmatpush2.bf16.msra.mxu0 0
  %2170 = vmatprep.subr.bf16.mxu0 0
  %2171 = vmatpush2.bf16.msra.mxu0 0
  %2172 = vmatprep.subr.bf16.mxu0 0
  %2173 = vmatpush2.bf16.msra.mxu0 0
  %2174 = vmatprep.subr.bf16.mxu0 0
  %2175 = vmatpush2.bf16.msra.mxu0 0
  %2176 = vmatprep.subr.bf16.mxu0 0
  %2177 = vmatpush2.bf16.msra.mxu0 0
  %2178 = vmatprep.mubr.bf16.mxu0 0
  %2179 = vmatmul.mubr.bf16.gmra.mxu0 %v2141
  %v2180 = vpop.f32.mrf.mxu0
  %v2181 = vadd.f32 0.0, %v2180
  %v2182 = vpop.f32.mrf.mxu0
  %v2183 = vpop.f32.mrf.mxu0
  %v2184 = vpop.f32.mrf.mxu0
  %2185 = vdwg.mxu0
  %2188 = vrot.lane.b32.xlu0 %v2135, 16
  %v2189 = vpop.permute.xlu0 %2188
  %2190 = vrot.lane.b32.xlu0 %v2181, 16
  %v2191 = vpop.permute.xlu0 %2190
  %v2194 = vsel %vm370, %v1723, %v2189
  %v2195 = vsel %vm370, %v1769, %v2191
  %v2196 = vpack.c.bf16 %v2194, %v2194
  %v2197 = vpack.c.bf16 %v2195, %v2195
  %s2198 = scalar_lea.vmem %s10, 16
  %v2199 = vld [vmem:[%s2198] sm:$0xf]
  %v2200 = vld [vmem:[%s2198 + $0x4] sm:$0xf]
  %v2201 = vld [vmem:[%s2198 + $0x8] sm:$0xf]
  %v2202 = vld [vmem:[%s2198 + $0xc] sm:$0xf]
  %s2203 = scalar_lea.vmem %s11, 1
  %v2204 = vld [vmem:[%s2203] sm:$0x1]
  %v2206 = vlaneseq
  %v2207 = vshrl.u32 %v2206, 7
  %v2208 = vsub.s32 0, %v2207
  %v2209 = vrot.slane %v2204, %v2208
  %v2213 = vunpack.c.l.b16 %v2196
  %v2214 = vunpack.c.l.b16 %v2197
  %v2215 = vpack.c.b16 %v2214, %v2213
  %v2220 = vunpack.c.l.b16 %v2199
  %v2221 = vunpack.c.l.b16 %v2200
  %v2222 = vunpack.c.l.b16 %v2201
  %v2223 = vunpack.c.l.b16 %v2202
  %v2224 = vpack.c.b16 %v2221, %v2220
  %v2225 = vpack.c.b16 %v2223, %v2222
  %v2229 = vsel %vm84, %v2215, 0
  %2231 = vmatprep.subr.bf16.mxu0 0
  %2232 = vmatpush1.bf16.msra.mxu0 0
  %2233 = vmatprep.subr.bf16.mxu0 0
  %2234 = vmatpush1.bf16.msra.mxu0 0
  %2235 = vmatprep.subr.bf16.mxu0 0
  %2236 = vmatpush1.bf16.msra.mxu0 0
  %2237 = vmatprep.subr.bf16.mxu0 0
  %2238 = vmatpush1.bf16.msra.mxu0 0
  %2239 = vmatprep.subr.bf16.mxu0 0
  %2240 = vmatpush1.bf16.msra.mxu0 0
  %2241 = vmatprep.subr.bf16.mxu0 0
  %2242 = vmatpush1.bf16.msra.mxu0 0
  %2243 = vmatprep.subr.bf16.mxu0 0
  %2244 = vmatpush1.bf16.msra.mxu0 %v2225
  %2245 = vmatprep.subr.bf16.mxu0 0
  %2246 = vmatpush1.bf16.msra.mxu0 %v2224
  %2247 = vmatprep.subr.bf16.mxu0 0
  %2248 = vmatpush2.bf16.msra.mxu0 0
  %2249 = vmatprep.subr.bf16.mxu0 0
  %2250 = vmatpush2.bf16.msra.mxu0 0
  %2251 = vmatprep.subr.bf16.mxu0 0
  %2252 = vmatpush2.bf16.msra.mxu0 0
  %2253 = vmatprep.subr.bf16.mxu0 0
  %2254 = vmatpush2.bf16.msra.mxu0 0
  %2255 = vmatprep.subr.bf16.mxu0 0
  %2256 = vmatpush2.bf16.msra.mxu0 0
  %2257 = vmatprep.subr.bf16.mxu0 0
  %2258 = vmatpush2.bf16.msra.mxu0 0
  %2259 = vmatprep.subr.bf16.mxu0 0
  %2260 = vmatpush2.bf16.msra.mxu0 0
  %2261 = vmatprep.subr.bf16.mxu0 0
  %2262 = vmatpush2.bf16.msra.mxu0 0
  %2263 = vmatprep.mubr.bf16.mxu0 0
  %2264 = vmatmul.mubr.bf16.gmra.mxu0 %v2229
  %v2265 = vpop.f32.mrf.mxu0
  %v2266 = vadd.f32 %v2209, %v2265
  %v2267 = vpop.f32.mrf.mxu0
  %v2268 = vpop.f32.mrf.mxu0
  %v2269 = vadd.f32 %v2209, %v2268
  %v2270 = vpop.f32.mrf.mxu0
  %2271 = vdwg.mxu0
  %v2272 = vadd.f32 %v2266, %v1350
  %v2273 = vadd.f32 %v2269, %v1351
  %s2274 = scalar_lea.vmem %s12, 1
  %v2275 = vld [vmem:[%s2274] sm:$0x1]
  %s2276 = scalar_lea.vmem %s13, 1
  %v2277 = vld [vmem:[%s2276] sm:$0x1]
  %v2278 = vsel %vm84, %v2272, 0.0
  %2279 = vadd.xlane.f32.xlu0 %v2278
  %v2280 = vpop.xlane.xlu0 %2279
  %v2281 = vsel %vm84, %v2273, 0.0
  %2282 = vadd.xlane.f32.xlu0 %v2281
  %v2283 = vpop.xlane.xlu0 %2282
  %v2284 = vmul.f32 %v2280, %v91
  %v2285 = vmul.f32 %v2283, %v91
  %v2286 = vsub.f32 %v2272, %v2284
  %v2287 = vsub.f32 %v2273, %v2285
  %v2288 = vmul.f32 %v2286, %v2286
  %v2289 = vmul.f32 %v2287, %v2287
  %v2290 = vsel %vm84, %v2288, 0.0
  %2291 = vadd.xlane.f32.xlu0 %v2290
  %v2292 = vpop.xlane.xlu0 %2291
  %v2293 = vsel %vm84, %v2289, 0.0
  %2294 = vadd.xlane.f32.xlu0 %v2293
  %v2295 = vpop.xlane.xlu0 %2294
  %v2296 = vmul.f32 %v2292, %v91
  %v2297 = vmul.f32 %v2295, %v91
  %v2298 = vadd.f32 %v2296, 1e-12
  %v2299 = vadd.f32 %v2297, 1e-12
  %v2300 = vrsqrt.pop %v2298
  %v2301 = vrsqrt.pop %v2299
  %v2302 = vmul.f32 %v2286, %v2300
  %v2303 = vmul.f32 %v2287, %v2301
  %v2305 = vlaneseq
  %v2306 = vshrl.u32 %v2305, 7
  %v2307 = vsub.s32 0, %v2306
  %v2308 = vrot.slane %v2275, %v2307
  %v2310 = vmul.f32 %v2302, %v2308
  %v2311 = vmul.f32 %v2303, %v2308
  %v2313 = vlaneseq
  %v2314 = vshrl.u32 %v2313, 7
  %v2315 = vsub.s32 0, %v2314
  %v2316 = vrot.slane %v2277, %v2315
  %v2318 = vadd.f32 %v2310, %v2316
  %v2319 = vadd.f32 %v2311, %v2316
  %v2320 = vpack.c.bf16 %v2318, %v2318
  %v2321 = vpack.c.bf16 %v2319, %v2319
  %s2322 = scalar_lea.vmem %s14, 16
  %v2323 = vld [vmem:[%s2322] sm:$0xf]
  %v2324 = vld [vmem:[%s2322 + $0x4] sm:$0xf]
  %v2325 = vld [vmem:[%s2322 + $0x8] sm:$0xf]
  %v2326 = vld [vmem:[%s2322 + $0xc] sm:$0xf]
  %s2327 = scalar_lea.vmem %s15, 1
  %v2328 = vld [vmem:[%s2327] sm:$0x1]
  %v2330 = vlaneseq
  %v2331 = vshrl.u32 %v2330, 7
  %v2332 = vsub.s32 0, %v2331
  %v2333 = vrot.slane %v2328, %v2332
  %v2337 = vunpack.c.l.b16 %v2320
  %v2338 = vunpack.c.l.b16 %v2321
  %v2339 = vpack.c.b16 %v2338, %v2337
  %v2344 = vunpack.c.l.b16 %v2323
  %v2345 = vunpack.c.l.b16 %v2324
  %v2346 = vunpack.c.l.b16 %v2325
  %v2347 = vunpack.c.l.b16 %v2326
  %v2348 = vpack.c.b16 %v2345, %v2344
  %v2349 = vpack.c.b16 %v2347, %v2346
  %v2353 = vsel %vm84, %v2339, 0
  %2355 = vmatprep.subr.bf16.mxu0 0
  %2356 = vmatpush1.bf16.msra.mxu0 0
  %2357 = vmatprep.subr.bf16.mxu0 0
  %2358 = vmatpush1.bf16.msra.mxu0 0
  %2359 = vmatprep.subr.bf16.mxu0 0
  %2360 = vmatpush1.bf16.msra.mxu0 0
  %2361 = vmatprep.subr.bf16.mxu0 0
  %2362 = vmatpush1.bf16.msra.mxu0 0
  %2363 = vmatprep.subr.bf16.mxu0 0
  %2364 = vmatpush1.bf16.msra.mxu0 0
  %2365 = vmatprep.subr.bf16.mxu0 0
  %2366 = vmatpush1.bf16.msra.mxu0 0
  %2367 = vmatprep.subr.bf16.mxu0 0
  %2368 = vmatpush1.bf16.msra.mxu0 %v2349
  %2369 = vmatprep.subr.bf16.mxu0 0
  %2370 = vmatpush1.bf16.msra.mxu0 %v2348
  %2371 = vmatprep.subr.bf16.mxu0 0
  %2372 = vmatpush2.bf16.msra.mxu0 0
  %2373 = vmatprep.subr.bf16.mxu0 0
  %2374 = vmatpush2.bf16.msra.mxu0 0
  %2375 = vmatprep.subr.bf16.mxu0 0
  %2376 = vmatpush2.bf16.msra.mxu0 0
  %2377 = vmatprep.subr.bf16.mxu0 0
  %2378 = vmatpush2.bf16.msra.mxu0 0
  %2379 = vmatprep.subr.bf16.mxu0 0
  %2380 = vmatpush2.bf16.msra.mxu0 0
  %2381 = vmatprep.subr.bf16.mxu0 0
  %2382 = vmatpush2.bf16.msra.mxu0 0
  %2383 = vmatprep.subr.bf16.mxu0 0
  %2384 = vmatpush2.bf16.msra.mxu0 0
  %2385 = vmatprep.subr.bf16.mxu0 0
  %2386 = vmatpush2.bf16.msra.mxu0 0
  %2387 = vmatprep.mubr.bf16.mxu0 0
  %2388 = vmatmul.mubr.bf16.gmra.mxu0 %v2353
  %v2389 = vpop.f32.mrf.mxu0
  %v2390 = vadd.f32 %v2333, %v2389
  %v2391 = vpop.f32.mrf.mxu0
  %v2392 = vpop.f32.mrf.mxu0
  %v2393 = vadd.f32 %v2333, %v2392
  %v2394 = vpop.f32.mrf.mxu0
  %2395 = vdwg.mxu0
  %v2396 = vmul.f32 %v2390, %v2390
  %v2397 = vmul.f32 %v2393, %v2393
  %v2398 = vmul.f32 %v2390, %v2396
  %v2399 = vmul.f32 %v2393, %v2397
  %v2400 = vmul.f32 %v2398, 0.044715
  %v2401 = vmul.f32 %v2399, 0.044715
  %v2402 = vadd.f32 %v2390, %v2400
  %v2403 = vadd.f32 %v2393, %v2401
  %v2404 = vmul.f32 %v2402, 0.7978846
  %v2405 = vmul.f32 %v2403, 0.7978846
  %v2406 = vtanh.pop %v2404
  %v2407 = vtanh.pop %v2405
  %v2408 = vadd.f32 %v2406, 1.0
  %v2409 = vadd.f32 %v2407, 1.0
  %v2410 = vmul.f32 %v2408, 0.5
  %v2411 = vmul.f32 %v2409, 0.5
  %v2412 = vmul.f32 %v2390, %v2410
  %v2413 = vmul.f32 %v2393, %v2411
  %v2414 = vpack.c.bf16 %v2412, %v2412
  %v2415 = vpack.c.bf16 %v2413, %v2413
  %s2416 = scalar_lea.vmem %s16, 32
  %v2417 = vld [vmem:[%s2416] sm:$0xf]
  %v2418 = vld [vmem:[%s2416 + $0x4] sm:$0xf]
  %v2419 = vld [vmem:[%s2416 + $0x8] sm:$0xf]
  %v2420 = vld [vmem:[%s2416 + $0xc] sm:$0xf]
  %v2421 = vld [vmem:[%s2416 + $0x10] sm:$0xf]
  %v2422 = vld [vmem:[%s2416 + $0x14] sm:$0xf]
  %v2423 = vld [vmem:[%s2416 + $0x18] sm:$0xf]
  %v2424 = vld [vmem:[%s2416 + $0x1c] sm:$0xf]
  %s2425 = scalar_lea.vmem %s17, 1
  %v2426 = vld [vmem:[%s2425] sm:$0x1]
  %v2428 = vlaneseq
  %v2429 = vshrl.u32 %v2428, 7
  %v2430 = vsub.s32 0, %v2429
  %v2431 = vrot.slane %v2426, %v2430
  %v2435 = vunpack.c.l.b16 %v2414
  %v2436 = vunpack.c.l.b16 %v2415
  %v2437 = vpack.c.b16 %v2436, %v2435
  %v2446 = vunpack.c.l.b16 %v2417
  %v2447 = vunpack.c.l.b16 %v2418
  %v2448 = vunpack.c.l.b16 %v2419
  %v2449 = vunpack.c.l.b16 %v2420
  %v2450 = vunpack.c.l.b16 %v2421
  %v2451 = vunpack.c.l.b16 %v2422
  %v2452 = vunpack.c.l.b16 %v2423
  %v2453 = vunpack.c.l.b16 %v2424
  %v2454 = vpack.c.b16 %v2447, %v2446
  %v2455 = vpack.c.b16 %v2449, %v2448
  %v2456 = vpack.c.b16 %v2451, %v2450
  %v2457 = vpack.c.b16 %v2453, %v2452
  %v2463 = vsel %vm1261, %v2437, 0
  %2465 = vmatprep.subr.bf16.mxu0 0
  %2466 = vmatpush1.bf16.msra.mxu0 0
  %2467 = vmatprep.subr.bf16.mxu0 0
  %2468 = vmatpush1.bf16.msra.mxu0 0
  %2469 = vmatprep.subr.bf16.mxu0 0
  %2470 = vmatpush1.bf16.msra.mxu0 0
  %2471 = vmatprep.subr.bf16.mxu0 0
  %2472 = vmatpush1.bf16.msra.mxu0 0
  %2473 = vmatprep.subr.bf16.mxu0 0
  %2474 = vmatpush1.bf16.msra.mxu0 %v2457
  %2475 = vmatprep.subr.bf16.mxu0 0
  %2476 = vmatpush1.bf16.msra.mxu0 %v2456
  %2477 = vmatprep.subr.bf16.mxu0 0
  %2478 = vmatpush1.bf16.msra.mxu0 %v2455
  %2479 = vmatprep.subr.bf16.mxu0 0
  %2480 = vmatpush1.bf16.msra.mxu0 %v2454
  %2481 = vmatprep.subr.bf16.mxu0 0
  %2482 = vmatpush2.bf16.msra.mxu0 0
  %2483 = vmatprep.subr.bf16.mxu0 0
  %2484 = vmatpush2.bf16.msra.mxu0 0
  %2485 = vmatprep.subr.bf16.mxu0 0
  %2486 = vmatpush2.bf16.msra.mxu0 0
  %2487 = vmatprep.subr.bf16.mxu0 0
  %2488 = vmatpush2.bf16.msra.mxu0 0
  %2489 = vmatprep.subr.bf16.mxu0 0
  %2490 = vmatpush2.bf16.msra.mxu0 0
  %2491 = vmatprep.subr.bf16.mxu0 0
  %2492 = vmatpush2.bf16.msra.mxu0 0
  %2493 = vmatprep.subr.bf16.mxu0 0
  %2494 = vmatpush2.bf16.msra.mxu0 0
  %2495 = vmatprep.subr.bf16.mxu0 0
  %2496 = vmatpush2.bf16.msra.mxu0 0
  %2497 = vmatprep.mubr.bf16.mxu0 0
  %2498 = vmatmul.mubr.bf16.gmra.mxu0 %v2463
  %v2499 = vpop.f32.mrf.mxu0
  %v2500 = vadd.f32 %v2431, %v2499
  %v2501 = vpop.f32.mrf.mxu0
  %v2502 = vpop.f32.mrf.mxu0
  %v2503 = vadd.f32 %v2431, %v2502
  %v2504 = vpop.f32.mrf.mxu0
  %2505 = vdwg.mxu0
  %v2506 = vadd.f32 %v2500, %v2318
  %v2507 = vadd.f32 %v2503, %v2319
  %s2508 = scalar_lea.vmem %s18, 1
  %v2509 = vld [vmem:[%s2508] sm:$0x1]
  %s2510 = scalar_lea.vmem %s19, 1
  %v2511 = vld [vmem:[%s2510] sm:$0x1]
  %v2512 = vsel %vm84, %v2506, 0.0
  %2513 = vadd.xlane.f32.xlu0 %v2512
  %v2514 = vpop.xlane.xlu0 %2513
  %v2515 = vsel %vm84, %v2507, 0.0
  %2516 = vadd.xlane.f32.xlu0 %v2515
  %v2517 = vpop.xlane.xlu0 %2516
  %v2518 = vmul.f32 %v2514, %v91
  %v2519 = vmul.f32 %v2517, %v91
  %v2520 = vsub.f32 %v2506, %v2518
  %v2521 = vsub.f32 %v2507, %v2519
  %v2522 = vmul.f32 %v2520, %v2520
  %v2523 = vmul.f32 %v2521, %v2521
  %v2524 = vsel %vm84, %v2522, 0.0
  %2525 = vadd.xlane.f32.xlu0 %v2524
  %v2526 = vpop.xlane.xlu0 %2525
  %v2527 = vsel %vm84, %v2523, 0.0
  %2528 = vadd.xlane.f32.xlu0 %v2527
  %v2529 = vpop.xlane.xlu0 %2528
  %v2530 = vmul.f32 %v2526, %v91
  %v2531 = vmul.f32 %v2529, %v91
  %v2532 = vadd.f32 %v2530, 1e-12
  %v2533 = vadd.f32 %v2531, 1e-12
  %v2534 = vrsqrt.pop %v2532
  %v2535 = vrsqrt.pop %v2533
  %v2536 = vmul.f32 %v2520, %v2534
  %v2537 = vmul.f32 %v2521, %v2535
  %v2539 = vlaneseq
  %v2540 = vshrl.u32 %v2539, 7
  %v2541 = vsub.s32 0, %v2540
  %v2542 = vrot.slane %v2509, %v2541
  %v2544 = vmul.f32 %v2536, %v2542
  %v2545 = vmul.f32 %v2537, %v2542
  %v2547 = vlaneseq
  %v2548 = vshrl.u32 %v2547, 7
  %v2549 = vsub.s32 0, %v2548
  %v2550 = vrot.slane %v2511, %v2549
  %v2552 = vadd.f32 %v2544, %v2550
  %v2553 = vadd.f32 %v2545, %v2550
  %v2554 = vpack.c.bf16 %v2552, %v2552
  %v2555 = vpack.c.bf16 %v2553, %v2553
  %v2556 = vld [vmem:[%s20] sm:$0xf]
  %v2557 = vld [vmem:[%s20 + $0x4] sm:$0xf]
  %v2558 = vld [vmem:[%s20 + $0x8] sm:$0xf]
  %v2559 = vld [vmem:[%s20 + $0xc] sm:$0xf]
  %v2560 = vld [vmem:[%s21] sm:$0x1]
  %v2563 = vunpack.c.l.b16 %v2554
  %v2564 = vunpack.c.l.b16 %v2555
  %v2565 = vrot.slane %v2564, 7
  %vm2566 = vcmask 1041409
  %v2567 = vsel %vm2566, %v2565, %v2563
  %v2568 = vpack.c.b16 %v2567, %v2567
  %v2573 = vunpack.c.l.b16 %v2556
  %v2574 = vunpack.c.l.b16 %v2557
  %v2575 = vunpack.c.l.b16 %v2558
  %v2576 = vunpack.c.l.b16 %v2559
  %v2577 = vpack.c.b16 %v2574, %v2573
  %v2578 = vpack.c.b16 %v2576, %v2575
  %v2582 = vcombine.low %v2560, %v2560
  %v2584 = vunpack.c.l.s4 1966171168
  %v2585 = vunpack.c.0.s8 %v2584
  %v2586 = vlaneseq
  %v2587 = vshrl.u32 %v2586, 7
  %v2588 = vsub.s32 %v2585, %v2587
  %v2589 = vrot.slane %v2582, %v2588
  %v2591 = vunpack.c.l.s4 1966171168
  %v2592 = vunpack.c.0.s8 %v2591
  %v2593 = vlaneseq
  %v2594 = vshrl.u32 %v2593, 7
  %v2595 = vsub.s32 %v2592, %v2594
  %v2596 = vrot.slane %v2589, %v2595
  %v2599 = vsel %vm84, %v2568, 0
  %2601 = vmatprep.subr.bf16.mxu0 0
  %2602 = vmatpush1.bf16.msra.mxu0 0
  %2603 = vmatprep.subr.bf16.mxu0 0
  %2604 = vmatpush1.bf16.msra.mxu0 0
  %2605 = vmatprep.subr.bf16.mxu0 0
  %2606 = vmatpush1.bf16.msra.mxu0 0
  %2607 = vmatprep.subr.bf16.mxu0 0
  %2608 = vmatpush1.bf16.msra.mxu0 0
  %2609 = vmatprep.subr.bf16.mxu0 0
  %2610 = vmatpush1.bf16.msra.mxu0 0
  %2611 = vmatprep.subr.bf16.mxu0 0
  %2612 = vmatpush1.bf16.msra.mxu0 0
  %2613 = vmatprep.subr.bf16.mxu0 0
  %2614 = vmatpush1.bf16.msra.mxu0 %v2578
  %2615 = vmatprep.subr.bf16.mxu0 0
  %2616 = vmatpush1.bf16.msra.mxu0 %v2577
  %2617 = vmatprep.subr.bf16.mxu0 0
  %2618 = vmatpush2.bf16.msra.mxu0 0
  %2619 = vmatprep.subr.bf16.mxu0 0
  %2620 = vmatpush2.bf16.msra.mxu0 0
  %2621 = vmatprep.subr.bf16.mxu0 0
  %2622 = vmatpush2.bf16.msra.mxu0 0
  %2623 = vmatprep.subr.bf16.mxu0 0
  %2624 = vmatpush2.bf16.msra.mxu0 0
  %2625 = vmatprep.subr.bf16.mxu0 0
  %2626 = vmatpush2.bf16.msra.mxu0 0
  %2627 = vmatprep.subr.bf16.mxu0 0
  %2628 = vmatpush2.bf16.msra.mxu0 0
  %2629 = vmatprep.subr.bf16.mxu0 0
  %2630 = vmatpush2.bf16.msra.mxu0 0
  %2631 = vmatprep.subr.bf16.mxu0 0
  %2632 = vmatpush2.bf16.msra.mxu0 0
  %2633 = vmatprep.mubr.bf16.mxu0 0
  %2634 = vmatmul.mubr.bf16.gmra.mxu0 %v2599
  %v2635 = vpop.f32.mrf.mxu0
  %v2636 = vadd.f32 %v2596, %v2635
  %v2637 = vpop.f32.mrf.mxu0
  %v2638 = vpop.f32.mrf.mxu0
  %v2639 = vpop.f32.mrf.mxu0
  %2640 = vdwg.mxu0
  %v2643 = vunpack.c.l.s4 1966171168
  %v2644 = vunpack.c.0.s8 %v2643
  %v2645 = vlaneseq
  %v2646 = vshrl.u32 %v2645, 7
  %v2647 = vsub.s32 %v2644, %v2646
  %v2648 = vrot.slane %v2636, %v2647
  %v2649 = vcombine.high %v2648, %v2648
  %v2651 = vunpack.c.l.s4 1966171168
  %v2652 = vunpack.c.0.s8 %v2651
  %v2653 = vlaneseq
  %v2654 = vshrl.u32 %v2653, 7
  %v2655 = vsub.s32 %v2652, %v2654
  %v2656 = vrot.slane %v2648, %v2655
  %v2658 = vunpack.c.l.s4 1966171168
  %v2659 = vunpack.c.0.s8 %v2658
  %v2660 = vlaneseq
  %v2661 = vshrl.u32 %v2660, 7
  %v2662 = vsub.s32 %v2659, %v2661
  %v2663 = vrot.slane %v2649, %v2662
  %v2666 = vtanh.pop %v2656
  %v2667 = vtanh.pop %v2663
  %v2668 = vld [vmem:[%s22] sm:$0x1]
  %v2669 = vmul.f32 %v2666, %v2668
  %v2670 = vmul.f32 %v2667, %v2668
  %vm2671 = vcmask 253952
  %v2672 = vsel %vm2671, %v2669, 0.0
  %2673 = vadd.xlane.f32.xlu0 %v2672
  %v2674 = vpop.xlane.xlu0 %2673
  %v2675 = vsel %vm2671, %v2670, 0.0
  %2676 = vadd.xlane.f32.xlu0 %v2675
  %v2677 = vpop.xlane.xlu0 %2676
  %v2678 = vld [vmem:[#allocation2] sm:$0x1]
  %v2680 = vlaneseq
  %v2681 = vshrl.u32 %v2680, 7
  %v2682 = vsub.s32 0, %v2681
  %v2683 = vrot.slane %v2678, %v2682
  %2685 = vbcast.lane.b32.xlu0 %v2683, 256
  %v2686 = vpop.permute.xlu0 %2685
  %v2688 = vadd.f32 %v2674, %v2686
  %v2689 = vadd.f32 %v2677, %v2686
  %v2692 = vrot.slane %v2689, 7
  %v2693 = vsel %vm2566, %v2692, %v2688
  %vm2695 = vcmask 1024
  %2696 = vst.msk [vmem:[%s24] sm:$0x3] %vm2695, %v2693
  // Predicated region
  $region98: #{models_forward.1} parent=0 // pred_check
    _
  $region99: #{models_forward.1} parent=0 // pred_check_branch
    %2698 = sbr.rel (0) target = $region101
  $region100: #{models_forward.1} parent=0 // pred_region
    _
  $region101: #{models_forward.1} parent=0 // pred_fallthru
    _
  // Predicated region
  $region102: #{models_forward.1} parent=0 // pred_check
    _
  $region103: #{models_forward.1} parent=0 // pred_check_branch
    %2700 = sbr.rel (0) target = $region105
  $region104: #{models_forward.1} parent=0 // pred_region
    _
  $region105: #{models_forward.1} parent=0 // pred_fallthru
    _

</llo_original>
